<compile_context>
chip_gen: v7x
topology: tpu7x:2x2x1
jax: 0.10.0
libtpu: 0.0.40
codegen_flags: <defaults>
</compile_context>

<pallas_src>
import math

import jax
import jax.numpy as jnp
from jax.experimental import pallas as pl

# ---- model dims (small deterministic synthetic config; lane-dense d_model) ----
BATCH = 2
SEQ = 8
BS = BATCH * SEQ     # folded (batch*seq) rows = 16 sublanes
VOCAB = 32
D = 128              # d_model (multiple of 128 -> dense lane axis)
H = 4                # attention heads
DH = D // H          # per-head dim
DFF = 256            # feed-forward hidden dim
D_OUT = 128          # output projection dim
N_LAYERS = 2
EPS = 1e-5           # nn.LayerNorm default eps
SCALE = 1.0 / math.sqrt(DH)
EMB_SCALE = math.sqrt(D)


def _bf16(x):
    return x.astype(jnp.bfloat16)


def _layernorm(h, w, b):
    # one-pass variance: two independent lane reductions (shared by kernel and reference)
    mu = jnp.mean(h, axis=-1, keepdims=True)
    var = jnp.mean(h * h, axis=-1, keepdims=True) - mu * mu
    return (h - mu) * jax.lax.rsqrt(var + EPS) * w + b


# ----------------------- fused whole-model kernel (single step, no grid) -----------------------
def transformer_kernel(ids_ref, mask_ref, emb_ref, pe_ref,
                       wqkv_ref, bqkv_ref, wo_ref, bo_ref,
                       ln1w_ref, ln1b_ref, ln2w_ref, ln2b_ref,
                       w1_ref, b1_ref, w2_ref, b2_ref,
                       fnw_ref, fnb_ref, wl_ref, bl_ref,
                       out_ref):
    # --- src_embed: token embedding (one-hot MXU gather) * sqrt(D) + positional encoding ---
    ids = ids_ref[...]                                              # (BS, 1) int32
    iota_v = jax.lax.broadcasted_iota(jnp.int32, (BS, VOCAB), 1)    # (BS, V)
    onehot = _bf16(jnp.where(ids == iota_v, 1.0, 0.0))              # (BS, V)
    x = jnp.dot(onehot, emb_ref[...], preferred_element_type=jnp.float32)
    x = x * EMB_SCALE + pe_ref[...]                                 # (BS, D) f32

    # block-diagonal additive attention mask (precomputed on host), broadcast over heads
    mask_add = mask_ref[...]                                        # (BS, BS) f32

    for l in range(N_LAYERS):                                       # static unroll over layers
        # --- self-attention sublayer: x + Attn(LN(x)) ---
        h = _layernorm(x, ln1w_ref[l], ln1b_ref[l])                 # (BS, D) f32
        qkv = jnp.dot(_bf16(h), wqkv_ref[l],                        # ONE lane-dense QKV matmul
                      preferred_element_type=jnp.float32) + bqkv_ref[l]   # (BS, 3D)
        qkvb = _bf16(qkv)
        parts = [qkvb[:, j * DH:(j + 1) * DH] for j in range(3 * H)]
        qh = jnp.stack(parts[0:H], axis=0)                          # (H, BS, DH) bf16
        kh = jnp.stack(parts[H:2 * H], axis=0)
        vh = jnp.stack(parts[2 * H:3 * H], axis=0)

        scores = jax.lax.dot_general(                               # (H, BS, BS)
            qh, kh, (((2,), (2,)), ((0,), (0,))),
            preferred_element_type=jnp.float32) * SCALE
        scores = scores + mask_add
        scores = scores - jnp.max(scores, axis=-1, keepdims=True)
        p = jnp.exp(scores)
        p = p / jnp.sum(p, axis=-1, keepdims=True)                  # exact divide (matches ref)

        ctx = jax.lax.dot_general(                                  # (H, BS, DH)
            _bf16(p), vh, (((2,), (1,)), ((0,), (0,))),
            preferred_element_type=jnp.float32)
        ctx_flat = jnp.concatenate([ctx[i] for i in range(H)], axis=-1)   # (BS, D)
        x = x + jnp.dot(_bf16(ctx_flat), wo_ref[l],                 # ONE K=128 out-projection
                        preferred_element_type=jnp.float32) + bo_ref[l]

        # --- feed-forward sublayer: x + FFN(LN(x)) ---
        h2 = _layernorm(x, ln2w_ref[l], ln2b_ref[l])
        ff = jnp.dot(_bf16(h2), w1_ref[l],
                     preferred_element_type=jnp.float32) + b1_ref[l]
        ff = jnp.maximum(ff, 0.0)
        x = x + jnp.dot(_bf16(ff), w2_ref[l],
                        preferred_element_type=jnp.float32) + b2_ref[l]

    # --- final LayerNorm, output Linear, ReLU ---
    xn = _layernorm(x, fnw_ref[...], fnb_ref[...])
    y = jnp.dot(_bf16(xn), wl_ref[...],
                preferred_element_type=jnp.float32) + bl_ref[...]
    out_ref[...] = jnp.maximum(y, 0.0)


# ----------------------------- wrapper -----------------------------
def transformer_forward(src, mask, emb, pe, packed, final_norm, linear):
    fnw, fnb = final_norm
    wl, bl = linear

    # ---- layout plumbing on host (fold batch into the sublane axis) ----
    ids_flat = src.reshape(BS, 1)                                   # row r = b*SEQ + s
    pe_flat = jnp.tile(pe, (BATCH, 1))                              # (BS, D)
    # block-diagonal additive mask: 0 for same-batch valid keys, -1e9 otherwise
    r = jnp.arange(BS)
    same_batch = (r[:, None] // SEQ) == (r[None, :] // SEQ)
    key_valid = mask.reshape(BS) > 0.5
    mask_add = jnp.where(same_batch & key_valid[None, :], 0.0, -1e9).astype(jnp.float32)

    inputs = [ids_flat, mask_add, emb, pe_flat] + list(packed) + [fnw, fnb, wl, bl]
    out_flat = pl.pallas_call(
        transformer_kernel,
        out_shape=jax.ShapeDtypeStruct((BS, D_OUT), jnp.float32),
        # no grid: single step, every (small) operand mapped whole into VMEM
    )(*inputs)
    return out_flat.reshape(BATCH, SEQ, D_OUT)


# --------------- parameter init / packing (wrapper-side layout plumbing) ---------------
def init_layer_params(key):
    ks = jax.random.split(key, 12)

    def lin(kw, kb, din, dout):
        w = jax.random.normal(kw, (din, dout), jnp.float32) / math.sqrt(din)
        b = 0.02 * jax.random.normal(kb, (dout,), jnp.float32)
        return w, b

    wq, bq = lin(ks[0], ks[1], D, D)
    wk, bk = lin(ks[2], ks[3], D, D)
    wv, bv = lin(ks[4], ks[5], D, D)
    wo, bo = lin(ks[6], ks[7], D, D)
    w1, b1 = lin(ks[8], ks[9], D, DFF)
    w2, b2 = lin(ks[10], ks[11], DFF, D)
    ln1w, ln1b = jnp.ones((D,), jnp.float32), jnp.zeros((D,), jnp.float32)
    ln2w, ln2b = jnp.ones((D,), jnp.float32), jnp.zeros((D,), jnp.float32)
    return [wq, bq, wk, bk, wv, bv, wo, bo,
            ln1w, ln1b, ln2w, ln2b, w1, b1, w2, b2]


def pack_layer_params(layer_params):
    cols = [[] for _ in range(12)]
    for p in layer_params:
        (wq, bq, wk, bk, wv, bv, wo, bo,
         ln1w, ln1b, ln2w, ln2b, w1, b1, w2, b2) = p
        # [wq | wk | wv] along the output (lane) axis -> one (D, 3*H*DH) matmul per layer.
        # Natural column order == per-head DH-wide slices used by the kernel and reference.
        wqkv = jnp.concatenate([wq, wk, wv], axis=1).astype(jnp.bfloat16)   # (D, 3D)
        bqkv = jnp.concatenate([bq, bk, bv], axis=0).reshape(1, 3 * D)      # (1, 3D) f32
        packed = [
            wqkv, bqkv,
            wo.astype(jnp.bfloat16), bo.reshape(1, D),                      # full-depth out proj
            ln1w.reshape(1, D), ln1b.reshape(1, D),
            ln2w.reshape(1, D), ln2b.reshape(1, D),
            w1.astype(jnp.bfloat16), b1.reshape(1, DFF),
            w2.astype(jnp.bfloat16), b2.reshape(1, D),
        ]
        for c, a in zip(cols, packed):
            c.append(a)
    return [jnp.stack(c, axis=0) for c in cols]                             # leading layer axis


def make_positional_encoding(seq, d):
    pos = jnp.arange(seq, dtype=jnp.float32)[:, None]
    idx = jnp.arange(0, d, 2, dtype=jnp.float32)[None, :]
    angle = pos / jnp.power(10000.0, idx / d)
    pe = jnp.zeros((seq, d), jnp.float32)
    pe = pe.at[:, 0::2].set(jnp.sin(angle))
    pe = pe.at[:, 1::2].set(jnp.cos(angle))
    return pe


# ------------------ pure-JAX reference (same bf16 / f32-accum policy) ------------------
def _mm(a, b):
    return jnp.dot(a.astype(jnp.bfloat16), b.astype(jnp.bfloat16),
                   preferred_element_type=jnp.float32)


def _ref_layer(x, mask, p):
    (wq, bq, wk, bk, wv, bv, wo, bo,
     ln1w, ln1b, ln2w, ln2b, w1, b1, w2, b2) = p
    Bv, Sv, _ = x.shape
    h = _layernorm(x, ln1w, ln1b)
    q = (_mm(h, wq) + bq).reshape(Bv, Sv, H, DH).transpose(0, 2, 1, 3)
    k = (_mm(h, wk) + bk).reshape(Bv, Sv, H, DH).transpose(0, 2, 1, 3)
    v = (_mm(h, wv) + bv).reshape(Bv, Sv, H, DH).transpose(0, 2, 1, 3)
    sc = jnp.einsum('bhqd,bhkd->bhqk', q.astype(jnp.bfloat16), k.astype(jnp.bfloat16),
                    preferred_element_type=jnp.float32) * SCALE
    sc = sc + ((mask - 1.0) * 1e9)[:, :, None, :]
    sc = sc - sc.max(-1, keepdims=True)
    pr = jnp.exp(sc)
    pr = pr / pr.sum(-1, keepdims=True)
    ctx = jnp.einsum('bhqk,bhkd->bhqd', pr.astype(jnp.bfloat16), v.astype(jnp.bfloat16),
                     preferred_element_type=jnp.float32)
    attn = ctx.transpose(0, 2, 1, 3).reshape(Bv, Sv, D)
    x = x + _mm(attn, wo) + bo
    h2 = _layernorm(x, ln2w, ln2b)
    return x + _mm(jnp.maximum(_mm(h2, w1) + b1, 0.0), w2) + b2


def _ref_model(src, mask, emb, pe, layer_params, final_norm, linear):
    x = emb[src[..., 0]].astype(jnp.float32) * EMB_SCALE + pe
    for p in layer_params:
        x = _ref_layer(x, mask, p)
    x = _layernorm(x, *final_norm)
    wl, bl = linear
    return jnp.maximum(_mm(x, wl) + bl, 0.0)


# --------------------------------- main ---------------------------------
if __name__ == "__main__":
    root = jax.random.PRNGKey(0)
    k_src, k_emb, k_lin, k_bl, *layer_keys = jax.random.split(root, 4 + N_LAYERS)

    # token ids and key mask (batch 1 has its last two keys padded out)
    src = jax.random.randint(k_src, (BATCH, SEQ, 1), 0, VOCAB, dtype=jnp.int32)
    mask = jnp.ones((BATCH, 1, SEQ), jnp.float32).at[1, 0, -2:].set(0.0)

    emb = (jax.random.normal(k_emb, (VOCAB, D), jnp.float32) / math.sqrt(D)).astype(jnp.bfloat16)
    pe = make_positional_encoding(SEQ, D)

    layer_params = [init_layer_params(k) for k in layer_keys]
    packed = pack_layer_params(layer_params)

    final_norm = (jnp.ones((1, D), jnp.float32), jnp.zeros((1, D), jnp.float32))
    wl = (jax.random.normal(k_lin, (D, D_OUT), jnp.float32) / math.sqrt(D)).astype(jnp.bfloat16)
    bl = 0.02 * jax.random.normal(k_bl, (1, D_OUT), jnp.float32)

    out = transformer_forward(src, mask, emb, pe, packed, final_norm, (wl, bl))
    out = jax.block_until_ready(out)

    ref = _ref_model(src, mask, emb, pe, layer_params, final_norm, (wl, bl))
    assert out.shape == (BATCH, SEQ, D_OUT)
    err = float(jnp.max(jnp.abs(out - ref)))
    assert jnp.allclose(out, ref, atol=1e-2, rtol=1e-2), err

    print("KERNEL_OK")
</pallas_src>

<mosaic_0001>
module attributes {stable_mosaic.version = 11 : i64} {
  func.func @transformer_kernel(%arg0: memref<16x1xi32, #tpu.memory_space<vmem>>, %arg1: memref<16x16xf32, #tpu.memory_space<vmem>>, %arg2: memref<32x128xbf16, #tpu.memory_space<vmem>>, %arg3: memref<16x128xf32, #tpu.memory_space<vmem>>, %arg4: memref<2x128x384xbf16, #tpu.memory_space<vmem>>, %arg5: memref<2x1x384xf32, #tpu.memory_space<vmem>>, %arg6: memref<2x128x128xbf16, #tpu.memory_space<vmem>>, %arg7: memref<2x1x128xf32, #tpu.memory_space<vmem>>, %arg8: memref<2x1x128xf32, #tpu.memory_space<vmem>>, %arg9: memref<2x1x128xf32, #tpu.memory_space<vmem>>, %arg10: memref<2x1x128xf32, #tpu.memory_space<vmem>>, %arg11: memref<2x1x128xf32, #tpu.memory_space<vmem>>, %arg12: memref<2x128x256xbf16, #tpu.memory_space<vmem>>, %arg13: memref<2x1x256xf32, #tpu.memory_space<vmem>>, %arg14: memref<2x256x128xbf16, #tpu.memory_space<vmem>>, %arg15: memref<2x1x128xf32, #tpu.memory_space<vmem>>, %arg16: memref<1x128xf32, #tpu.memory_space<vmem>>, %arg17: memref<1x128xf32, #tpu.memory_space<vmem>>, %arg18: memref<128x128xbf16, #tpu.memory_space<vmem>>, %arg19: memref<1x128xf32, #tpu.memory_space<vmem>>, %arg20: memref<16x128xf32, #tpu.memory_space<vmem>>) attributes {dimension_semantics = [], scalar_prefetch = 0 : i64, scratch_operands = 0 : i64, tpu.core_type = #tpu.core_type<tc>} {
    %c0 = arith.constant 0 : index
    %c0_0 = arith.constant 0 : index
    %0 = vector.load %arg0[%c0, %c0_0] : memref<16x1xi32, #tpu.memory_space<vmem>>, vector<16x1xi32>
    %1 = tpu.iota {dimensions = array<i32: 1>} : vector<16x32xi32>
    %2 = vector.broadcast %0 : vector<16x1xi32> to vector<16x32xi32>
    %3 = arith.cmpi eq, %2, %1 : vector<16x32xi32>
    %cst = arith.constant 1.000000e+00 : f32
    %cst_1 = arith.constant 0.000000e+00 : f32
    %4 = vector.broadcast %cst : f32 to vector<16x32xf32>
    %5 = vector.broadcast %cst_1 : f32 to vector<16x32xf32>
    %6 = arith.select %3, %4, %5 : vector<16x32xi1>, vector<16x32xf32>
    %7 = arith.truncf %6 : vector<16x32xf32> to vector<16x32xbf16>
    %c0_2 = arith.constant 0 : index
    %c0_3 = arith.constant 0 : index
    %8 = vector.load %arg2[%c0_2, %c0_3] : memref<32x128xbf16, #tpu.memory_space<vmem>>, vector<32x128xbf16>
    %cst_4 = arith.constant dense<0.000000e+00> : vector<16x128xf32>
    %9 = tpu.matmul %7, %8, %cst_4 {dimension_numbers = #tpu.dot_dimension_numbers<[1], [0], [0], [1], [0, 0, 1, 1], [], []>} : vector<16x32xbf16>, vector<32x128xbf16>, vector<16x128xf32> -> vector<16x128xf32>
    %cst_5 = arith.constant 11.3137083 : f32
    %10 = vector.broadcast %cst_5 : f32 to vector<16x128xf32>
    %11 = arith.mulf %9, %10 : vector<16x128xf32>
    %c0_6 = arith.constant 0 : index
    %c0_7 = arith.constant 0 : index
    %12 = vector.load %arg3[%c0_6, %c0_7] : memref<16x128xf32, #tpu.memory_space<vmem>>, vector<16x128xf32>
    %13 = arith.addf %11, %12 : vector<16x128xf32>
    %c0_8 = arith.constant 0 : index
    %c0_9 = arith.constant 0 : index
    %14 = vector.load %arg1[%c0_8, %c0_9] : memref<16x16xf32, #tpu.memory_space<vmem>>, vector<16x16xf32>
    %c0_10 = arith.constant 0 : index
    %c0_11 = arith.constant 0 : index
    %c0_12 = arith.constant 0 : index
    %15 = vector.load %arg8[%c0_10, %c0_11, %c0_12] : memref<2x1x128xf32, #tpu.memory_space<vmem>>, vector<1x1x128xf32>
    %16 = vector.shape_cast %15 : vector<1x1x128xf32> to vector<1x128xf32>
    %c0_13 = arith.constant 0 : index
    %c0_14 = arith.constant 0 : index
    %c0_15 = arith.constant 0 : index
    %17 = vector.load %arg9[%c0_13, %c0_14, %c0_15] : memref<2x1x128xf32, #tpu.memory_space<vmem>>, vector<1x1x128xf32>
    %18 = vector.shape_cast %17 : vector<1x1x128xf32> to vector<1x128xf32>
    %cst_16 = arith.constant dense<0.000000e+00> : vector<16xf32>
    %19 = vector.multi_reduction <add>, %13, %cst_16 [1] : vector<16x128xf32> to vector<16xf32>
    %20 = vector.shape_cast %19 : vector<16xf32> to vector<16x1xf32>
    %cst_17 = arith.constant 1.280000e+02 : f32
    %21 = vector.broadcast %cst_17 : f32 to vector<16x1xf32>
    %22 = arith.divf %20, %21 : vector<16x1xf32>
    %23 = arith.mulf %13, %13 : vector<16x128xf32>
    %cst_18 = arith.constant dense<0.000000e+00> : vector<16xf32>
    %24 = vector.multi_reduction <add>, %23, %cst_18 [1] : vector<16x128xf32> to vector<16xf32>
    %25 = vector.shape_cast %24 : vector<16xf32> to vector<16x1xf32>
    %cst_19 = arith.constant 1.280000e+02 : f32
    %26 = vector.broadcast %cst_19 : f32 to vector<16x1xf32>
    %27 = arith.divf %25, %26 : vector<16x1xf32>
    %28 = arith.mulf %22, %22 : vector<16x1xf32>
    %29 = arith.subf %27, %28 : vector<16x1xf32>
    %30 = vector.broadcast %22 : vector<16x1xf32> to vector<16x128xf32>
    %31 = arith.subf %13, %30 : vector<16x128xf32>
    %cst_20 = arith.constant 9.99999974E-6 : f32
    %32 = vector.broadcast %cst_20 : f32 to vector<16x1xf32>
    %33 = arith.addf %29, %32 : vector<16x1xf32>
    %34 = math.rsqrt %33 : vector<16x1xf32>
    %35 = vector.broadcast %34 : vector<16x1xf32> to vector<16x128xf32>
    %36 = arith.mulf %31, %35 : vector<16x128xf32>
    %37 = vector.broadcast %16 : vector<1x128xf32> to vector<16x128xf32>
    %38 = arith.mulf %36, %37 : vector<16x128xf32>
    %39 = vector.broadcast %18 : vector<1x128xf32> to vector<16x128xf32>
    %40 = arith.addf %38, %39 : vector<16x128xf32>
    %41 = arith.truncf %40 : vector<16x128xf32> to vector<16x128xbf16>
    %c0_21 = arith.constant 0 : index
    %c0_22 = arith.constant 0 : index
    %c0_23 = arith.constant 0 : index
    %42 = vector.load %arg4[%c0_21, %c0_22, %c0_23] : memref<2x128x384xbf16, #tpu.memory_space<vmem>>, vector<1x128x384xbf16>
    %43 = vector.shape_cast %42 : vector<1x128x384xbf16> to vector<128x384xbf16>
    %cst_24 = arith.constant dense<0.000000e+00> : vector<16x384xf32>
    %44 = tpu.matmul %41, %43, %cst_24 {dimension_numbers = #tpu.dot_dimension_numbers<[1], [0], [0], [1], [0, 0, 1, 1], [], []>} : vector<16x128xbf16>, vector<128x384xbf16>, vector<16x384xf32> -> vector<16x384xf32>
    %c0_25 = arith.constant 0 : index
    %c0_26 = arith.constant 0 : index
    %c0_27 = arith.constant 0 : index
    %45 = vector.load %arg5[%c0_25, %c0_26, %c0_27] : memref<2x1x384xf32, #tpu.memory_space<vmem>>, vector<1x1x384xf32>
    %46 = vector.shape_cast %45 : vector<1x1x384xf32> to vector<1x384xf32>
    %47 = vector.broadcast %46 : vector<1x384xf32> to vector<16x384xf32>
    %48 = arith.addf %44, %47 : vector<16x384xf32>
    %49 = arith.truncf %48 : vector<16x384xf32> to vector<16x384xbf16>
    %50 = vector.extract_strided_slice %49 {offsets = [0, 0], sizes = [16, 32], strides = [1, 1]} : vector<16x384xbf16> to vector<16x32xbf16>
    %51 = vector.extract_strided_slice %49 {offsets = [0, 32], sizes = [16, 32], strides = [1, 1]} : vector<16x384xbf16> to vector<16x32xbf16>
    %52 = vector.extract_strided_slice %49 {offsets = [0, 64], sizes = [16, 32], strides = [1, 1]} : vector<16x384xbf16> to vector<16x32xbf16>
    %53 = vector.extract_strided_slice %49 {offsets = [0, 96], sizes = [16, 32], strides = [1, 1]} : vector<16x384xbf16> to vector<16x32xbf16>
    %54 = vector.extract_strided_slice %49 {offsets = [0, 128], sizes = [16, 32], strides = [1, 1]} : vector<16x384xbf16> to vector<16x32xbf16>
    %55 = vector.extract_strided_slice %49 {offsets = [0, 160], sizes = [16, 32], strides = [1, 1]} : vector<16x384xbf16> to vector<16x32xbf16>
    %56 = vector.extract_strided_slice %49 {offsets = [0, 192], sizes = [16, 32], strides = [1, 1]} : vector<16x384xbf16> to vector<16x32xbf16>
    %57 = vector.extract_strided_slice %49 {offsets = [0, 224], sizes = [16, 32], strides = [1, 1]} : vector<16x384xbf16> to vector<16x32xbf16>
    %58 = vector.extract_strided_slice %49 {offsets = [0, 256], sizes = [16, 32], strides = [1, 1]} : vector<16x384xbf16> to vector<16x32xbf16>
    %59 = vector.extract_strided_slice %49 {offsets = [0, 288], sizes = [16, 32], strides = [1, 1]} : vector<16x384xbf16> to vector<16x32xbf16>
    %60 = vector.extract_strided_slice %49 {offsets = [0, 320], sizes = [16, 32], strides = [1, 1]} : vector<16x384xbf16> to vector<16x32xbf16>
    %61 = vector.extract_strided_slice %49 {offsets = [0, 352], sizes = [16, 32], strides = [1, 1]} : vector<16x384xbf16> to vector<16x32xbf16>
    %62 = vector.shape_cast %50 : vector<16x32xbf16> to vector<1x16x32xbf16>
    %63 = vector.shape_cast %51 : vector<16x32xbf16> to vector<1x16x32xbf16>
    %64 = vector.shape_cast %52 : vector<16x32xbf16> to vector<1x16x32xbf16>
    %65 = vector.shape_cast %53 : vector<16x32xbf16> to vector<1x16x32xbf16>
    %66 = tpu.concatenate %62, %63, %64, %65 in 0 : vector<1x16x32xbf16>, vector<1x16x32xbf16>, vector<1x16x32xbf16>, vector<1x16x32xbf16> -> vector<4x16x32xbf16>
    %67 = vector.shape_cast %54 : vector<16x32xbf16> to vector<1x16x32xbf16>
    %68 = vector.shape_cast %55 : vector<16x32xbf16> to vector<1x16x32xbf16>
    %69 = vector.shape_cast %56 : vector<16x32xbf16> to vector<1x16x32xbf16>
    %70 = vector.shape_cast %57 : vector<16x32xbf16> to vector<1x16x32xbf16>
    %71 = tpu.concatenate %67, %68, %69, %70 in 0 : vector<1x16x32xbf16>, vector<1x16x32xbf16>, vector<1x16x32xbf16>, vector<1x16x32xbf16> -> vector<4x16x32xbf16>
    %72 = vector.shape_cast %58 : vector<16x32xbf16> to vector<1x16x32xbf16>
    %73 = vector.shape_cast %59 : vector<16x32xbf16> to vector<1x16x32xbf16>
    %74 = vector.shape_cast %60 : vector<16x32xbf16> to vector<1x16x32xbf16>
    %75 = vector.shape_cast %61 : vector<16x32xbf16> to vector<1x16x32xbf16>
    %76 = tpu.concatenate %72, %73, %74, %75 in 0 : vector<1x16x32xbf16>, vector<1x16x32xbf16>, vector<1x16x32xbf16>, vector<1x16x32xbf16> -> vector<4x16x32xbf16>
    %cst_28 = arith.constant dense<0.000000e+00> : vector<4x16x16xf32>
    %77 = tpu.matmul %66, %71, %cst_28 {dimension_numbers = #tpu.dot_dimension_numbers<[2], [2], [1], [1], [0, 0, 0, 1, 1, 1], [0], [0]>} : vector<4x16x32xbf16>, vector<4x16x32xbf16>, vector<4x16x16xf32> -> vector<4x16x16xf32>
    %cst_29 = arith.constant 0.176776692 : f32
    %78 = vector.broadcast %cst_29 : f32 to vector<4x16x16xf32>
    %79 = arith.mulf %77, %78 : vector<4x16x16xf32>
    %80 = vector.shape_cast %14 : vector<16x16xf32> to vector<1x16x16xf32>
    %81 = vector.broadcast %80 : vector<1x16x16xf32> to vector<4x16x16xf32>
    %82 = arith.addf %79, %81 : vector<4x16x16xf32>
    %cst_30 = arith.constant dense<0xFF800000> : vector<4x16xf32>
    %83 = vector.multi_reduction <maximumf>, %82, %cst_30 [2] : vector<4x16x16xf32> to vector<4x16xf32>
    %84 = vector.shape_cast %83 : vector<4x16xf32> to vector<4x16x1xf32>
    %85 = vector.broadcast %84 : vector<4x16x1xf32> to vector<4x16x16xf32>
    %86 = arith.subf %82, %85 : vector<4x16x16xf32>
    %87 = math.exp %86 : vector<4x16x16xf32>
    %cst_31 = arith.constant dense<0.000000e+00> : vector<4x16xf32>
    %88 = vector.multi_reduction <add>, %87, %cst_31 [2] : vector<4x16x16xf32> to vector<4x16xf32>
    %89 = vector.shape_cast %88 : vector<4x16xf32> to vector<4x16x1xf32>
    %90 = vector.broadcast %89 : vector<4x16x1xf32> to vector<4x16x16xf32>
    %91 = arith.divf %87, %90 : vector<4x16x16xf32>
    %92 = arith.truncf %91 : vector<4x16x16xf32> to vector<4x16x16xbf16>
    %cst_32 = arith.constant dense<0.000000e+00> : vector<4x16x32xf32>
    %93 = tpu.matmul %92, %76, %cst_32 {dimension_numbers = #tpu.dot_dimension_numbers<[2], [1], [1], [2], [0, 0, 0, 1, 1, 2], [0], [0]>} : vector<4x16x16xbf16>, vector<4x16x32xbf16>, vector<4x16x32xf32> -> vector<4x16x32xf32>
    %94 = vector.extract_strided_slice %93 {offsets = [0, 0, 0], sizes = [1, 16, 32], strides = [1, 1, 1]} : vector<4x16x32xf32> to vector<1x16x32xf32>
    %95 = vector.shape_cast %94 : vector<1x16x32xf32> to vector<16x32xf32>
    %96 = vector.extract_strided_slice %93 {offsets = [1, 0, 0], sizes = [1, 16, 32], strides = [1, 1, 1]} : vector<4x16x32xf32> to vector<1x16x32xf32>
    %97 = vector.shape_cast %96 : vector<1x16x32xf32> to vector<16x32xf32>
    %98 = vector.extract_strided_slice %93 {offsets = [2, 0, 0], sizes = [1, 16, 32], strides = [1, 1, 1]} : vector<4x16x32xf32> to vector<1x16x32xf32>
    %99 = vector.shape_cast %98 : vector<1x16x32xf32> to vector<16x32xf32>
    %100 = vector.extract_strided_slice %93 {offsets = [3, 0, 0], sizes = [1, 16, 32], strides = [1, 1, 1]} : vector<4x16x32xf32> to vector<1x16x32xf32>
    %101 = vector.shape_cast %100 : vector<1x16x32xf32> to vector<16x32xf32>
    %102 = tpu.concatenate %95, %97, %99, %101 in 1 : vector<16x32xf32>, vector<16x32xf32>, vector<16x32xf32>, vector<16x32xf32> -> vector<16x128xf32>
    %103 = arith.truncf %102 : vector<16x128xf32> to vector<16x128xbf16>
    %c0_33 = arith.constant 0 : index
    %c0_34 = arith.constant 0 : index
    %c0_35 = arith.constant 0 : index
    %104 = vector.load %arg6[%c0_33, %c0_34, %c0_35] : memref<2x128x128xbf16, #tpu.memory_space<vmem>>, vector<1x128x128xbf16>
    %105 = vector.shape_cast %104 : vector<1x128x128xbf16> to vector<128x128xbf16>
    %cst_36 = arith.constant dense<0.000000e+00> : vector<16x128xf32>
    %106 = tpu.matmul %103, %105, %cst_36 {dimension_numbers = #tpu.dot_dimension_numbers<[1], [0], [0], [1], [0, 0, 1, 1], [], []>} : vector<16x128xbf16>, vector<128x128xbf16>, vector<16x128xf32> -> vector<16x128xf32>
    %107 = arith.addf %13, %106 : vector<16x128xf32>
    %c0_37 = arith.constant 0 : index
    %c0_38 = arith.constant 0 : index
    %c0_39 = arith.constant 0 : index
    %108 = vector.load %arg7[%c0_37, %c0_38, %c0_39] : memref<2x1x128xf32, #tpu.memory_space<vmem>>, vector<1x1x128xf32>
    %109 = vector.shape_cast %108 : vector<1x1x128xf32> to vector<1x128xf32>
    %110 = vector.broadcast %109 : vector<1x128xf32> to vector<16x128xf32>
    %111 = arith.addf %107, %110 : vector<16x128xf32>
    %c0_40 = arith.constant 0 : index
    %c0_41 = arith.constant 0 : index
    %c0_42 = arith.constant 0 : index
    %112 = vector.load %arg10[%c0_40, %c0_41, %c0_42] : memref<2x1x128xf32, #tpu.memory_space<vmem>>, vector<1x1x128xf32>
    %113 = vector.shape_cast %112 : vector<1x1x128xf32> to vector<1x128xf32>
    %c0_43 = arith.constant 0 : index
    %c0_44 = arith.constant 0 : index
    %c0_45 = arith.constant 0 : index
    %114 = vector.load %arg11[%c0_43, %c0_44, %c0_45] : memref<2x1x128xf32, #tpu.memory_space<vmem>>, vector<1x1x128xf32>
    %115 = vector.shape_cast %114 : vector<1x1x128xf32> to vector<1x128xf32>
    %cst_46 = arith.constant dense<0.000000e+00> : vector<16xf32>
    %116 = vector.multi_reduction <add>, %111, %cst_46 [1] : vector<16x128xf32> to vector<16xf32>
    %117 = vector.shape_cast %116 : vector<16xf32> to vector<16x1xf32>
    %cst_47 = arith.constant 1.280000e+02 : f32
    %118 = vector.broadcast %cst_47 : f32 to vector<16x1xf32>
    %119 = arith.divf %117, %118 : vector<16x1xf32>
    %120 = arith.mulf %111, %111 : vector<16x128xf32>
    %cst_48 = arith.constant dense<0.000000e+00> : vector<16xf32>
    %121 = vector.multi_reduction <add>, %120, %cst_48 [1] : vector<16x128xf32> to vector<16xf32>
    %122 = vector.shape_cast %121 : vector<16xf32> to vector<16x1xf32>
    %cst_49 = arith.constant 1.280000e+02 : f32
    %123 = vector.broadcast %cst_49 : f32 to vector<16x1xf32>
    %124 = arith.divf %122, %123 : vector<16x1xf32>
    %125 = arith.mulf %119, %119 : vector<16x1xf32>
    %126 = arith.subf %124, %125 : vector<16x1xf32>
    %127 = vector.broadcast %119 : vector<16x1xf32> to vector<16x128xf32>
    %128 = arith.subf %111, %127 : vector<16x128xf32>
    %cst_50 = arith.constant 9.99999974E-6 : f32
    %129 = vector.broadcast %cst_50 : f32 to vector<16x1xf32>
    %130 = arith.addf %126, %129 : vector<16x1xf32>
    %131 = math.rsqrt %130 : vector<16x1xf32>
    %132 = vector.broadcast %131 : vector<16x1xf32> to vector<16x128xf32>
    %133 = arith.mulf %128, %132 : vector<16x128xf32>
    %134 = vector.broadcast %113 : vector<1x128xf32> to vector<16x128xf32>
    %135 = arith.mulf %133, %134 : vector<16x128xf32>
    %136 = vector.broadcast %115 : vector<1x128xf32> to vector<16x128xf32>
    %137 = arith.addf %135, %136 : vector<16x128xf32>
    %138 = arith.truncf %137 : vector<16x128xf32> to vector<16x128xbf16>
    %c0_51 = arith.constant 0 : index
    %c0_52 = arith.constant 0 : index
    %c0_53 = arith.constant 0 : index
    %139 = vector.load %arg12[%c0_51, %c0_52, %c0_53] : memref<2x128x256xbf16, #tpu.memory_space<vmem>>, vector<1x128x256xbf16>
    %140 = vector.shape_cast %139 : vector<1x128x256xbf16> to vector<128x256xbf16>
    %cst_54 = arith.constant dense<0.000000e+00> : vector<16x256xf32>
    %141 = tpu.matmul %138, %140, %cst_54 {dimension_numbers = #tpu.dot_dimension_numbers<[1], [0], [0], [1], [0, 0, 1, 1], [], []>} : vector<16x128xbf16>, vector<128x256xbf16>, vector<16x256xf32> -> vector<16x256xf32>
    %c0_55 = arith.constant 0 : index
    %c0_56 = arith.constant 0 : index
    %c0_57 = arith.constant 0 : index
    %142 = vector.load %arg13[%c0_55, %c0_56, %c0_57] : memref<2x1x256xf32, #tpu.memory_space<vmem>>, vector<1x1x256xf32>
    %143 = vector.shape_cast %142 : vector<1x1x256xf32> to vector<1x256xf32>
    %144 = vector.broadcast %143 : vector<1x256xf32> to vector<16x256xf32>
    %145 = arith.addf %141, %144 : vector<16x256xf32>
    %cst_58 = arith.constant 0.000000e+00 : f32
    %146 = vector.broadcast %cst_58 : f32 to vector<16x256xf32>
    %147 = arith.maximumf %145, %146 : vector<16x256xf32>
    %148 = arith.truncf %147 : vector<16x256xf32> to vector<16x256xbf16>
    %c0_59 = arith.constant 0 : index
    %c0_60 = arith.constant 0 : index
    %c0_61 = arith.constant 0 : index
    %149 = vector.load %arg14[%c0_59, %c0_60, %c0_61] : memref<2x256x128xbf16, #tpu.memory_space<vmem>>, vector<1x256x128xbf16>
    %150 = vector.shape_cast %149 : vector<1x256x128xbf16> to vector<256x128xbf16>
    %cst_62 = arith.constant dense<0.000000e+00> : vector<16x128xf32>
    %151 = tpu.matmul %148, %150, %cst_62 {dimension_numbers = #tpu.dot_dimension_numbers<[1], [0], [0], [1], [0, 0, 1, 1], [], []>} : vector<16x256xbf16>, vector<256x128xbf16>, vector<16x128xf32> -> vector<16x128xf32>
    %152 = arith.addf %111, %151 : vector<16x128xf32>
    %c0_63 = arith.constant 0 : index
    %c0_64 = arith.constant 0 : index
    %c0_65 = arith.constant 0 : index
    %153 = vector.load %arg15[%c0_63, %c0_64, %c0_65] : memref<2x1x128xf32, #tpu.memory_space<vmem>>, vector<1x1x128xf32>
    %154 = vector.shape_cast %153 : vector<1x1x128xf32> to vector<1x128xf32>
    %155 = vector.broadcast %154 : vector<1x128xf32> to vector<16x128xf32>
    %156 = arith.addf %152, %155 : vector<16x128xf32>
    %c1 = arith.constant 1 : index
    %c0_66 = arith.constant 0 : index
    %c0_67 = arith.constant 0 : index
    %157 = vector.load %arg8[%c1, %c0_66, %c0_67] : memref<2x1x128xf32, #tpu.memory_space<vmem>>, vector<1x1x128xf32>
    %158 = vector.shape_cast %157 : vector<1x1x128xf32> to vector<1x128xf32>
    %c1_68 = arith.constant 1 : index
    %c0_69 = arith.constant 0 : index
    %c0_70 = arith.constant 0 : index
    %159 = vector.load %arg9[%c1_68, %c0_69, %c0_70] : memref<2x1x128xf32, #tpu.memory_space<vmem>>, vector<1x1x128xf32>
    %160 = vector.shape_cast %159 : vector<1x1x128xf32> to vector<1x128xf32>
    %cst_71 = arith.constant dense<0.000000e+00> : vector<16xf32>
    %161 = vector.multi_reduction <add>, %156, %cst_71 [1] : vector<16x128xf32> to vector<16xf32>
    %162 = vector.shape_cast %161 : vector<16xf32> to vector<16x1xf32>
    %cst_72 = arith.constant 1.280000e+02 : f32
    %163 = vector.broadcast %cst_72 : f32 to vector<16x1xf32>
    %164 = arith.divf %162, %163 : vector<16x1xf32>
    %165 = arith.mulf %156, %156 : vector<16x128xf32>
    %cst_73 = arith.constant dense<0.000000e+00> : vector<16xf32>
    %166 = vector.multi_reduction <add>, %165, %cst_73 [1] : vector<16x128xf32> to vector<16xf32>
    %167 = vector.shape_cast %166 : vector<16xf32> to vector<16x1xf32>
    %cst_74 = arith.constant 1.280000e+02 : f32
    %168 = vector.broadcast %cst_74 : f32 to vector<16x1xf32>
    %169 = arith.divf %167, %168 : vector<16x1xf32>
    %170 = arith.mulf %164, %164 : vector<16x1xf32>
    %171 = arith.subf %169, %170 : vector<16x1xf32>
    %172 = vector.broadcast %164 : vector<16x1xf32> to vector<16x128xf32>
    %173 = arith.subf %156, %172 : vector<16x128xf32>
    %cst_75 = arith.constant 9.99999974E-6 : f32
    %174 = vector.broadcast %cst_75 : f32 to vector<16x1xf32>
    %175 = arith.addf %171, %174 : vector<16x1xf32>
    %176 = math.rsqrt %175 : vector<16x1xf32>
    %177 = vector.broadcast %176 : vector<16x1xf32> to vector<16x128xf32>
    %178 = arith.mulf %173, %177 : vector<16x128xf32>
    %179 = vector.broadcast %158 : vector<1x128xf32> to vector<16x128xf32>
    %180 = arith.mulf %178, %179 : vector<16x128xf32>
    %181 = vector.broadcast %160 : vector<1x128xf32> to vector<16x128xf32>
    %182 = arith.addf %180, %181 : vector<16x128xf32>
    %183 = arith.truncf %182 : vector<16x128xf32> to vector<16x128xbf16>
    %c1_76 = arith.constant 1 : index
    %c0_77 = arith.constant 0 : index
    %c0_78 = arith.constant 0 : index
    %184 = vector.load %arg4[%c1_76, %c0_77, %c0_78] : memref<2x128x384xbf16, #tpu.memory_space<vmem>>, vector<1x128x384xbf16>
    %185 = vector.shape_cast %184 : vector<1x128x384xbf16> to vector<128x384xbf16>
    %cst_79 = arith.constant dense<0.000000e+00> : vector<16x384xf32>
    %186 = tpu.matmul %183, %185, %cst_79 {dimension_numbers = #tpu.dot_dimension_numbers<[1], [0], [0], [1], [0, 0, 1, 1], [], []>} : vector<16x128xbf16>, vector<128x384xbf16>, vector<16x384xf32> -> vector<16x384xf32>
    %c1_80 = arith.constant 1 : index
    %c0_81 = arith.constant 0 : index
    %c0_82 = arith.constant 0 : index
    %187 = vector.load %arg5[%c1_80, %c0_81, %c0_82] : memref<2x1x384xf32, #tpu.memory_space<vmem>>, vector<1x1x384xf32>
    %188 = vector.shape_cast %187 : vector<1x1x384xf32> to vector<1x384xf32>
    %189 = vector.broadcast %188 : vector<1x384xf32> to vector<16x384xf32>
    %190 = arith.addf %186, %189 : vector<16x384xf32>
    %191 = arith.truncf %190 : vector<16x384xf32> to vector<16x384xbf16>
    %192 = vector.extract_strided_slice %191 {offsets = [0, 0], sizes = [16, 32], strides = [1, 1]} : vector<16x384xbf16> to vector<16x32xbf16>
    %193 = vector.extract_strided_slice %191 {offsets = [0, 32], sizes = [16, 32], strides = [1, 1]} : vector<16x384xbf16> to vector<16x32xbf16>
    %194 = vector.extract_strided_slice %191 {offsets = [0, 64], sizes = [16, 32], strides = [1, 1]} : vector<16x384xbf16> to vector<16x32xbf16>
    %195 = vector.extract_strided_slice %191 {offsets = [0, 96], sizes = [16, 32], strides = [1, 1]} : vector<16x384xbf16> to vector<16x32xbf16>
    %196 = vector.extract_strided_slice %191 {offsets = [0, 128], sizes = [16, 32], strides = [1, 1]} : vector<16x384xbf16> to vector<16x32xbf16>
    %197 = vector.extract_strided_slice %191 {offsets = [0, 160], sizes = [16, 32], strides = [1, 1]} : vector<16x384xbf16> to vector<16x32xbf16>
    %198 = vector.extract_strided_slice %191 {offsets = [0, 192], sizes = [16, 32], strides = [1, 1]} : vector<16x384xbf16> to vector<16x32xbf16>
    %199 = vector.extract_strided_slice %191 {offsets = [0, 224], sizes = [16, 32], strides = [1, 1]} : vector<16x384xbf16> to vector<16x32xbf16>
    %200 = vector.extract_strided_slice %191 {offsets = [0, 256], sizes = [16, 32], strides = [1, 1]} : vector<16x384xbf16> to vector<16x32xbf16>
    %201 = vector.extract_strided_slice %191 {offsets = [0, 288], sizes = [16, 32], strides = [1, 1]} : vector<16x384xbf16> to vector<16x32xbf16>
    %202 = vector.extract_strided_slice %191 {offsets = [0, 320], sizes = [16, 32], strides = [1, 1]} : vector<16x384xbf16> to vector<16x32xbf16>
    %203 = vector.extract_strided_slice %191 {offsets = [0, 352], sizes = [16, 32], strides = [1, 1]} : vector<16x384xbf16> to vector<16x32xbf16>
    %204 = vector.shape_cast %192 : vector<16x32xbf16> to vector<1x16x32xbf16>
    %205 = vector.shape_cast %193 : vector<16x32xbf16> to vector<1x16x32xbf16>
    %206 = vector.shape_cast %194 : vector<16x32xbf16> to vector<1x16x32xbf16>
    %207 = vector.shape_cast %195 : vector<16x32xbf16> to vector<1x16x32xbf16>
    %208 = tpu.concatenate %204, %205, %206, %207 in 0 : vector<1x16x32xbf16>, vector<1x16x32xbf16>, vector<1x16x32xbf16>, vector<1x16x32xbf16> -> vector<4x16x32xbf16>
    %209 = vector.shape_cast %196 : vector<16x32xbf16> to vector<1x16x32xbf16>
    %210 = vector.shape_cast %197 : vector<16x32xbf16> to vector<1x16x32xbf16>
    %211 = vector.shape_cast %198 : vector<16x32xbf16> to vector<1x16x32xbf16>
    %212 = vector.shape_cast %199 : vector<16x32xbf16> to vector<1x16x32xbf16>
    %213 = tpu.concatenate %209, %210, %211, %212 in 0 : vector<1x16x32xbf16>, vector<1x16x32xbf16>, vector<1x16x32xbf16>, vector<1x16x32xbf16> -> vector<4x16x32xbf16>
    %214 = vector.shape_cast %200 : vector<16x32xbf16> to vector<1x16x32xbf16>
    %215 = vector.shape_cast %201 : vector<16x32xbf16> to vector<1x16x32xbf16>
    %216 = vector.shape_cast %202 : vector<16x32xbf16> to vector<1x16x32xbf16>
    %217 = vector.shape_cast %203 : vector<16x32xbf16> to vector<1x16x32xbf16>
    %218 = tpu.concatenate %214, %215, %216, %217 in 0 : vector<1x16x32xbf16>, vector<1x16x32xbf16>, vector<1x16x32xbf16>, vector<1x16x32xbf16> -> vector<4x16x32xbf16>
    %cst_83 = arith.constant dense<0.000000e+00> : vector<4x16x16xf32>
    %219 = tpu.matmul %208, %213, %cst_83 {dimension_numbers = #tpu.dot_dimension_numbers<[2], [2], [1], [1], [0, 0, 0, 1, 1, 1], [0], [0]>} : vector<4x16x32xbf16>, vector<4x16x32xbf16>, vector<4x16x16xf32> -> vector<4x16x16xf32>
    %cst_84 = arith.constant 0.176776692 : f32
    %220 = vector.broadcast %cst_84 : f32 to vector<4x16x16xf32>
    %221 = arith.mulf %219, %220 : vector<4x16x16xf32>
    %222 = vector.shape_cast %14 : vector<16x16xf32> to vector<1x16x16xf32>
    %223 = vector.broadcast %222 : vector<1x16x16xf32> to vector<4x16x16xf32>
    %224 = arith.addf %221, %223 : vector<4x16x16xf32>
    %cst_85 = arith.constant dense<0xFF800000> : vector<4x16xf32>
    %225 = vector.multi_reduction <maximumf>, %224, %cst_85 [2] : vector<4x16x16xf32> to vector<4x16xf32>
    %226 = vector.shape_cast %225 : vector<4x16xf32> to vector<4x16x1xf32>
    %227 = vector.broadcast %226 : vector<4x16x1xf32> to vector<4x16x16xf32>
    %228 = arith.subf %224, %227 : vector<4x16x16xf32>
    %229 = math.exp %228 : vector<4x16x16xf32>
    %cst_86 = arith.constant dense<0.000000e+00> : vector<4x16xf32>
    %230 = vector.multi_reduction <add>, %229, %cst_86 [2] : vector<4x16x16xf32> to vector<4x16xf32>
    %231 = vector.shape_cast %230 : vector<4x16xf32> to vector<4x16x1xf32>
    %232 = vector.broadcast %231 : vector<4x16x1xf32> to vector<4x16x16xf32>
    %233 = arith.divf %229, %232 : vector<4x16x16xf32>
    %234 = arith.truncf %233 : vector<4x16x16xf32> to vector<4x16x16xbf16>
    %cst_87 = arith.constant dense<0.000000e+00> : vector<4x16x32xf32>
    %235 = tpu.matmul %234, %218, %cst_87 {dimension_numbers = #tpu.dot_dimension_numbers<[2], [1], [1], [2], [0, 0, 0, 1, 1, 2], [0], [0]>} : vector<4x16x16xbf16>, vector<4x16x32xbf16>, vector<4x16x32xf32> -> vector<4x16x32xf32>
    %236 = vector.extract_strided_slice %235 {offsets = [0, 0, 0], sizes = [1, 16, 32], strides = [1, 1, 1]} : vector<4x16x32xf32> to vector<1x16x32xf32>
    %237 = vector.shape_cast %236 : vector<1x16x32xf32> to vector<16x32xf32>
    %238 = vector.extract_strided_slice %235 {offsets = [1, 0, 0], sizes = [1, 16, 32], strides = [1, 1, 1]} : vector<4x16x32xf32> to vector<1x16x32xf32>
    %239 = vector.shape_cast %238 : vector<1x16x32xf32> to vector<16x32xf32>
    %240 = vector.extract_strided_slice %235 {offsets = [2, 0, 0], sizes = [1, 16, 32], strides = [1, 1, 1]} : vector<4x16x32xf32> to vector<1x16x32xf32>
    %241 = vector.shape_cast %240 : vector<1x16x32xf32> to vector<16x32xf32>
    %242 = vector.extract_strided_slice %235 {offsets = [3, 0, 0], sizes = [1, 16, 32], strides = [1, 1, 1]} : vector<4x16x32xf32> to vector<1x16x32xf32>
    %243 = vector.shape_cast %242 : vector<1x16x32xf32> to vector<16x32xf32>
    %244 = tpu.concatenate %237, %239, %241, %243 in 1 : vector<16x32xf32>, vector<16x32xf32>, vector<16x32xf32>, vector<16x32xf32> -> vector<16x128xf32>
    %245 = arith.truncf %244 : vector<16x128xf32> to vector<16x128xbf16>
    %c1_88 = arith.constant 1 : index
    %c0_89 = arith.constant 0 : index
    %c0_90 = arith.constant 0 : index
    %246 = vector.load %arg6[%c1_88, %c0_89, %c0_90] : memref<2x128x128xbf16, #tpu.memory_space<vmem>>, vector<1x128x128xbf16>
    %247 = vector.shape_cast %246 : vector<1x128x128xbf16> to vector<128x128xbf16>
    %cst_91 = arith.constant dense<0.000000e+00> : vector<16x128xf32>
    %248 = tpu.matmul %245, %247, %cst_91 {dimension_numbers = #tpu.dot_dimension_numbers<[1], [0], [0], [1], [0, 0, 1, 1], [], []>} : vector<16x128xbf16>, vector<128x128xbf16>, vector<16x128xf32> -> vector<16x128xf32>
    %249 = arith.addf %156, %248 : vector<16x128xf32>
    %c1_92 = arith.constant 1 : index
    %c0_93 = arith.constant 0 : index
    %c0_94 = arith.constant 0 : index
    %250 = vector.load %arg7[%c1_92, %c0_93, %c0_94] : memref<2x1x128xf32, #tpu.memory_space<vmem>>, vector<1x1x128xf32>
    %251 = vector.shape_cast %250 : vector<1x1x128xf32> to vector<1x128xf32>
    %252 = vector.broadcast %251 : vector<1x128xf32> to vector<16x128xf32>
    %253 = arith.addf %249, %252 : vector<16x128xf32>
    %c1_95 = arith.constant 1 : index
    %c0_96 = arith.constant 0 : index
    %c0_97 = arith.constant 0 : index
    %254 = vector.load %arg10[%c1_95, %c0_96, %c0_97] : memref<2x1x128xf32, #tpu.memory_space<vmem>>, vector<1x1x128xf32>
    %255 = vector.shape_cast %254 : vector<1x1x128xf32> to vector<1x128xf32>
    %c1_98 = arith.constant 1 : index
    %c0_99 = arith.constant 0 : index
    %c0_100 = arith.constant 0 : index
    %256 = vector.load %arg11[%c1_98, %c0_99, %c0_100] : memref<2x1x128xf32, #tpu.memory_space<vmem>>, vector<1x1x128xf32>
    %257 = vector.shape_cast %256 : vector<1x1x128xf32> to vector<1x128xf32>
    %cst_101 = arith.constant dense<0.000000e+00> : vector<16xf32>
    %258 = vector.multi_reduction <add>, %253, %cst_101 [1] : vector<16x128xf32> to vector<16xf32>
    %259 = vector.shape_cast %258 : vector<16xf32> to vector<16x1xf32>
    %cst_102 = arith.constant 1.280000e+02 : f32
    %260 = vector.broadcast %cst_102 : f32 to vector<16x1xf32>
    %261 = arith.divf %259, %260 : vector<16x1xf32>
    %262 = arith.mulf %253, %253 : vector<16x128xf32>
    %cst_103 = arith.constant dense<0.000000e+00> : vector<16xf32>
    %263 = vector.multi_reduction <add>, %262, %cst_103 [1] : vector<16x128xf32> to vector<16xf32>
    %264 = vector.shape_cast %263 : vector<16xf32> to vector<16x1xf32>
    %cst_104 = arith.constant 1.280000e+02 : f32
    %265 = vector.broadcast %cst_104 : f32 to vector<16x1xf32>
    %266 = arith.divf %264, %265 : vector<16x1xf32>
    %267 = arith.mulf %261, %261 : vector<16x1xf32>
    %268 = arith.subf %266, %267 : vector<16x1xf32>
    %269 = vector.broadcast %261 : vector<16x1xf32> to vector<16x128xf32>
    %270 = arith.subf %253, %269 : vector<16x128xf32>
    %cst_105 = arith.constant 9.99999974E-6 : f32
    %271 = vector.broadcast %cst_105 : f32 to vector<16x1xf32>
    %272 = arith.addf %268, %271 : vector<16x1xf32>
    %273 = math.rsqrt %272 : vector<16x1xf32>
    %274 = vector.broadcast %273 : vector<16x1xf32> to vector<16x128xf32>
    %275 = arith.mulf %270, %274 : vector<16x128xf32>
    %276 = vector.broadcast %255 : vector<1x128xf32> to vector<16x128xf32>
    %277 = arith.mulf %275, %276 : vector<16x128xf32>
    %278 = vector.broadcast %257 : vector<1x128xf32> to vector<16x128xf32>
    %279 = arith.addf %277, %278 : vector<16x128xf32>
    %280 = arith.truncf %279 : vector<16x128xf32> to vector<16x128xbf16>
    %c1_106 = arith.constant 1 : index
    %c0_107 = arith.constant 0 : index
    %c0_108 = arith.constant 0 : index
    %281 = vector.load %arg12[%c1_106, %c0_107, %c0_108] : memref<2x128x256xbf16, #tpu.memory_space<vmem>>, vector<1x128x256xbf16>
    %282 = vector.shape_cast %281 : vector<1x128x256xbf16> to vector<128x256xbf16>
    %cst_109 = arith.constant dense<0.000000e+00> : vector<16x256xf32>
    %283 = tpu.matmul %280, %282, %cst_109 {dimension_numbers = #tpu.dot_dimension_numbers<[1], [0], [0], [1], [0, 0, 1, 1], [], []>} : vector<16x128xbf16>, vector<128x256xbf16>, vector<16x256xf32> -> vector<16x256xf32>
    %c1_110 = arith.constant 1 : index
    %c0_111 = arith.constant 0 : index
    %c0_112 = arith.constant 0 : index
    %284 = vector.load %arg13[%c1_110, %c0_111, %c0_112] : memref<2x1x256xf32, #tpu.memory_space<vmem>>, vector<1x1x256xf32>
    %285 = vector.shape_cast %284 : vector<1x1x256xf32> to vector<1x256xf32>
    %286 = vector.broadcast %285 : vector<1x256xf32> to vector<16x256xf32>
    %287 = arith.addf %283, %286 : vector<16x256xf32>
    %cst_113 = arith.constant 0.000000e+00 : f32
    %288 = vector.broadcast %cst_113 : f32 to vector<16x256xf32>
    %289 = arith.maximumf %287, %288 : vector<16x256xf32>
    %290 = arith.truncf %289 : vector<16x256xf32> to vector<16x256xbf16>
    %c1_114 = arith.constant 1 : index
    %c0_115 = arith.constant 0 : index
    %c0_116 = arith.constant 0 : index
    %291 = vector.load %arg14[%c1_114, %c0_115, %c0_116] : memref<2x256x128xbf16, #tpu.memory_space<vmem>>, vector<1x256x128xbf16>
    %292 = vector.shape_cast %291 : vector<1x256x128xbf16> to vector<256x128xbf16>
    %cst_117 = arith.constant dense<0.000000e+00> : vector<16x128xf32>
    %293 = tpu.matmul %290, %292, %cst_117 {dimension_numbers = #tpu.dot_dimension_numbers<[1], [0], [0], [1], [0, 0, 1, 1], [], []>} : vector<16x256xbf16>, vector<256x128xbf16>, vector<16x128xf32> -> vector<16x128xf32>
    %294 = arith.addf %253, %293 : vector<16x128xf32>
    %c1_118 = arith.constant 1 : index
    %c0_119 = arith.constant 0 : index
    %c0_120 = arith.constant 0 : index
    %295 = vector.load %arg15[%c1_118, %c0_119, %c0_120] : memref<2x1x128xf32, #tpu.memory_space<vmem>>, vector<1x1x128xf32>
    %296 = vector.shape_cast %295 : vector<1x1x128xf32> to vector<1x128xf32>
    %297 = vector.broadcast %296 : vector<1x128xf32> to vector<16x128xf32>
    %298 = arith.addf %294, %297 : vector<16x128xf32>
    %c0_121 = arith.constant 0 : index
    %c0_122 = arith.constant 0 : index
    %299 = vector.load %arg16[%c0_121, %c0_122] : memref<1x128xf32, #tpu.memory_space<vmem>>, vector<1x128xf32>
    %c0_123 = arith.constant 0 : index
    %c0_124 = arith.constant 0 : index
    %300 = vector.load %arg17[%c0_123, %c0_124] : memref<1x128xf32, #tpu.memory_space<vmem>>, vector<1x128xf32>
    %cst_125 = arith.constant dense<0.000000e+00> : vector<16xf32>
    %301 = vector.multi_reduction <add>, %298, %cst_125 [1] : vector<16x128xf32> to vector<16xf32>
    %302 = vector.shape_cast %301 : vector<16xf32> to vector<16x1xf32>
    %cst_126 = arith.constant 1.280000e+02 : f32
    %303 = vector.broadcast %cst_126 : f32 to vector<16x1xf32>
    %304 = arith.divf %302, %303 : vector<16x1xf32>
    %305 = arith.mulf %298, %298 : vector<16x128xf32>
    %cst_127 = arith.constant dense<0.000000e+00> : vector<16xf32>
    %306 = vector.multi_reduction <add>, %305, %cst_127 [1] : vector<16x128xf32> to vector<16xf32>
    %307 = vector.shape_cast %306 : vector<16xf32> to vector<16x1xf32>
    %cst_128 = arith.constant 1.280000e+02 : f32
    %308 = vector.broadcast %cst_128 : f32 to vector<16x1xf32>
    %309 = arith.divf %307, %308 : vector<16x1xf32>
    %310 = arith.mulf %304, %304 : vector<16x1xf32>
    %311 = arith.subf %309, %310 : vector<16x1xf32>
    %312 = vector.broadcast %304 : vector<16x1xf32> to vector<16x128xf32>
    %313 = arith.subf %298, %312 : vector<16x128xf32>
    %cst_129 = arith.constant 9.99999974E-6 : f32
    %314 = vector.broadcast %cst_129 : f32 to vector<16x1xf32>
    %315 = arith.addf %311, %314 : vector<16x1xf32>
    %316 = math.rsqrt %315 : vector<16x1xf32>
    %317 = vector.broadcast %316 : vector<16x1xf32> to vector<16x128xf32>
    %318 = arith.mulf %313, %317 : vector<16x128xf32>
    %319 = vector.broadcast %299 : vector<1x128xf32> to vector<16x128xf32>
    %320 = arith.mulf %318, %319 : vector<16x128xf32>
    %321 = vector.broadcast %300 : vector<1x128xf32> to vector<16x128xf32>
    %322 = arith.addf %320, %321 : vector<16x128xf32>
    %323 = arith.truncf %322 : vector<16x128xf32> to vector<16x128xbf16>
    %c0_130 = arith.constant 0 : index
    %c0_131 = arith.constant 0 : index
    %324 = vector.load %arg18[%c0_130, %c0_131] : memref<128x128xbf16, #tpu.memory_space<vmem>>, vector<128x128xbf16>
    %cst_132 = arith.constant dense<0.000000e+00> : vector<16x128xf32>
    %325 = tpu.matmul %323, %324, %cst_132 {dimension_numbers = #tpu.dot_dimension_numbers<[1], [0], [0], [1], [0, 0, 1, 1], [], []>} : vector<16x128xbf16>, vector<128x128xbf16>, vector<16x128xf32> -> vector<16x128xf32>
    %c0_133 = arith.constant 0 : index
    %c0_134 = arith.constant 0 : index
    %326 = vector.load %arg19[%c0_133, %c0_134] : memref<1x128xf32, #tpu.memory_space<vmem>>, vector<1x128xf32>
    %327 = vector.broadcast %326 : vector<1x128xf32> to vector<16x128xf32>
    %328 = arith.addf %325, %327 : vector<16x128xf32>
    %cst_135 = arith.constant 0.000000e+00 : f32
    %329 = vector.broadcast %cst_135 : f32 to vector<16x128xf32>
    %330 = arith.maximumf %328, %329 : vector<16x128xf32>
    %c0_136 = arith.constant 0 : index
    %c0_137 = arith.constant 0 : index
    %331 = vector.load %arg20[%c0_136, %c0_137] : memref<16x128xf32, #tpu.memory_space<vmem>>, vector<16x128xf32>
    tpu.vector_store %arg20[%c0_136, %c0_137], %330 {strides = array<i32>} : memref<16x128xf32, #tpu.memory_space<vmem>>, vector<16x128xf32>,
    return
  }
}

</mosaic_0001>

<llo_original>
// kernel: tpu_custom_call.1
$region0: #{tpu_custom_call.1}
  #allocation0 [shape = 'u32[]', space=smem, size = 0x4, offset = 0x4, fixed_abs, tag = 'smem constant byte address 0x4 - core index']
  #allocation1 [shape = 'u32[144,128]{1,0:T(1,128)}', space=vmem, size = 0x12000, scoped, tag = 'internal scratch']
  %s0 = inlined_call_operand.vmem [shape: s32[16,1], index: 0, kind: input, shape index: {}]
  %s1 = inlined_call_operand.vmem [shape: f32[16,16], index: 1, kind: input, shape index: {}]
  %s2 = inlined_call_operand.hbm [shape: bf16[32,128], index: 2, kind: input, shape index: {}]
  %s3 = inlined_call_operand.hbm [shape: f32[16,128], index: 3, kind: input, shape index: {}]
  %s4 = inlined_call_operand.hbm [shape: bf16[2,128,384], index: 4, kind: input, shape index: {}]
  %s5 = inlined_call_operand.hbm [shape: f32[2,1,384], index: 5, kind: input, shape index: {}]
  %s6 = inlined_call_operand.hbm [shape: bf16[2,128,128], index: 6, kind: input, shape index: {}]
  %s7 = inlined_call_operand.hbm [shape: f32[2,1,128], index: 7, kind: input, shape index: {}]
  %s8 = inlined_call_operand.hbm [shape: f32[2,1,128], index: 8, kind: input, shape index: {}]
  %s9 = inlined_call_operand.hbm [shape: f32[2,1,128], index: 9, kind: input, shape index: {}]
  %s10 = inlined_call_operand.hbm [shape: f32[2,1,128], index: 10, kind: input, shape index: {}]
  %s11 = inlined_call_operand.hbm [shape: f32[2,1,128], index: 11, kind: input, shape index: {}]
  %s12 = inlined_call_operand.hbm [shape: bf16[2,128,256], index: 12, kind: input, shape index: {}]
  %s13 = inlined_call_operand.vmem [shape: f32[2,1,256], index: 13, kind: input, shape index: {}]
  %s14 = inlined_call_operand.hbm [shape: bf16[2,256,128], index: 14, kind: input, shape index: {}]
  %s15 = inlined_call_operand.hbm [shape: f32[2,1,128], index: 15, kind: input, shape index: {}]
  %s16 = inlined_call_operand.vmem [shape: f32[1,128], index: 16, kind: input, shape index: {}]
  %s17 = inlined_call_operand.hbm [shape: f32[1,128], index: 17, kind: input, shape index: {}]
  %s18 = inlined_call_operand.vmem [shape: bf16[128,128], index: 18, kind: input, shape index: {}]
  %s19 = inlined_call_operand.vmem [shape: f32[1,128], index: 19, kind: input, shape index: {}]
  %s20 = inlined_call_operand.hbm [shape: f32[16,128], index: 20, kind: output, shape index: {}]
  %s21 = sld [smem:[#allocation0]]
  $region146: #{tpu_custom_call.1} parent=0
    _
  %s23 = ssub.s32 1, %s21
  %s24 = scalar_select 0, %s23, %s21
  $region1: #{tpu_custom_call.1} parent=0
    #allocation2 [shape = 'u8[8192]{0}', space=vmem, size = 0x2000, scoped, tag = 'input window, operand 2, single buffered']
    #allocation3 [shape = 's32[1]{0}', space=sflag, size = 0x4, scoped, tag = 'scoped memory for tpu_custom_call.1']
    #allocation4 [shape = 's32[1]{0}', space=sflag, size = 0x4, scoped, tag = 'scoped memory for tpu_custom_call.1']
    #allocation5 [shape = 'u8[8192]{0}', space=vmem, size = 0x2000, scoped, tag = 'input window, operand 3, single buffered']
    #allocation6 [shape = 's32[1]{0}', space=sflag, size = 0x4, scoped, tag = 'scoped memory for tpu_custom_call.1']
    #allocation7 [shape = 'u8[196608]{0}', space=vmem, size = 0x30000, scoped, tag = 'input window, operand 4, single buffered']
    #allocation8 [shape = 'u8[3072]{0}', space=vmem, size = 0xc00, scoped, tag = 'input window, operand 5, single buffered']
    #allocation9 [shape = 's32[1]{0}', space=sflag, size = 0x4, scoped, tag = 'scoped memory for tpu_custom_call.1']
    #allocation10 [shape = 'u8[65536]{0}', space=vmem, size = 0x10000, scoped, tag = 'input window, operand 6, single buffered']
    #allocation11 [shape = 'u8[1024]{0}', space=vmem, size = 0x400, scoped, tag = 'input window, operand 7, single buffered']
    #allocation12 [shape = 's32[1]{0}', space=sflag, size = 0x4, scoped, tag = 'scoped memory for tpu_custom_call.1']
    #allocation13 [shape = 'u8[1024]{0}', space=vmem, size = 0x400, scoped, tag = 'input window, operand 8, single buffered']
    #allocation14 [shape = 'u8[1024]{0}', space=vmem, size = 0x400, scoped, tag = 'input window, operand 9, single buffered']
    #allocation15 [shape = 's32[1]{0}', space=sflag, size = 0x4, scoped, tag = 'scoped memory for tpu_custom_call.1']
    #allocation16 [shape = 'u8[1024]{0}', space=vmem, size = 0x400, scoped, tag = 'input window, operand 10, single buffered']
    #allocation17 [shape = 'u8[1024]{0}', space=vmem, size = 0x400, scoped, tag = 'input window, operand 11, single buffered']
    #allocation18 [shape = 's32[1]{0}', space=sflag, size = 0x4, scoped, tag = 'scoped memory for tpu_custom_call.1']
    #allocation19 [shape = 'u8[131072]{0}', space=vmem, size = 0x20000, scoped, tag = 'input window, operand 12, single buffered']
    #allocation20 [shape = 'u8[131072]{0}', space=vmem, size = 0x20000, scoped, tag = 'input window, operand 14, single buffered']
    #allocation21 [shape = 's32[1]{0}', space=sflag, size = 0x4, scoped, tag = 'scoped memory for tpu_custom_call.1']
    #allocation22 [shape = 'u8[1024]{0}', space=vmem, size = 0x400, scoped, tag = 'input window, operand 15, single buffered']
    #allocation23 [shape = 'u8[512]{0}', space=vmem, size = 0x400, scoped, tag = 'input window, operand 17, single buffered']
    #allocation24 [shape = 's32[1]{0}', space=sflag, size = 0x4, scoped, tag = 'scoped memory for tpu_custom_call.1']
    #allocation25 [shape = 'u8[8192]{0}', space=vmem, size = 0x2000, scoped, tag = 'output window, operand 0, single buffered']
    %25 = vsyncpa [#allocation3], 0
    %26 = vsyncpa [#allocation6], 0
    %27 = vsyncpa [#allocation9], 0
    %28 = vsyncpa [#allocation12], 0
    %29 = vsyncpa [#allocation15], 0
    %30 = vsyncpa [#allocation18], 0
    %31 = vsyncpa [#allocation21], 0
    %32 = vsyncpa [#allocation24], 0
    %33 = vsyncpa [#allocation4], 0
    // Predicated region
    $region2: #{tpu_custom_call.1} parent=1 // pred_check
      _
    $region3: #{tpu_custom_call.1} parent=1 // pred_check_branch
      %35 = sbr.rel (0) target = $region5
    $region4: #{tpu_custom_call.1} parent=1 // pred_region
      _
    $region5: #{tpu_custom_call.1} parent=1 // pred_fallthru
      _
    // Predicated region
    $region6: #{tpu_custom_call.1} parent=1 // pred_check
      _
    $region7: #{tpu_custom_call.1} parent=1 // pred_check_branch
      %37 = sbr.rel (0) target = $region9
    $region8: #{tpu_custom_call.1} parent=1 // pred_region
      _
    $region9: #{tpu_custom_call.1} parent=1 // pred_fallthru
      _
    // Predicated region
    $region10: #{tpu_custom_call.1} parent=1 // pred_check
      _
    $region11: #{tpu_custom_call.1} parent=1 // pred_check_branch
      %39 = sbr.rel (0) target = $region13
    $region12: #{tpu_custom_call.1} parent=1 // pred_region
      %s41 = ssub.s32 256, 256
      %42 = vsyncadd [#allocation3], %s41
      %s43 = sshll.u32 [#allocation2], 4
      %s44 = int_to_ptr.vmem [resolvable:$true] %s43
      %49 = dma.hbm_to_vmem [thread:$0]  %s2, 256, %s44, [#allocation3], 64, 64, 4
    $region13: #{tpu_custom_call.1} parent=1 // pred_fallthru
      _
    // Predicated region
    $region14: #{tpu_custom_call.1} parent=1 // pred_check
      _
    $region15: #{tpu_custom_call.1} parent=1 // pred_check_branch
      %51 = sbr.rel (0) target = $region17
    $region16: #{tpu_custom_call.1} parent=1 // pred_region
      %s53 = ssub.s32 256, 256
      %54 = vsyncadd [#allocation6], %s53
      %s55 = sshll.u32 [#allocation5], 4
      %s56 = int_to_ptr.vmem [resolvable:$true] %s55
      %61 = dma.hbm_to_vmem [thread:$0]  %s3, 256, %s56, [#allocation6], 128, 128, 8
    $region17: #{tpu_custom_call.1} parent=1 // pred_fallthru
      _
    // Predicated region
    $region18: #{tpu_custom_call.1} parent=1 // pred_check
      _
    $region19: #{tpu_custom_call.1} parent=1 // pred_check_branch
      %63 = sbr.rel (0) target = $region21
    $region20: #{tpu_custom_call.1} parent=1 // pred_region
      %s65 = ssub.s32 6144, 6144
      %66 = vsyncadd [#allocation6], %s65
      %s67 = sshll.u32 [#allocation7], 4
      %s68 = int_to_ptr.vmem [resolvable:$true] %s67
      %73 = dma.hbm_to_vmem [thread:$0]  %s4, 6144, %s68, [#allocation6], 192, 192, 12
    $region21: #{tpu_custom_call.1} parent=1 // pred_fallthru
      _
    // Predicated region
    $region22: #{tpu_custom_call.1} parent=1 // pred_check
      _
    $region23: #{tpu_custom_call.1} parent=1 // pred_check_branch
      %75 = sbr.rel (0) target = $region25
    $region24: #{tpu_custom_call.1} parent=1 // pred_region
      %s77 = ssub.s32 96, 96
      %78 = vsyncadd [#allocation9], %s77
      %s79 = sshll.u32 [#allocation8], 4
      %s80 = int_to_ptr.vmem [resolvable:$true] %s79
      %85 = dma.hbm_to_vmem [thread:$0]  %s5, 96, %s80, [#allocation9], 48, 48, 3
    $region25: #{tpu_custom_call.1} parent=1 // pred_fallthru
      _
    // Predicated region
    $region26: #{tpu_custom_call.1} parent=1 // pred_check
      _
    $region27: #{tpu_custom_call.1} parent=1 // pred_check_branch
      %87 = sbr.rel (0) target = $region29
    $region28: #{tpu_custom_call.1} parent=1 // pred_region
      %s89 = ssub.s32 2048, 2048
      %90 = vsyncadd [#allocation9], %s89
      %s91 = sshll.u32 [#allocation10], 4
      %s92 = int_to_ptr.vmem [resolvable:$true] %s91
      %97 = dma.hbm_to_vmem [thread:$0]  %s6, 2048, %s92, [#allocation9], 64, 64, 4
    $region29: #{tpu_custom_call.1} parent=1 // pred_fallthru
      _
    // Predicated region
    $region30: #{tpu_custom_call.1} parent=1 // pred_check
      _
    $region31: #{tpu_custom_call.1} parent=1 // pred_check_branch
      %99 = sbr.rel (0) target = $region33
    $region32: #{tpu_custom_call.1} parent=1 // pred_region
      %s101 = ssub.s32 32, 32
      %102 = vsyncadd [#allocation12], %s101
      %s103 = sshll.u32 [#allocation11], 4
      %s104 = int_to_ptr.vmem [resolvable:$true] %s103
      %109 = dma.hbm_to_vmem [thread:$0]  %s7, 32, %s104, [#allocation12], 16, 16, 1
    $region33: #{tpu_custom_call.1} parent=1 // pred_fallthru
      _
    // Predicated region
    $region34: #{tpu_custom_call.1} parent=1 // pred_check
      _
    $region35: #{tpu_custom_call.1} parent=1 // pred_check_branch
      %111 = sbr.rel (0) target = $region37
    $region36: #{tpu_custom_call.1} parent=1 // pred_region
      %s113 = ssub.s32 32, 32
      %114 = vsyncadd [#allocation12], %s113
      %s115 = sshll.u32 [#allocation13], 4
      %s116 = int_to_ptr.vmem [resolvable:$true] %s115
      %121 = dma.hbm_to_vmem [thread:$0]  %s8, 32, %s116, [#allocation12], 16, 16, 1
    $region37: #{tpu_custom_call.1} parent=1 // pred_fallthru
      _
    // Predicated region
    $region38: #{tpu_custom_call.1} parent=1 // pred_check
      _
    $region39: #{tpu_custom_call.1} parent=1 // pred_check_branch
      %123 = sbr.rel (0) target = $region41
    $region40: #{tpu_custom_call.1} parent=1 // pred_region
      %s125 = ssub.s32 32, 32
      %126 = vsyncadd [#allocation15], %s125
      %s127 = sshll.u32 [#allocation14], 4
      %s128 = int_to_ptr.vmem [resolvable:$true] %s127
      %133 = dma.hbm_to_vmem [thread:$0]  %s9, 32, %s128, [#allocation15], 16, 16, 1
    $region41: #{tpu_custom_call.1} parent=1 // pred_fallthru
      _
    // Predicated region
    $region42: #{tpu_custom_call.1} parent=1 // pred_check
      _
    $region43: #{tpu_custom_call.1} parent=1 // pred_check_branch
      %135 = sbr.rel (0) target = $region45
    $region44: #{tpu_custom_call.1} parent=1 // pred_region
      %s137 = ssub.s32 32, 32
      %138 = vsyncadd [#allocation15], %s137
      %s139 = sshll.u32 [#allocation16], 4
      %s140 = int_to_ptr.vmem [resolvable:$true] %s139
      %145 = dma.hbm_to_vmem [thread:$0]  %s10, 32, %s140, [#allocation15], 16, 16, 1
    $region45: #{tpu_custom_call.1} parent=1 // pred_fallthru
      _
    // Predicated region
    $region46: #{tpu_custom_call.1} parent=1 // pred_check
      _
    $region47: #{tpu_custom_call.1} parent=1 // pred_check_branch
      %147 = sbr.rel (0) target = $region49
    $region48: #{tpu_custom_call.1} parent=1 // pred_region
      %s149 = ssub.s32 32, 32
      %150 = vsyncadd [#allocation18], %s149
      %s151 = sshll.u32 [#allocation17], 4
      %s152 = int_to_ptr.vmem [resolvable:$true] %s151
      %157 = dma.hbm_to_vmem [thread:$0]  %s11, 32, %s152, [#allocation18], 16, 16, 1
    $region49: #{tpu_custom_call.1} parent=1 // pred_fallthru
      _
    // Predicated region
    $region50: #{tpu_custom_call.1} parent=1 // pred_check
      _
    $region51: #{tpu_custom_call.1} parent=1 // pred_check_branch
      %159 = sbr.rel (0) target = $region53
    $region52: #{tpu_custom_call.1} parent=1 // pred_region
      %s161 = ssub.s32 4096, 4096
      %162 = vsyncadd [#allocation18], %s161
      %s163 = sshll.u32 [#allocation19], 4
      %s164 = int_to_ptr.vmem [resolvable:$true] %s163
      %169 = dma.hbm_to_vmem [thread:$0]  %s12, 4096, %s164, [#allocation18], 128, 128, 8
    $region53: #{tpu_custom_call.1} parent=1 // pred_fallthru
      _
    // Predicated region
    $region54: #{tpu_custom_call.1} parent=1 // pred_check
      _
    $region55: #{tpu_custom_call.1} parent=1 // pred_check_branch
      %171 = sbr.rel (0) target = $region57
    $region56: #{tpu_custom_call.1} parent=1 // pred_region
      _
    $region57: #{tpu_custom_call.1} parent=1 // pred_fallthru
      _
    // Predicated region
    $region58: #{tpu_custom_call.1} parent=1 // pred_check
      _
    $region59: #{tpu_custom_call.1} parent=1 // pred_check_branch
      %173 = sbr.rel (0) target = $region61
    $region60: #{tpu_custom_call.1} parent=1 // pred_region
      %s175 = ssub.s32 4096, 4096
      %176 = vsyncadd [#allocation21], %s175
      %s177 = sshll.u32 [#allocation20], 4
      %s178 = int_to_ptr.vmem [resolvable:$true] %s177
      %183 = dma.hbm_to_vmem [thread:$0]  %s14, 4096, %s178, [#allocation21], 64, 64, 4
    $region61: #{tpu_custom_call.1} parent=1 // pred_fallthru
      _
    // Predicated region
    $region62: #{tpu_custom_call.1} parent=1 // pred_check
      _
    $region63: #{tpu_custom_call.1} parent=1 // pred_check_branch
      %185 = sbr.rel (0) target = $region65
    $region64: #{tpu_custom_call.1} parent=1 // pred_region
      %s187 = ssub.s32 32, 32
      %188 = vsyncadd [#allocation21], %s187
      %s189 = sshll.u32 [#allocation22], 4
      %s190 = int_to_ptr.vmem [resolvable:$true] %s189
      %195 = dma.hbm_to_vmem [thread:$0]  %s15, 32, %s190, [#allocation21], 16, 16, 1
    $region65: #{tpu_custom_call.1} parent=1 // pred_fallthru
      _
    // Predicated region
    $region66: #{tpu_custom_call.1} parent=1 // pred_check
      _
    $region67: #{tpu_custom_call.1} parent=1 // pred_check_branch
      %197 = sbr.rel (0) target = $region69
    $region68: #{tpu_custom_call.1} parent=1 // pred_region
      _
    $region69: #{tpu_custom_call.1} parent=1 // pred_fallthru
      _
    // Predicated region
    $region70: #{tpu_custom_call.1} parent=1 // pred_check
      _
    $region71: #{tpu_custom_call.1} parent=1 // pred_check_branch
      %199 = sbr.rel (0) target = $region73
    $region72: #{tpu_custom_call.1} parent=1 // pred_region
      %s201 = ssub.s32 16, 16
      %202 = vsyncadd [#allocation24], %s201
      %s204 = sshll.u32 [#allocation23], 4
      %s205 = int_to_ptr.vmem [resolvable:$true] %s204
      %207 = dma.hbm_to_vmem [thread:$0]  %s17, 16, %s205, [#allocation24]
    $region73: #{tpu_custom_call.1} parent=1 // pred_fallthru
      _
    // Predicated region
    $region74: #{tpu_custom_call.1} parent=1 // pred_check
      _
    $region75: #{tpu_custom_call.1} parent=1 // pred_check_branch
      %209 = sbr.rel (0) target = $region77
    $region76: #{tpu_custom_call.1} parent=1 // pred_region
      _
    $region77: #{tpu_custom_call.1} parent=1 // pred_fallthru
      _
    // Predicated region
    $region78: #{tpu_custom_call.1} parent=1 // pred_check
      _
    $region79: #{tpu_custom_call.1} parent=1 // pred_check_branch
      %211 = sbr.rel (0) target = $region81
    $region80: #{tpu_custom_call.1} parent=1 // pred_region
      _
    $region81: #{tpu_custom_call.1} parent=1 // pred_fallthru
      _
    // Predicated region
    $region82: #{tpu_custom_call.1} parent=1 // pred_check
      _
    $region83: #{tpu_custom_call.1} parent=1 // pred_check_branch
      %213 = sbr.rel (0) target = $region85
    $region84: #{tpu_custom_call.1} parent=1 // pred_region
      %214 = dma.done [#allocation3], 256
    $region85: #{tpu_custom_call.1} parent=1 // pred_fallthru
      _
    // Predicated region
    $region86: #{tpu_custom_call.1} parent=1 // pred_check
      _
    $region87: #{tpu_custom_call.1} parent=1 // pred_check_branch
      %216 = sbr.rel (0) target = $region89
    $region88: #{tpu_custom_call.1} parent=1 // pred_region
      %217 = dma.done [#allocation6], 256
    $region89: #{tpu_custom_call.1} parent=1 // pred_fallthru
      _
    // Predicated region
    $region90: #{tpu_custom_call.1} parent=1 // pred_check
      _
    $region91: #{tpu_custom_call.1} parent=1 // pred_check_branch
      %219 = sbr.rel (0) target = $region93
    $region92: #{tpu_custom_call.1} parent=1 // pred_region
      %220 = dma.done [#allocation6], 6144
    $region93: #{tpu_custom_call.1} parent=1 // pred_fallthru
      _
    // Predicated region
    $region94: #{tpu_custom_call.1} parent=1 // pred_check
      _
    $region95: #{tpu_custom_call.1} parent=1 // pred_check_branch
      %222 = sbr.rel (0) target = $region97
    $region96: #{tpu_custom_call.1} parent=1 // pred_region
      %223 = dma.done [#allocation9], 96
    $region97: #{tpu_custom_call.1} parent=1 // pred_fallthru
      _
    // Predicated region
    $region98: #{tpu_custom_call.1} parent=1 // pred_check
      _
    $region99: #{tpu_custom_call.1} parent=1 // pred_check_branch
      %225 = sbr.rel (0) target = $region101
    $region100: #{tpu_custom_call.1} parent=1 // pred_region
      %226 = dma.done [#allocation9], 2048
    $region101: #{tpu_custom_call.1} parent=1 // pred_fallthru
      _
    // Predicated region
    $region102: #{tpu_custom_call.1} parent=1 // pred_check
      _
    $region103: #{tpu_custom_call.1} parent=1 // pred_check_branch
      %228 = sbr.rel (0) target = $region105
    $region104: #{tpu_custom_call.1} parent=1 // pred_region
      %229 = dma.done [#allocation12], 32
    $region105: #{tpu_custom_call.1} parent=1 // pred_fallthru
      _
    // Predicated region
    $region106: #{tpu_custom_call.1} parent=1 // pred_check
      _
    $region107: #{tpu_custom_call.1} parent=1 // pred_check_branch
      %231 = sbr.rel (0) target = $region109
    $region108: #{tpu_custom_call.1} parent=1 // pred_region
      %232 = dma.done [#allocation12], 32
    $region109: #{tpu_custom_call.1} parent=1 // pred_fallthru
      _
    // Predicated region
    $region110: #{tpu_custom_call.1} parent=1 // pred_check
      _
    $region111: #{tpu_custom_call.1} parent=1 // pred_check_branch
      %234 = sbr.rel (0) target = $region113
    $region112: #{tpu_custom_call.1} parent=1 // pred_region
      %235 = dma.done [#allocation15], 32
    $region113: #{tpu_custom_call.1} parent=1 // pred_fallthru
      _
    // Predicated region
    $region114: #{tpu_custom_call.1} parent=1 // pred_check
      _
    $region115: #{tpu_custom_call.1} parent=1 // pred_check_branch
      %237 = sbr.rel (0) target = $region117
    $region116: #{tpu_custom_call.1} parent=1 // pred_region
      %238 = dma.done [#allocation15], 32
    $region117: #{tpu_custom_call.1} parent=1 // pred_fallthru
      _
    // Predicated region
    $region118: #{tpu_custom_call.1} parent=1 // pred_check
      _
    $region119: #{tpu_custom_call.1} parent=1 // pred_check_branch
      %240 = sbr.rel (0) target = $region121
    $region120: #{tpu_custom_call.1} parent=1 // pred_region
      %241 = dma.done [#allocation18], 32
    $region121: #{tpu_custom_call.1} parent=1 // pred_fallthru
      _
    // Predicated region
    $region122: #{tpu_custom_call.1} parent=1 // pred_check
      _
    $region123: #{tpu_custom_call.1} parent=1 // pred_check_branch
      %243 = sbr.rel (0) target = $region125
    $region124: #{tpu_custom_call.1} parent=1 // pred_region
      %244 = dma.done [#allocation18], 4096
    $region125: #{tpu_custom_call.1} parent=1 // pred_fallthru
      _
    // Predicated region
    $region126: #{tpu_custom_call.1} parent=1 // pred_check
      _
    $region127: #{tpu_custom_call.1} parent=1 // pred_check_branch
      %246 = sbr.rel (0) target = $region129
    $region128: #{tpu_custom_call.1} parent=1 // pred_region
      %247 = dma.done [#allocation21], 4096
    $region129: #{tpu_custom_call.1} parent=1 // pred_fallthru
      _
    // Predicated region
    $region130: #{tpu_custom_call.1} parent=1 // pred_check
      _
    $region131: #{tpu_custom_call.1} parent=1 // pred_check_branch
      %249 = sbr.rel (0) target = $region133
    $region132: #{tpu_custom_call.1} parent=1 // pred_region
      %250 = dma.done [#allocation21], 32
    $region133: #{tpu_custom_call.1} parent=1 // pred_fallthru
      _
    // Predicated region
    $region134: #{tpu_custom_call.1} parent=1 // pred_check
      _
    $region135: #{tpu_custom_call.1} parent=1 // pred_check_branch
      %252 = sbr.rel (0) target = $region137
    $region136: #{tpu_custom_call.1} parent=1 // pred_region
      %253 = dma.done [#allocation24], 16
    $region137: #{tpu_custom_call.1} parent=1 // pred_fallthru
      _
    %v255 = vld [vmem:[%s0] sm:$0xff]
    %v256 = vld [vmem:[%s0 + $0x8] sm:$0xff]
    %v257 = vlaneseq
    %v258 = vand.u32 %v257, 127
    %259 = vset.pattern.permute.xlu0 0
    %260 = vperm.xlu0 %259, %v255
    %v261 = vpop.permute.xlu0 %260
    %262 = vset.pattern.permute.xlu0 0
    %263 = vperm.xlu0 %262, %v256
    %v264 = vpop.permute.xlu0 %263
    %vm265 = vcmp.eq.s32.totalorder %v261, %v258
    %vm266 = vcmp.eq.s32.totalorder %v264, %v258
    %v267 = vsel %vm265, 1.0, 0.0
    %v268 = vsel %vm266, 1.0, 0.0
    %v269 = vpack.c.bf16 %v268, %v267
    %v270 = vld [vmem:[#allocation2] sm:$0xf]
    %v271 = vld [vmem:[#allocation2 + $0x4] sm:$0xf]
    %v272 = vld [vmem:[#allocation2 + $0x8] sm:$0xf]
    %v273 = vld [vmem:[#allocation2 + $0xc] sm:$0xf]
    %v278 = vunpack.c.l.b16 %v270
    %v279 = vunpack.c.l.b16 %v271
    %v280 = vunpack.c.l.b16 %v272
    %v281 = vunpack.c.l.b16 %v273
    %v282 = vpack.c.b16 %v279, %v278
    %v283 = vpack.c.b16 %v281, %v280
    %vm286 = vcmask 261120
    %v288 = vsel %vm286, %v269, 0
    %290 = vmatprep.subr.bf16.mxu0 0
    %291 = vmatpush1.bf16.msra.mxu0 %v282
    %292 = vmatprep.subr.bf16.mxu0 0
    %293 = vmatpush1.bf16.msra.mxu0 %v283
    %294 = vmatprep.subr.bf16.mxu0 0
    %295 = vmatpush1.bf16.msra.mxu0 0
    %296 = vmatprep.subr.bf16.mxu0 0
    %297 = vmatpush1.bf16.msra.mxu0 0
    %298 = vmatprep.subr.bf16.mxu0 0
    %299 = vmatpush1.bf16.msra.mxu0 0
    %300 = vmatprep.subr.bf16.mxu0 0
    %301 = vmatpush1.bf16.msra.mxu0 0
    %302 = vmatprep.subr.bf16.mxu0 0
    %303 = vmatpush1.bf16.msra.mxu0 0
    %304 = vmatprep.subr.bf16.mxu0 0
    %305 = vmatpush1.bf16.msra.mxu0 0
    %306 = vmatprep.subr.bf16.mxu0 0
    %307 = vmatpush1.bf16.msra.mxu0 0
    %308 = vmatprep.subr.bf16.mxu0 0
    %309 = vmatpush1.bf16.msra.mxu0 0
    %310 = vmatprep.subr.bf16.mxu0 0
    %311 = vmatpush1.bf16.msra.mxu0 0
    %312 = vmatprep.subr.bf16.mxu0 0
    %313 = vmatpush1.bf16.msra.mxu0 0
    %314 = vmatprep.subr.bf16.mxu0 0
    %315 = vmatpush1.bf16.msra.mxu0 0
    %316 = vmatprep.subr.bf16.mxu0 0
    %317 = vmatpush1.bf16.msra.mxu0 0
    %318 = vmatprep.subr.bf16.mxu0 0
    %319 = vmatpush1.bf16.msra.mxu0 0
    %320 = vmatprep.subr.bf16.mxu0 0
    %321 = vmatpush1.bf16.msra.mxu0 0
    %322 = vmatprep.mubr.bf16.mxu0 0
    %323 = vmatmul.mubr.bf16.gmra.mrb[0].mxu0 %v288
    %v324 = vpop.f32.mrb[0].mxu0
    %v325 = vadd.f32 0.0, %v324
    %v326 = vpop.f32.mrb[0].mxu0
    %v327 = vpop.f32.mrb[0].mxu0
    %v328 = vadd.f32 0.0, %v327
    %v329 = vpop.f32.mrb[0].mxu0
    %330 = vdwg.mxu0
    %v331 = vmul.f32 %v325, 11.313708
    %v332 = vmul.f32 %v328, 11.313708
    %v333 = vld [vmem:[#allocation5] sm:$0xff]
    %v334 = vld [vmem:[#allocation5 + $0x8] sm:$0xff]
    %v335 = vadd.f32 %v331, %v333
    %v336 = vadd.f32 %v332, %v334
    %v337 = vld [vmem:[%s1] sm:$0xff]
    %v338 = vld [vmem:[%s1 + $0x8] sm:$0xff]
    %v339 = vld [vmem:[#allocation13] sm:$0x1]
    %v340 = vld [vmem:[#allocation14] sm:$0x1]
    %341 = vadd.xlane.f32.xlu0 %v335
    %v342 = vpop.xlane.xlu0 %341
    %343 = vadd.xlane.f32.xlu0 %v336
    %v344 = vpop.xlane.xlu0 %343
    %v345 = vrcp.pop 128.0
    %v346 = vmul.f32 %v342, %v345
    %v347 = vmul.f32 %v344, %v345
    %v348 = vmul.f32 %v335, %v335
    %v349 = vmul.f32 %v336, %v336
    %350 = vadd.xlane.f32.xlu0 %v348
    %v351 = vpop.xlane.xlu0 %350
    %352 = vadd.xlane.f32.xlu0 %v349
    %v353 = vpop.xlane.xlu0 %352
    %v354 = vmul.f32 %v351, %v345
    %v355 = vmul.f32 %v353, %v345
    %v356 = vmul.f32 %v346, %v346
    %v357 = vmul.f32 %v347, %v347
    %v358 = vsub.f32 %v354, %v356
    %v359 = vsub.f32 %v355, %v357
    %v360 = vsub.f32 %v335, %v346
    %v361 = vsub.f32 %v336, %v347
    %v362 = vadd.f32 %v358, 1e-05
    %v363 = vadd.f32 %v359, 1e-05
    %v364 = vrsqrt.pop %v362
    %v365 = vrsqrt.pop %v363
    %v366 = vmul.f32 %v360, %v364
    %v367 = vmul.f32 %v361, %v365
    %v369 = vlaneseq
    %v370 = vshrl.u32 %v369, 7
    %v371 = vsub.s32 0, %v370
    %v372 = vrot.slane %v339, %v371
    %v374 = vmul.f32 %v366, %v372
    %v375 = vmul.f32 %v367, %v372
    %v377 = vlaneseq
    %v378 = vshrl.u32 %v377, 7
    %v379 = vsub.s32 0, %v378
    %v380 = vrot.slane %v340, %v379
    %v382 = vadd.f32 %v374, %v380
    %v383 = vadd.f32 %v375, %v380
    %v384 = vpack.c.bf16 %v383, %v382
    %v385 = vld [vmem:[#allocation7] sm:$0xff]
    %v386 = vld [vmem:[#allocation7 + $0x8] sm:$0xf]
    %v387 = vld [vmem:[#allocation7 + $0xc] sm:$0xff]
    %v388 = vld [vmem:[#allocation7 + $0x14] sm:$0xf]
    %v389 = vld [vmem:[#allocation7 + $0x18] sm:$0xff]
    %v390 = vld [vmem:[#allocation7 + $0x20] sm:$0xf]
    %v391 = vld [vmem:[#allocation7 + $0x24] sm:$0xff]
    %v392 = vld [vmem:[#allocation7 + $0x2c] sm:$0xf]
    %v393 = vld [vmem:[#allocation7 + $0x30] sm:$0xff]
    %v394 = vld [vmem:[#allocation7 + $0x38] sm:$0xf]
    %v395 = vld [vmem:[#allocation7 + $0x3c] sm:$0xff]
    %v396 = vld [vmem:[#allocation7 + $0x44] sm:$0xf]
    %v397 = vld [vmem:[#allocation7 + $0x48] sm:$0xff]
    %v398 = vld [vmem:[#allocation7 + $0x50] sm:$0xf]
    %v399 = vld [vmem:[#allocation7 + $0x54] sm:$0xff]
    %v400 = vld [vmem:[#allocation7 + $0x5c] sm:$0xf]
    %v401 = vld [vmem:[#allocation7 + $0x60] sm:$0xff]
    %v402 = vld [vmem:[#allocation7 + $0x68] sm:$0xf]
    %v403 = vld [vmem:[#allocation7 + $0x6c] sm:$0xff]
    %v404 = vld [vmem:[#allocation7 + $0x74] sm:$0xf]
    %v405 = vld [vmem:[#allocation7 + $0x78] sm:$0xff]
    %v406 = vld [vmem:[#allocation7 + $0x80] sm:$0xf]
    %v407 = vld [vmem:[#allocation7 + $0x84] sm:$0xff]
    %v408 = vld [vmem:[#allocation7 + $0x8c] sm:$0xf]
    %v409 = vld [vmem:[#allocation7 + $0x90] sm:$0xff]
    %v410 = vld [vmem:[#allocation7 + $0x98] sm:$0xf]
    %v411 = vld [vmem:[#allocation7 + $0x9c] sm:$0xff]
    %v412 = vld [vmem:[#allocation7 + $0xa4] sm:$0xf]
    %v413 = vld [vmem:[#allocation7 + $0xa8] sm:$0xff]
    %v414 = vld [vmem:[#allocation7 + $0xb0] sm:$0xf]
    %v415 = vld [vmem:[#allocation7 + $0xb4] sm:$0xff]
    %v416 = vld [vmem:[#allocation7 + $0xbc] sm:$0xf]
    %v417 = vld [vmem:[#allocation8] sm:$0x7]
    %v419 = vlaneseq
    %v420 = vshrl.u32 %v419, 7
    %v421 = vsub.s32 0, %v420
    %v422 = vrot.slane %v417, %v421
    %v423 = vlaneseq
    %v424 = vshrl.u32 %v423, 7
    %v425 = vsub.s32 1, %v424
    %v426 = vrot.slane %v417, %v425
    %v427 = vlaneseq
    %v428 = vshrl.u32 %v427, 7
    %v429 = vsub.s32 2, %v428
    %v430 = vrot.slane %v417, %v429
    %v466 = vunpack.c.l.b16 %v385
    %v467 = vunpack.c.h.b16 %v385
    %v468 = vunpack.c.l.b16 %v386
    %v469 = vunpack.c.l.b16 %v387
    %v470 = vunpack.c.h.b16 %v387
    %v471 = vunpack.c.l.b16 %v388
    %v472 = vunpack.c.l.b16 %v389
    %v473 = vunpack.c.h.b16 %v389
    %v474 = vunpack.c.l.b16 %v390
    %v475 = vunpack.c.l.b16 %v391
    %v476 = vunpack.c.h.b16 %v391
    %v477 = vunpack.c.l.b16 %v392
    %v478 = vunpack.c.l.b16 %v393
    %v479 = vunpack.c.h.b16 %v393
    %v480 = vunpack.c.l.b16 %v394
    %v481 = vunpack.c.l.b16 %v395
    %v482 = vunpack.c.h.b16 %v395
    %v483 = vunpack.c.l.b16 %v396
    %v484 = vunpack.c.l.b16 %v397
    %v485 = vunpack.c.h.b16 %v397
    %v486 = vunpack.c.l.b16 %v398
    %v487 = vunpack.c.l.b16 %v399
    %v488 = vunpack.c.h.b16 %v399
    %v489 = vunpack.c.l.b16 %v400
    %v490 = vunpack.c.l.b16 %v401
    %v491 = vunpack.c.h.b16 %v401
    %v492 = vunpack.c.l.b16 %v402
    %v493 = vunpack.c.l.b16 %v403
    %v494 = vunpack.c.h.b16 %v403
    %v495 = vunpack.c.l.b16 %v404
    %v496 = vunpack.c.l.b16 %v405
    %v497 = vunpack.c.h.b16 %v405
    %v498 = vunpack.c.l.b16 %v406
    %v499 = vunpack.c.l.b16 %v407
    %v500 = vunpack.c.h.b16 %v407
    %v501 = vunpack.c.l.b16 %v408
    %v502 = vunpack.c.l.b16 %v409
    %v503 = vunpack.c.h.b16 %v409
    %v504 = vunpack.c.l.b16 %v410
    %v505 = vunpack.c.l.b16 %v411
    %v506 = vunpack.c.h.b16 %v411
    %v507 = vunpack.c.l.b16 %v412
    %v508 = vunpack.c.l.b16 %v413
    %v509 = vunpack.c.h.b16 %v413
    %v510 = vunpack.c.l.b16 %v414
    %v511 = vunpack.c.l.b16 %v415
    %v512 = vunpack.c.h.b16 %v415
    %v513 = vunpack.c.l.b16 %v416
    %v514 = vpack.c.b16 %v469, %v466
    %v515 = vpack.c.b16 %v470, %v467
    %v516 = vpack.c.b16 %v471, %v468
    %v517 = vpack.c.b16 %v475, %v472
    %v518 = vpack.c.b16 %v476, %v473
    %v519 = vpack.c.b16 %v477, %v474
    %v520 = vpack.c.b16 %v481, %v478
    %v521 = vpack.c.b16 %v482, %v479
    %v522 = vpack.c.b16 %v483, %v480
    %v523 = vpack.c.b16 %v487, %v484
    %v524 = vpack.c.b16 %v488, %v485
    %v525 = vpack.c.b16 %v489, %v486
    %v526 = vpack.c.b16 %v493, %v490
    %v527 = vpack.c.b16 %v494, %v491
    %v528 = vpack.c.b16 %v495, %v492
    %v529 = vpack.c.b16 %v499, %v496
    %v530 = vpack.c.b16 %v500, %v497
    %v531 = vpack.c.b16 %v501, %v498
    %v532 = vpack.c.b16 %v505, %v502
    %v533 = vpack.c.b16 %v506, %v503
    %v534 = vpack.c.b16 %v507, %v504
    %v535 = vpack.c.b16 %v511, %v508
    %v536 = vpack.c.b16 %v512, %v509
    %v537 = vpack.c.b16 %v513, %v510
    %562 = vmatprep.subr.bf16.mxu0 %v515
    %563 = vmatpush1.bf16.msra.mxu0 %v514
    %564 = vmatprep.subr.bf16.mxu0 %v518
    %565 = vmatpush1.bf16.msra.mxu0 %v517
    %566 = vmatprep.subr.bf16.mxu0 %v521
    %567 = vmatpush1.bf16.msra.mxu0 %v520
    %568 = vmatprep.subr.bf16.mxu0 %v524
    %569 = vmatpush1.bf16.msra.mxu0 %v523
    %570 = vmatprep.subr.bf16.mxu0 %v527
    %571 = vmatpush1.bf16.msra.mxu0 %v526
    %572 = vmatprep.subr.bf16.mxu0 %v530
    %573 = vmatpush1.bf16.msra.mxu0 %v529
    %574 = vmatprep.subr.bf16.mxu0 %v533
    %575 = vmatpush1.bf16.msra.mxu0 %v532
    %576 = vmatprep.subr.bf16.mxu0 %v536
    %577 = vmatpush1.bf16.msra.mxu0 %v535
    %578 = vmatprep.subr.bf16.mxu0 0
    %579 = vmatpush1.bf16.msra.mxu0 0
    %580 = vmatprep.subr.bf16.mxu0 0
    %581 = vmatpush1.bf16.msra.mxu0 0
    %582 = vmatprep.subr.bf16.mxu0 0
    %583 = vmatpush1.bf16.msra.mxu0 0
    %584 = vmatprep.subr.bf16.mxu0 0
    %585 = vmatpush1.bf16.msra.mxu0 0
    %586 = vmatprep.subr.bf16.mxu0 0
    %587 = vmatpush1.bf16.msra.mxu0 0
    %588 = vmatprep.subr.bf16.mxu0 0
    %589 = vmatpush1.bf16.msra.mxu0 0
    %590 = vmatprep.subr.bf16.mxu0 0
    %591 = vmatpush1.bf16.msra.mxu0 0
    %592 = vmatprep.subr.bf16.mxu0 0
    %593 = vmatpush1.bf16.msra.mxu0 0
    %594 = vmatprep.mubr.bf16.mxu0 0
    %595 = vmatmul.mubr.bf16.gmra.mrb[0].mxu0 %v384
    %v596 = vpop.f32.mrb[0].mxu0
    %v597 = vadd.f32 %v422, %v596
    %v598 = vpop.f32.mrb[0].mxu0
    %v599 = vadd.f32 %v426, %v598
    %v600 = vpop.f32.mrb[0].mxu0
    %v601 = vadd.f32 %v422, %v600
    %v602 = vpop.f32.mrb[0].mxu0
    %v603 = vadd.f32 %v426, %v602
    %604 = vdwg.mxu0
    %605 = vmatprep.subr.bf16.mxu0 0
    %606 = vmatpush1.bf16.msra.mxu0 %v516
    %607 = vmatprep.subr.bf16.mxu0 0
    %608 = vmatpush1.bf16.msra.mxu0 %v519
    %609 = vmatprep.subr.bf16.mxu0 0
    %610 = vmatpush1.bf16.msra.mxu0 %v522
    %611 = vmatprep.subr.bf16.mxu0 0
    %612 = vmatpush1.bf16.msra.mxu0 %v525
    %613 = vmatprep.subr.bf16.mxu0 0
    %614 = vmatpush1.bf16.msra.mxu0 %v528
    %615 = vmatprep.subr.bf16.mxu0 0
    %616 = vmatpush1.bf16.msra.mxu0 %v531
    %617 = vmatprep.subr.bf16.mxu0 0
    %618 = vmatpush1.bf16.msra.mxu0 %v534
    %619 = vmatprep.subr.bf16.mxu0 0
    %620 = vmatpush1.bf16.msra.mxu0 %v537
    %621 = vmatprep.subr.bf16.mxu0 0
    %622 = vmatpush1.bf16.msra.mxu0 0
    %623 = vmatprep.subr.bf16.mxu0 0
    %624 = vmatpush1.bf16.msra.mxu0 0
    %625 = vmatprep.subr.bf16.mxu0 0
    %626 = vmatpush1.bf16.msra.mxu0 0
    %627 = vmatprep.subr.bf16.mxu0 0
    %628 = vmatpush1.bf16.msra.mxu0 0
    %629 = vmatprep.subr.bf16.mxu0 0
    %630 = vmatpush1.bf16.msra.mxu0 0
    %631 = vmatprep.subr.bf16.mxu0 0
    %632 = vmatpush1.bf16.msra.mxu0 0
    %633 = vmatprep.subr.bf16.mxu0 0
    %634 = vmatpush1.bf16.msra.mxu0 0
    %635 = vmatprep.subr.bf16.mxu0 0
    %636 = vmatpush1.bf16.msra.mxu0 0
    %637 = vmatprep.mubr.bf16.mxu0 0
    %638 = vmatmul.mubr.bf16.gmra.mrb[0].mxu0 %v384
    %v639 = vpop.f32.mrb[0].mxu0
    %v640 = vadd.f32 %v430, %v639
    %v641 = vpop.f32.mrb[0].mxu0
    %v642 = vpop.f32.mrb[0].mxu0
    %v643 = vadd.f32 %v430, %v642
    %v644 = vpop.f32.mrb[0].mxu0
    %645 = vdwg.mxu0
    %v646 = vpack.c.bf16 %v601, %v597
    %v647 = vpack.c.bf16 %v603, %v599
    %v648 = vpack.c.bf16 %v643, %v640
    %650 = vrot.lane.b32.xlu0 %v646, 96
    %v651 = vpop.permute.xlu0 %650
    %652 = vrot.lane.b32.xlu0 %v646, 64
    %v653 = vpop.permute.xlu0 %652
    %654 = vrot.lane.b32.xlu0 %v646, 32
    %v655 = vpop.permute.xlu0 %654
    %657 = vrot.lane.b32.xlu0 %v647, 96
    %v658 = vpop.permute.xlu0 %657
    %659 = vrot.lane.b32.xlu0 %v647, 64
    %v660 = vpop.permute.xlu0 %659
    %661 = vrot.lane.b32.xlu0 %v647, 32
    %v662 = vpop.permute.xlu0 %661
    %664 = vrot.lane.b32.xlu0 %v648, 96
    %v665 = vpop.permute.xlu0 %664
    %667 = vrot.lane.b32.xlu0 %v648, 64
    %v668 = vpop.permute.xlu0 %667
    %670 = vrot.lane.b32.xlu0 %v648, 32
    %v671 = vpop.permute.xlu0 %670
    %v674 = vsel %vm286, %v646, 0
    %v677 = vsel %vm286, %v647, 0
    %679 = vmatprep.subr.bf16.mxu0 0
    %680 = vmatpush1.bf16.xpose.msra.mxu0 %v677
    %681 = vmatprep.subr.bf16.mxu0 0
    %682 = vmatpush1.bf16.xpose.msra.mxu0 0
    %683 = vmatprep.subr.bf16.mxu0 0
    %684 = vmatpush1.bf16.xpose.msra.mxu0 0
    %685 = vmatprep.subr.bf16.mxu0 0
    %686 = vmatpush1.bf16.xpose.msra.mxu0 0
    %687 = vmatprep.subr.bf16.mxu0 0
    %688 = vmatpush1.bf16.xpose.msra.mxu0 0
    %689 = vmatprep.subr.bf16.mxu0 0
    %690 = vmatpush1.bf16.xpose.msra.mxu0 0
    %691 = vmatprep.subr.bf16.mxu0 0
    %692 = vmatpush1.bf16.xpose.msra.mxu0 0
    %693 = vmatprep.subr.bf16.mxu0 0
    %694 = vmatpush1.bf16.xpose.msra.mxu0 0
    %695 = vmatprep.subr.bf16.mxu0 0
    %696 = vmatpush1.bf16.xpose.msra.mxu0 0
    %697 = vmatprep.subr.bf16.mxu0 0
    %698 = vmatpush1.bf16.xpose.msra.mxu0 0
    %699 = vmatprep.subr.bf16.mxu0 0
    %700 = vmatpush1.bf16.xpose.msra.mxu0 0
    %701 = vmatprep.subr.bf16.mxu0 0
    %702 = vmatpush1.bf16.xpose.msra.mxu0 0
    %703 = vmatprep.subr.bf16.mxu0 0
    %704 = vmatpush1.bf16.xpose.msra.mxu0 0
    %705 = vmatprep.subr.bf16.mxu0 0
    %706 = vmatpush1.bf16.xpose.msra.mxu0 0
    %707 = vmatprep.subr.bf16.mxu0 0
    %708 = vmatpush1.bf16.xpose.msra.mxu0 0
    %709 = vmatprep.subr.bf16.mxu0 0
    %710 = vmatpush1.bf16.xpose.msra.mxu0 0
    %711 = vmatprep.mubr.bf16.mxu0 0
    %712 = vmatmul.mubr.bf16.gmra.mrb[0].mxu0 %v674
    %v713 = vpop.f32.mrb[0].mxu0
    %v714 = vadd.f32 0.0, %v713
    %v715 = vpop.f32.mrb[0].mxu0
    %v716 = vpop.f32.mrb[0].mxu0
    %v717 = vadd.f32 0.0, %v716
    %v718 = vpop.f32.mrb[0].mxu0
    %719 = vdwg.mxu0
    %v721 = vsel %vm286, %v651, 0
    %v724 = vsel %vm286, %v658, 0
    %726 = vmatprep.subr.bf16.mxu0 0
    %727 = vmatpush1.bf16.xpose.msra.mxu0 %v724
    %728 = vmatprep.subr.bf16.mxu0 0
    %729 = vmatpush1.bf16.xpose.msra.mxu0 0
    %730 = vmatprep.subr.bf16.mxu0 0
    %731 = vmatpush1.bf16.xpose.msra.mxu0 0
    %732 = vmatprep.subr.bf16.mxu0 0
    %733 = vmatpush1.bf16.xpose.msra.mxu0 0
    %734 = vmatprep.subr.bf16.mxu0 0
    %735 = vmatpush1.bf16.xpose.msra.mxu0 0
    %736 = vmatprep.subr.bf16.mxu0 0
    %737 = vmatpush1.bf16.xpose.msra.mxu0 0
    %738 = vmatprep.subr.bf16.mxu0 0
    %739 = vmatpush1.bf16.xpose.msra.mxu0 0
    %740 = vmatprep.subr.bf16.mxu0 0
    %741 = vmatpush1.bf16.xpose.msra.mxu0 0
    %742 = vmatprep.subr.bf16.mxu0 0
    %743 = vmatpush1.bf16.xpose.msra.mxu0 0
    %744 = vmatprep.subr.bf16.mxu0 0
    %745 = vmatpush1.bf16.xpose.msra.mxu0 0
    %746 = vmatprep.subr.bf16.mxu0 0
    %747 = vmatpush1.bf16.xpose.msra.mxu0 0
    %748 = vmatprep.subr.bf16.mxu0 0
    %749 = vmatpush1.bf16.xpose.msra.mxu0 0
    %750 = vmatprep.subr.bf16.mxu0 0
    %751 = vmatpush1.bf16.xpose.msra.mxu0 0
    %752 = vmatprep.subr.bf16.mxu0 0
    %753 = vmatpush1.bf16.xpose.msra.mxu0 0
    %754 = vmatprep.subr.bf16.mxu0 0
    %755 = vmatpush1.bf16.xpose.msra.mxu0 0
    %756 = vmatprep.subr.bf16.mxu0 0
    %757 = vmatpush1.bf16.xpose.msra.mxu0 0
    %758 = vmatprep.mubr.bf16.mxu0 0
    %759 = vmatmul.mubr.bf16.gmra.mrb[0].mxu0 %v721
    %v760 = vpop.f32.mrb[0].mxu0
    %v761 = vadd.f32 0.0, %v760
    %v762 = vpop.f32.mrb[0].mxu0
    %v763 = vpop.f32.mrb[0].mxu0
    %v764 = vadd.f32 0.0, %v763
    %v765 = vpop.f32.mrb[0].mxu0
    %766 = vdwg.mxu0
    %v768 = vsel %vm286, %v653, 0
    %v771 = vsel %vm286, %v660, 0
    %773 = vmatprep.subr.bf16.mxu0 0
    %774 = vmatpush1.bf16.xpose.msra.mxu0 %v771
    %775 = vmatprep.subr.bf16.mxu0 0
    %776 = vmatpush1.bf16.xpose.msra.mxu0 0
    %777 = vmatprep.subr.bf16.mxu0 0
    %778 = vmatpush1.bf16.xpose.msra.mxu0 0
    %779 = vmatprep.subr.bf16.mxu0 0
    %780 = vmatpush1.bf16.xpose.msra.mxu0 0
    %781 = vmatprep.subr.bf16.mxu0 0
    %782 = vmatpush1.bf16.xpose.msra.mxu0 0
    %783 = vmatprep.subr.bf16.mxu0 0
    %784 = vmatpush1.bf16.xpose.msra.mxu0 0
    %785 = vmatprep.subr.bf16.mxu0 0
    %786 = vmatpush1.bf16.xpose.msra.mxu0 0
    %787 = vmatprep.subr.bf16.mxu0 0
    %788 = vmatpush1.bf16.xpose.msra.mxu0 0
    %789 = vmatprep.subr.bf16.mxu0 0
    %790 = vmatpush1.bf16.xpose.msra.mxu0 0
    %791 = vmatprep.subr.bf16.mxu0 0
    %792 = vmatpush1.bf16.xpose.msra.mxu0 0
    %793 = vmatprep.subr.bf16.mxu0 0
    %794 = vmatpush1.bf16.xpose.msra.mxu0 0
    %795 = vmatprep.subr.bf16.mxu0 0
    %796 = vmatpush1.bf16.xpose.msra.mxu0 0
    %797 = vmatprep.subr.bf16.mxu0 0
    %798 = vmatpush1.bf16.xpose.msra.mxu0 0
    %799 = vmatprep.subr.bf16.mxu0 0
    %800 = vmatpush1.bf16.xpose.msra.mxu0 0
    %801 = vmatprep.subr.bf16.mxu0 0
    %802 = vmatpush1.bf16.xpose.msra.mxu0 0
    %803 = vmatprep.subr.bf16.mxu0 0
    %804 = vmatpush1.bf16.xpose.msra.mxu0 0
    %805 = vmatprep.mubr.bf16.mxu0 0
    %806 = vmatmul.mubr.bf16.gmra.mrb[0].mxu0 %v768
    %v807 = vpop.f32.mrb[0].mxu0
    %v808 = vadd.f32 0.0, %v807
    %v809 = vpop.f32.mrb[0].mxu0
    %v810 = vpop.f32.mrb[0].mxu0
    %v811 = vadd.f32 0.0, %v810
    %v812 = vpop.f32.mrb[0].mxu0
    %813 = vdwg.mxu0
    %v815 = vsel %vm286, %v655, 0
    %v818 = vsel %vm286, %v662, 0
    %820 = vmatprep.subr.bf16.mxu0 0
    %821 = vmatpush1.bf16.xpose.msra.mxu0 %v818
    %822 = vmatprep.subr.bf16.mxu0 0
    %823 = vmatpush1.bf16.xpose.msra.mxu0 0
    %824 = vmatprep.subr.bf16.mxu0 0
    %825 = vmatpush1.bf16.xpose.msra.mxu0 0
    %826 = vmatprep.subr.bf16.mxu0 0
    %827 = vmatpush1.bf16.xpose.msra.mxu0 0
    %828 = vmatprep.subr.bf16.mxu0 0
    %829 = vmatpush1.bf16.xpose.msra.mxu0 0
    %830 = vmatprep.subr.bf16.mxu0 0
    %831 = vmatpush1.bf16.xpose.msra.mxu0 0
    %832 = vmatprep.subr.bf16.mxu0 0
    %833 = vmatpush1.bf16.xpose.msra.mxu0 0
    %834 = vmatprep.subr.bf16.mxu0 0
    %835 = vmatpush1.bf16.xpose.msra.mxu0 0
    %836 = vmatprep.subr.bf16.mxu0 0
    %837 = vmatpush1.bf16.xpose.msra.mxu0 0
    %838 = vmatprep.subr.bf16.mxu0 0
    %839 = vmatpush1.bf16.xpose.msra.mxu0 0
    %840 = vmatprep.subr.bf16.mxu0 0
    %841 = vmatpush1.bf16.xpose.msra.mxu0 0
    %842 = vmatprep.subr.bf16.mxu0 0
    %843 = vmatpush1.bf16.xpose.msra.mxu0 0
    %844 = vmatprep.subr.bf16.mxu0 0
    %845 = vmatpush1.bf16.xpose.msra.mxu0 0
    %846 = vmatprep.subr.bf16.mxu0 0
    %847 = vmatpush1.bf16.xpose.msra.mxu0 0
    %848 = vmatprep.subr.bf16.mxu0 0
    %849 = vmatpush1.bf16.xpose.msra.mxu0 0
    %850 = vmatprep.subr.bf16.mxu0 0
    %851 = vmatpush1.bf16.xpose.msra.mxu0 0
    %852 = vmatprep.mubr.bf16.mxu0 0
    %853 = vmatmul.mubr.bf16.gmra.mrb[0].mxu0 %v815
    %v854 = vpop.f32.mrb[0].mxu0
    %v855 = vadd.f32 0.0, %v854
    %v856 = vpop.f32.mrb[0].mxu0
    %v857 = vpop.f32.mrb[0].mxu0
    %v858 = vadd.f32 0.0, %v857
    %v859 = vpop.f32.mrb[0].mxu0
    %860 = vdwg.mxu0
    %v861 = vmul.f32 %v714, 0.17677669
    %v862 = vmul.f32 %v717, 0.17677669
    %v863 = vmul.f32 %v761, 0.17677669
    %v864 = vmul.f32 %v764, 0.17677669
    %v865 = vmul.f32 %v808, 0.17677669
    %v866 = vmul.f32 %v811, 0.17677669
    %v867 = vmul.f32 %v855, 0.17677669
    %v868 = vmul.f32 %v858, 0.17677669
    %v869 = vadd.f32 %v861, %v337
    %v870 = vadd.f32 %v862, %v338
    %v871 = vadd.f32 %v863, %v337
    %v872 = vadd.f32 %v864, %v338
    %v873 = vadd.f32 %v865, %v337
    %v874 = vadd.f32 %v866, %v338
    %v875 = vadd.f32 %v867, %v337
    %v876 = vadd.f32 %v868, %v338
    %vm877 = vcmask 130048
    %v878 = vsel %vm877, %v869, -inf
    %879 = vmax.xlane.f32.xlu0 %v878
    %v880 = vpop.xlane.xlu0 %879
    %v881 = vsel %vm877, %v870, -inf
    %882 = vmax.xlane.f32.xlu0 %v881
    %v883 = vpop.xlane.xlu0 %882
    %v884 = vsel %vm877, %v871, -inf
    %885 = vmax.xlane.f32.xlu0 %v884
    %v886 = vpop.xlane.xlu0 %885
    %v887 = vsel %vm877, %v872, -inf
    %888 = vmax.xlane.f32.xlu0 %v887
    %v889 = vpop.xlane.xlu0 %888
    %v890 = vsel %vm877, %v873, -inf
    %891 = vmax.xlane.f32.xlu0 %v890
    %v892 = vpop.xlane.xlu0 %891
    %v893 = vsel %vm877, %v874, -inf
    %894 = vmax.xlane.f32.xlu0 %v893
    %v895 = vpop.xlane.xlu0 %894
    %v896 = vsel %vm877, %v875, -inf
    %897 = vmax.xlane.f32.xlu0 %v896
    %v898 = vpop.xlane.xlu0 %897
    %v899 = vsel %vm877, %v876, -inf
    %900 = vmax.xlane.f32.xlu0 %v899
    %v901 = vpop.xlane.xlu0 %900
    %v902 = vsub.f32 %v869, %v880
    %v903 = vsub.f32 %v870, %v883
    %v904 = vsub.f32 %v871, %v886
    %v905 = vsub.f32 %v872, %v889
    %v906 = vsub.f32 %v873, %v892
    %v907 = vsub.f32 %v874, %v895
    %v908 = vsub.f32 %v875, %v898
    %v909 = vsub.f32 %v876, %v901
    %v910 = vmul.f32 %v902, 1.442695
    %v911 = vpow.pop %v910
    %v912 = vmul.f32 %v903, 1.442695
    %v913 = vpow.pop %v912
    %v914 = vmul.f32 %v904, 1.442695
    %v915 = vpow.pop %v914
    %v916 = vmul.f32 %v905, 1.442695
    %v917 = vpow.pop %v916
    %v918 = vmul.f32 %v906, 1.442695
    %v919 = vpow.pop %v918
    %v920 = vmul.f32 %v907, 1.442695
    %v921 = vpow.pop %v920
    %v922 = vmul.f32 %v908, 1.442695
    %v923 = vpow.pop %v922
    %v924 = vmul.f32 %v909, 1.442695
    %v925 = vpow.pop %v924
    %v926 = vsel %vm877, %v911, 0.0
    %927 = vadd.xlane.f32.xlu0 %v926
    %v928 = vpop.xlane.xlu0 %927
    %v929 = vsel %vm877, %v913, 0.0
    %930 = vadd.xlane.f32.xlu0 %v929
    %v931 = vpop.xlane.xlu0 %930
    %v932 = vsel %vm877, %v915, 0.0
    %933 = vadd.xlane.f32.xlu0 %v932
    %v934 = vpop.xlane.xlu0 %933
    %v935 = vsel %vm877, %v917, 0.0
    %936 = vadd.xlane.f32.xlu0 %v935
    %v937 = vpop.xlane.xlu0 %936
    %v938 = vsel %vm877, %v919, 0.0
    %939 = vadd.xlane.f32.xlu0 %v938
    %v940 = vpop.xlane.xlu0 %939
    %v941 = vsel %vm877, %v921, 0.0
    %942 = vadd.xlane.f32.xlu0 %v941
    %v943 = vpop.xlane.xlu0 %942
    %v944 = vsel %vm877, %v923, 0.0
    %945 = vadd.xlane.f32.xlu0 %v944
    %v946 = vpop.xlane.xlu0 %945
    %v947 = vsel %vm877, %v925, 0.0
    %948 = vadd.xlane.f32.xlu0 %v947
    %v949 = vpop.xlane.xlu0 %948
    %v950 = vrcp.pop %v928
    %v951 = vmul.f32 %v911, %v950
    %v952 = vrcp.pop %v931
    %v953 = vmul.f32 %v913, %v952
    %v954 = vrcp.pop %v934
    %v955 = vmul.f32 %v915, %v954
    %v956 = vrcp.pop %v937
    %v957 = vmul.f32 %v917, %v956
    %v958 = vrcp.pop %v940
    %v959 = vmul.f32 %v919, %v958
    %v960 = vrcp.pop %v943
    %v961 = vmul.f32 %v921, %v960
    %v962 = vrcp.pop %v946
    %v963 = vmul.f32 %v923, %v962
    %v964 = vrcp.pop %v949
    %v965 = vmul.f32 %v925, %v964
    %v966 = vpack.c.bf16 %v953, %v951
    %v967 = vpack.c.bf16 %v957, %v955
    %v968 = vpack.c.bf16 %v961, %v959
    %v969 = vpack.c.bf16 %v965, %v963
    %v971 = vsel %vm877, %v966, 0
    %973 = vmatprep.subr.bf16.mxu0 0
    %974 = vmatpush1.bf16.msra.mxu0 %v648
    %975 = vmatprep.subr.bf16.mxu0 0
    %976 = vmatpush1.bf16.msra.mxu0 0
    %977 = vmatprep.subr.bf16.mxu0 0
    %978 = vmatpush1.bf16.msra.mxu0 0
    %979 = vmatprep.subr.bf16.mxu0 0
    %980 = vmatpush1.bf16.msra.mxu0 0
    %981 = vmatprep.subr.bf16.mxu0 0
    %982 = vmatpush1.bf16.msra.mxu0 0
    %983 = vmatprep.subr.bf16.mxu0 0
    %984 = vmatpush1.bf16.msra.mxu0 0
    %985 = vmatprep.subr.bf16.mxu0 0
    %986 = vmatpush1.bf16.msra.mxu0 0
    %987 = vmatprep.subr.bf16.mxu0 0
    %988 = vmatpush1.bf16.msra.mxu0 0
    %989 = vmatprep.subr.bf16.mxu0 0
    %990 = vmatpush1.bf16.msra.mxu0 0
    %991 = vmatprep.subr.bf16.mxu0 0
    %992 = vmatpush1.bf16.msra.mxu0 0
    %993 = vmatprep.subr.bf16.mxu0 0
    %994 = vmatpush1.bf16.msra.mxu0 0
    %995 = vmatprep.subr.bf16.mxu0 0
    %996 = vmatpush1.bf16.msra.mxu0 0
    %997 = vmatprep.subr.bf16.mxu0 0
    %998 = vmatpush1.bf16.msra.mxu0 0
    %999 = vmatprep.subr.bf16.mxu0 0
    %1000 = vmatpush1.bf16.msra.mxu0 0
    %1001 = vmatprep.subr.bf16.mxu0 0
    %1002 = vmatpush1.bf16.msra.mxu0 0
    %1003 = vmatprep.subr.bf16.mxu0 0
    %1004 = vmatpush1.bf16.msra.mxu0 0
    %1005 = vmatprep.mubr.bf16.mxu0 0
    %1006 = vmatmul.mubr.bf16.gmra.mrb[0].mxu0 %v971
    %v1007 = vpop.f32.mrb[0].mxu0
    %v1008 = vadd.f32 0.0, %v1007
    %v1009 = vpop.f32.mrb[0].mxu0
    %v1010 = vpop.f32.mrb[0].mxu0
    %v1011 = vadd.f32 0.0, %v1010
    %v1012 = vpop.f32.mrb[0].mxu0
    %1013 = vdwg.mxu0
    %v1015 = vsel %vm877, %v967, 0
    %1017 = vmatprep.subr.bf16.mxu0 0
    %1018 = vmatpush1.bf16.msra.mxu0 %v665
    %1019 = vmatprep.subr.bf16.mxu0 0
    %1020 = vmatpush1.bf16.msra.mxu0 0
    %1021 = vmatprep.subr.bf16.mxu0 0
    %1022 = vmatpush1.bf16.msra.mxu0 0
    %1023 = vmatprep.subr.bf16.mxu0 0
    %1024 = vmatpush1.bf16.msra.mxu0 0
    %1025 = vmatprep.subr.bf16.mxu0 0
    %1026 = vmatpush1.bf16.msra.mxu0 0
    %1027 = vmatprep.subr.bf16.mxu0 0
    %1028 = vmatpush1.bf16.msra.mxu0 0
    %1029 = vmatprep.subr.bf16.mxu0 0
    %1030 = vmatpush1.bf16.msra.mxu0 0
    %1031 = vmatprep.subr.bf16.mxu0 0
    %1032 = vmatpush1.bf16.msra.mxu0 0
    %1033 = vmatprep.subr.bf16.mxu0 0
    %1034 = vmatpush1.bf16.msra.mxu0 0
    %1035 = vmatprep.subr.bf16.mxu0 0
    %1036 = vmatpush1.bf16.msra.mxu0 0
    %1037 = vmatprep.subr.bf16.mxu0 0
    %1038 = vmatpush1.bf16.msra.mxu0 0
    %1039 = vmatprep.subr.bf16.mxu0 0
    %1040 = vmatpush1.bf16.msra.mxu0 0
    %1041 = vmatprep.subr.bf16.mxu0 0
    %1042 = vmatpush1.bf16.msra.mxu0 0
    %1043 = vmatprep.subr.bf16.mxu0 0
    %1044 = vmatpush1.bf16.msra.mxu0 0
    %1045 = vmatprep.subr.bf16.mxu0 0
    %1046 = vmatpush1.bf16.msra.mxu0 0
    %1047 = vmatprep.subr.bf16.mxu0 0
    %1048 = vmatpush1.bf16.msra.mxu0 0
    %1049 = vmatprep.mubr.bf16.mxu0 0
    %1050 = vmatmul.mubr.bf16.gmra.mrb[0].mxu0 %v1015
    %v1051 = vpop.f32.mrb[0].mxu0
    %v1052 = vadd.f32 0.0, %v1051
    %v1053 = vpop.f32.mrb[0].mxu0
    %v1054 = vpop.f32.mrb[0].mxu0
    %v1055 = vadd.f32 0.0, %v1054
    %v1056 = vpop.f32.mrb[0].mxu0
    %1057 = vdwg.mxu0
    %v1059 = vsel %vm877, %v968, 0
    %1061 = vmatprep.subr.bf16.mxu0 0
    %1062 = vmatpush1.bf16.msra.mxu0 %v668
    %1063 = vmatprep.subr.bf16.mxu0 0
    %1064 = vmatpush1.bf16.msra.mxu0 0
    %1065 = vmatprep.subr.bf16.mxu0 0
    %1066 = vmatpush1.bf16.msra.mxu0 0
    %1067 = vmatprep.subr.bf16.mxu0 0
    %1068 = vmatpush1.bf16.msra.mxu0 0
    %1069 = vmatprep.subr.bf16.mxu0 0
    %1070 = vmatpush1.bf16.msra.mxu0 0
    %1071 = vmatprep.subr.bf16.mxu0 0
    %1072 = vmatpush1.bf16.msra.mxu0 0
    %1073 = vmatprep.subr.bf16.mxu0 0
    %1074 = vmatpush1.bf16.msra.mxu0 0
    %1075 = vmatprep.subr.bf16.mxu0 0
    %1076 = vmatpush1.bf16.msra.mxu0 0
    %1077 = vmatprep.subr.bf16.mxu0 0
    %1078 = vmatpush1.bf16.msra.mxu0 0
    %1079 = vmatprep.subr.bf16.mxu0 0
    %1080 = vmatpush1.bf16.msra.mxu0 0
    %1081 = vmatprep.subr.bf16.mxu0 0
    %1082 = vmatpush1.bf16.msra.mxu0 0
    %1083 = vmatprep.subr.bf16.mxu0 0
    %1084 = vmatpush1.bf16.msra.mxu0 0
    %1085 = vmatprep.subr.bf16.mxu0 0
    %1086 = vmatpush1.bf16.msra.mxu0 0
    %1087 = vmatprep.subr.bf16.mxu0 0
    %1088 = vmatpush1.bf16.msra.mxu0 0
    %1089 = vmatprep.subr.bf16.mxu0 0
    %1090 = vmatpush1.bf16.msra.mxu0 0
    %1091 = vmatprep.subr.bf16.mxu0 0
    %1092 = vmatpush1.bf16.msra.mxu0 0
    %1093 = vmatprep.mubr.bf16.mxu0 0
    %1094 = vmatmul.mubr.bf16.gmra.mrb[0].mxu0 %v1059
    %v1095 = vpop.f32.mrb[0].mxu0
    %v1096 = vadd.f32 0.0, %v1095
    %v1097 = vpop.f32.mrb[0].mxu0
    %v1098 = vpop.f32.mrb[0].mxu0
    %v1099 = vadd.f32 0.0, %v1098
    %v1100 = vpop.f32.mrb[0].mxu0
    %1101 = vdwg.mxu0
    %v1103 = vsel %vm877, %v969, 0
    %1105 = vmatprep.subr.bf16.mxu0 0
    %1106 = vmatpush1.bf16.msra.mxu0 %v671
    %1107 = vmatprep.subr.bf16.mxu0 0
    %1108 = vmatpush1.bf16.msra.mxu0 0
    %1109 = vmatprep.subr.bf16.mxu0 0
    %1110 = vmatpush1.bf16.msra.mxu0 0
    %1111 = vmatprep.subr.bf16.mxu0 0
    %1112 = vmatpush1.bf16.msra.mxu0 0
    %1113 = vmatprep.subr.bf16.mxu0 0
    %1114 = vmatpush1.bf16.msra.mxu0 0
    %1115 = vmatprep.subr.bf16.mxu0 0
    %1116 = vmatpush1.bf16.msra.mxu0 0
    %1117 = vmatprep.subr.bf16.mxu0 0
    %1118 = vmatpush1.bf16.msra.mxu0 0
    %1119 = vmatprep.subr.bf16.mxu0 0
    %1120 = vmatpush1.bf16.msra.mxu0 0
    %1121 = vmatprep.subr.bf16.mxu0 0
    %1122 = vmatpush1.bf16.msra.mxu0 0
    %1123 = vmatprep.subr.bf16.mxu0 0
    %1124 = vmatpush1.bf16.msra.mxu0 0
    %1125 = vmatprep.subr.bf16.mxu0 0
    %1126 = vmatpush1.bf16.msra.mxu0 0
    %1127 = vmatprep.subr.bf16.mxu0 0
    %1128 = vmatpush1.bf16.msra.mxu0 0
    %1129 = vmatprep.subr.bf16.mxu0 0
    %1130 = vmatpush1.bf16.msra.mxu0 0
    %1131 = vmatprep.subr.bf16.mxu0 0
    %1132 = vmatpush1.bf16.msra.mxu0 0
    %1133 = vmatprep.subr.bf16.mxu0 0
    %1134 = vmatpush1.bf16.msra.mxu0 0
    %1135 = vmatprep.subr.bf16.mxu0 0
    %1136 = vmatpush1.bf16.msra.mxu0 0
    %1137 = vmatprep.mubr.bf16.mxu0 0
    %1138 = vmatmul.mubr.bf16.gmra.mrb[0].mxu0 %v1103
    %v1139 = vpop.f32.mrb[0].mxu0
    %v1140 = vadd.f32 0.0, %v1139
    %v1141 = vpop.f32.mrb[0].mxu0
    %v1142 = vpop.f32.mrb[0].mxu0
    %v1143 = vadd.f32 0.0, %v1142
    %v1144 = vpop.f32.mrb[0].mxu0
    %1145 = vdwg.mxu0
    %1148 = vrot.lane.b32.xlu0 %v1052, 32
    %v1149 = vpop.permute.xlu0 %1148
    %1150 = vrot.lane.b32.xlu0 %v1055, 32
    %v1151 = vpop.permute.xlu0 %1150
    %1156 = vrot.lane.b32.xlu0 %v1096, 64
    %v1157 = vpop.permute.xlu0 %1156
    %1158 = vrot.lane.b32.xlu0 %v1099, 64
    %v1159 = vpop.permute.xlu0 %1158
    %1164 = vrot.lane.b32.xlu0 %v1140, 96
    %v1165 = vpop.permute.xlu0 %1164
    %1166 = vrot.lane.b32.xlu0 %v1143, 96
    %v1167 = vpop.permute.xlu0 %1166
    %v1170 = vsel %vm286, %v1008, %v1149
    %v1171 = vsel %vm286, %v1011, %v1151
    %vm1172 = vcmask 523264
    %v1173 = vsel %vm1172, %v1170, %v1157
    %v1174 = vsel %vm1172, %v1171, %v1159
    %vm1175 = vcmask 785408
    %v1176 = vsel %vm1175, %v1173, %v1165
    %v1177 = vsel %vm1175, %v1174, %v1167
    %v1178 = vpack.c.bf16 %v1177, %v1176
    %v1179 = vld [vmem:[#allocation10] sm:$0xf]
    %v1180 = vld [vmem:[#allocation10 + $0x4] sm:$0xf]
    %v1181 = vld [vmem:[#allocation10 + $0x8] sm:$0xf]
    %v1182 = vld [vmem:[#allocation10 + $0xc] sm:$0xf]
    %v1183 = vld [vmem:[#allocation10 + $0x10] sm:$0xf]
    %v1184 = vld [vmem:[#allocation10 + $0x14] sm:$0xf]
    %v1185 = vld [vmem:[#allocation10 + $0x18] sm:$0xf]
    %v1186 = vld [vmem:[#allocation10 + $0x1c] sm:$0xf]
    %v1187 = vld [vmem:[#allocation10 + $0x20] sm:$0xf]
    %v1188 = vld [vmem:[#allocation10 + $0x24] sm:$0xf]
    %v1189 = vld [vmem:[#allocation10 + $0x28] sm:$0xf]
    %v1190 = vld [vmem:[#allocation10 + $0x2c] sm:$0xf]
    %v1191 = vld [vmem:[#allocation10 + $0x30] sm:$0xf]
    %v1192 = vld [vmem:[#allocation10 + $0x34] sm:$0xf]
    %v1193 = vld [vmem:[#allocation10 + $0x38] sm:$0xf]
    %v1194 = vld [vmem:[#allocation10 + $0x3c] sm:$0xf]
    %v1211 = vunpack.c.l.b16 %v1179
    %v1212 = vunpack.c.l.b16 %v1180
    %v1213 = vunpack.c.l.b16 %v1181
    %v1214 = vunpack.c.l.b16 %v1182
    %v1215 = vunpack.c.l.b16 %v1183
    %v1216 = vunpack.c.l.b16 %v1184
    %v1217 = vunpack.c.l.b16 %v1185
    %v1218 = vunpack.c.l.b16 %v1186
    %v1219 = vunpack.c.l.b16 %v1187
    %v1220 = vunpack.c.l.b16 %v1188
    %v1221 = vunpack.c.l.b16 %v1189
    %v1222 = vunpack.c.l.b16 %v1190
    %v1223 = vunpack.c.l.b16 %v1191
    %v1224 = vunpack.c.l.b16 %v1192
    %v1225 = vunpack.c.l.b16 %v1193
    %v1226 = vunpack.c.l.b16 %v1194
    %v1227 = vpack.c.b16 %v1212, %v1211
    %v1228 = vpack.c.b16 %v1214, %v1213
    %v1229 = vpack.c.b16 %v1216, %v1215
    %v1230 = vpack.c.b16 %v1218, %v1217
    %v1231 = vpack.c.b16 %v1220, %v1219
    %v1232 = vpack.c.b16 %v1222, %v1221
    %v1233 = vpack.c.b16 %v1224, %v1223
    %v1234 = vpack.c.b16 %v1226, %v1225
    %1243 = vmatprep.subr.bf16.mxu0 0
    %1244 = vmatpush1.bf16.msra.mxu0 %v1227
    %1245 = vmatprep.subr.bf16.mxu0 0
    %1246 = vmatpush1.bf16.msra.mxu0 %v1228
    %1247 = vmatprep.subr.bf16.mxu0 0
    %1248 = vmatpush1.bf16.msra.mxu0 %v1229
    %1249 = vmatprep.subr.bf16.mxu0 0
    %1250 = vmatpush1.bf16.msra.mxu0 %v1230
    %1251 = vmatprep.subr.bf16.mxu0 0
    %1252 = vmatpush1.bf16.msra.mxu0 %v1231
    %1253 = vmatprep.subr.bf16.mxu0 0
    %1254 = vmatpush1.bf16.msra.mxu0 %v1232
    %1255 = vmatprep.subr.bf16.mxu0 0
    %1256 = vmatpush1.bf16.msra.mxu0 %v1233
    %1257 = vmatprep.subr.bf16.mxu0 0
    %1258 = vmatpush1.bf16.msra.mxu0 %v1234
    %1259 = vmatprep.subr.bf16.mxu0 0
    %1260 = vmatpush1.bf16.msra.mxu0 0
    %1261 = vmatprep.subr.bf16.mxu0 0
    %1262 = vmatpush1.bf16.msra.mxu0 0
    %1263 = vmatprep.subr.bf16.mxu0 0
    %1264 = vmatpush1.bf16.msra.mxu0 0
    %1265 = vmatprep.subr.bf16.mxu0 0
    %1266 = vmatpush1.bf16.msra.mxu0 0
    %1267 = vmatprep.subr.bf16.mxu0 0
    %1268 = vmatpush1.bf16.msra.mxu0 0
    %1269 = vmatprep.subr.bf16.mxu0 0
    %1270 = vmatpush1.bf16.msra.mxu0 0
    %1271 = vmatprep.subr.bf16.mxu0 0
    %1272 = vmatpush1.bf16.msra.mxu0 0
    %1273 = vmatprep.subr.bf16.mxu0 0
    %1274 = vmatpush1.bf16.msra.mxu0 0
    %1275 = vmatprep.mubr.bf16.mxu0 0
    %1276 = vmatmul.mubr.bf16.gmra.mrb[0].mxu0 %v1178
    %v1277 = vpop.f32.mrb[0].mxu0
    %v1278 = vadd.f32 0.0, %v1277
    %v1279 = vpop.f32.mrb[0].mxu0
    %v1280 = vpop.f32.mrb[0].mxu0
    %v1281 = vadd.f32 0.0, %v1280
    %v1282 = vpop.f32.mrb[0].mxu0
    %1283 = vdwg.mxu0
    %v1284 = vadd.f32 %v335, %v1278
    %v1285 = vadd.f32 %v336, %v1281
    %v1286 = vld [vmem:[#allocation11] sm:$0x1]
    %v1288 = vlaneseq
    %v1289 = vshrl.u32 %v1288, 7
    %v1290 = vsub.s32 0, %v1289
    %v1291 = vrot.slane %v1286, %v1290
    %v1293 = vadd.f32 %v1284, %v1291
    %v1294 = vadd.f32 %v1285, %v1291
    %v1295 = vld [vmem:[#allocation16] sm:$0x1]
    %v1296 = vld [vmem:[#allocation17] sm:$0x1]
    %1297 = vadd.xlane.f32.xlu0 %v1293
    %v1298 = vpop.xlane.xlu0 %1297
    %1299 = vadd.xlane.f32.xlu0 %v1294
    %v1300 = vpop.xlane.xlu0 %1299
    %v1301 = vmul.f32 %v1298, %v345
    %v1302 = vmul.f32 %v1300, %v345
    %v1303 = vmul.f32 %v1293, %v1293
    %v1304 = vmul.f32 %v1294, %v1294
    %1305 = vadd.xlane.f32.xlu0 %v1303
    %v1306 = vpop.xlane.xlu0 %1305
    %1307 = vadd.xlane.f32.xlu0 %v1304
    %v1308 = vpop.xlane.xlu0 %1307
    %v1309 = vmul.f32 %v1306, %v345
    %v1310 = vmul.f32 %v1308, %v345
    %v1311 = vmul.f32 %v1301, %v1301
    %v1312 = vmul.f32 %v1302, %v1302
    %v1313 = vsub.f32 %v1309, %v1311
    %v1314 = vsub.f32 %v1310, %v1312
    %v1315 = vsub.f32 %v1293, %v1301
    %v1316 = vsub.f32 %v1294, %v1302
    %v1317 = vadd.f32 %v1313, 1e-05
    %v1318 = vadd.f32 %v1314, 1e-05
    %v1319 = vrsqrt.pop %v1317
    %v1320 = vrsqrt.pop %v1318
    %v1321 = vmul.f32 %v1315, %v1319
    %v1322 = vmul.f32 %v1316, %v1320
    %v1324 = vlaneseq
    %v1325 = vshrl.u32 %v1324, 7
    %v1326 = vsub.s32 0, %v1325
    %v1327 = vrot.slane %v1295, %v1326
    %v1329 = vmul.f32 %v1321, %v1327
    %v1330 = vmul.f32 %v1322, %v1327
    %v1332 = vlaneseq
    %v1333 = vshrl.u32 %v1332, 7
    %v1334 = vsub.s32 0, %v1333
    %v1335 = vrot.slane %v1296, %v1334
    %v1337 = vadd.f32 %v1329, %v1335
    %v1338 = vadd.f32 %v1330, %v1335
    %v1339 = vpack.c.bf16 %v1338, %v1337
    %v1340 = vld [vmem:[#allocation19] sm:$0xff]
    %v1341 = vld [vmem:[#allocation19 + $0x8] sm:$0xff]
    %v1342 = vld [vmem:[#allocation19 + $0x10] sm:$0xff]
    %v1343 = vld [vmem:[#allocation19 + $0x18] sm:$0xff]
    %v1344 = vld [vmem:[#allocation19 + $0x20] sm:$0xff]
    %v1345 = vld [vmem:[#allocation19 + $0x28] sm:$0xff]
    %v1346 = vld [vmem:[#allocation19 + $0x30] sm:$0xff]
    %v1347 = vld [vmem:[#allocation19 + $0x38] sm:$0xff]
    %v1348 = vld [vmem:[#allocation19 + $0x40] sm:$0xff]
    %v1349 = vld [vmem:[#allocation19 + $0x48] sm:$0xff]
    %v1350 = vld [vmem:[#allocation19 + $0x50] sm:$0xff]
    %v1351 = vld [vmem:[#allocation19 + $0x58] sm:$0xff]
    %v1352 = vld [vmem:[#allocation19 + $0x60] sm:$0xff]
    %v1353 = vld [vmem:[#allocation19 + $0x68] sm:$0xff]
    %v1354 = vld [vmem:[#allocation19 + $0x70] sm:$0xff]
    %v1355 = vld [vmem:[#allocation19 + $0x78] sm:$0xff]
    %v1356 = vld [vmem:[%s13] sm:$0x3]
    %v1358 = vlaneseq
    %v1359 = vshrl.u32 %v1358, 7
    %v1360 = vsub.s32 0, %v1359
    %v1361 = vrot.slane %v1356, %v1360
    %v1362 = vlaneseq
    %v1363 = vshrl.u32 %v1362, 7
    %v1364 = vsub.s32 1, %v1363
    %v1365 = vrot.slane %v1356, %v1364
    %v1384 = vunpack.c.l.b16 %v1340
    %v1385 = vunpack.c.h.b16 %v1340
    %v1386 = vunpack.c.l.b16 %v1341
    %v1387 = vunpack.c.h.b16 %v1341
    %v1388 = vunpack.c.l.b16 %v1342
    %v1389 = vunpack.c.h.b16 %v1342
    %v1390 = vunpack.c.l.b16 %v1343
    %v1391 = vunpack.c.h.b16 %v1343
    %v1392 = vunpack.c.l.b16 %v1344
    %v1393 = vunpack.c.h.b16 %v1344
    %v1394 = vunpack.c.l.b16 %v1345
    %v1395 = vunpack.c.h.b16 %v1345
    %v1396 = vunpack.c.l.b16 %v1346
    %v1397 = vunpack.c.h.b16 %v1346
    %v1398 = vunpack.c.l.b16 %v1347
    %v1399 = vunpack.c.h.b16 %v1347
    %v1400 = vunpack.c.l.b16 %v1348
    %v1401 = vunpack.c.h.b16 %v1348
    %v1402 = vunpack.c.l.b16 %v1349
    %v1403 = vunpack.c.h.b16 %v1349
    %v1404 = vunpack.c.l.b16 %v1350
    %v1405 = vunpack.c.h.b16 %v1350
    %v1406 = vunpack.c.l.b16 %v1351
    %v1407 = vunpack.c.h.b16 %v1351
    %v1408 = vunpack.c.l.b16 %v1352
    %v1409 = vunpack.c.h.b16 %v1352
    %v1410 = vunpack.c.l.b16 %v1353
    %v1411 = vunpack.c.h.b16 %v1353
    %v1412 = vunpack.c.l.b16 %v1354
    %v1413 = vunpack.c.h.b16 %v1354
    %v1414 = vunpack.c.l.b16 %v1355
    %v1415 = vunpack.c.h.b16 %v1355
    %v1416 = vpack.c.b16 %v1386, %v1384
    %v1417 = vpack.c.b16 %v1387, %v1385
    %v1418 = vpack.c.b16 %v1390, %v1388
    %v1419 = vpack.c.b16 %v1391, %v1389
    %v1420 = vpack.c.b16 %v1394, %v1392
    %v1421 = vpack.c.b16 %v1395, %v1393
    %v1422 = vpack.c.b16 %v1398, %v1396
    %v1423 = vpack.c.b16 %v1399, %v1397
    %v1424 = vpack.c.b16 %v1402, %v1400
    %v1425 = vpack.c.b16 %v1403, %v1401
    %v1426 = vpack.c.b16 %v1406, %v1404
    %v1427 = vpack.c.b16 %v1407, %v1405
    %v1428 = vpack.c.b16 %v1410, %v1408
    %v1429 = vpack.c.b16 %v1411, %v1409
    %v1430 = vpack.c.b16 %v1414, %v1412
    %v1431 = vpack.c.b16 %v1415, %v1413
    %1448 = vmatprep.subr.bf16.mxu0 %v1417
    %1449 = vmatpush1.bf16.msra.mxu0 %v1416
    %1450 = vmatprep.subr.bf16.mxu0 %v1419
    %1451 = vmatpush1.bf16.msra.mxu0 %v1418
    %1452 = vmatprep.subr.bf16.mxu0 %v1421
    %1453 = vmatpush1.bf16.msra.mxu0 %v1420
    %1454 = vmatprep.subr.bf16.mxu0 %v1423
    %1455 = vmatpush1.bf16.msra.mxu0 %v1422
    %1456 = vmatprep.subr.bf16.mxu0 %v1425
    %1457 = vmatpush1.bf16.msra.mxu0 %v1424
    %1458 = vmatprep.subr.bf16.mxu0 %v1427
    %1459 = vmatpush1.bf16.msra.mxu0 %v1426
    %1460 = vmatprep.subr.bf16.mxu0 %v1429
    %1461 = vmatpush1.bf16.msra.mxu0 %v1428
    %1462 = vmatprep.subr.bf16.mxu0 %v1431
    %1463 = vmatpush1.bf16.msra.mxu0 %v1430
    %1464 = vmatprep.subr.bf16.mxu0 0
    %1465 = vmatpush1.bf16.msra.mxu0 0
    %1466 = vmatprep.subr.bf16.mxu0 0
    %1467 = vmatpush1.bf16.msra.mxu0 0
    %1468 = vmatprep.subr.bf16.mxu0 0
    %1469 = vmatpush1.bf16.msra.mxu0 0
    %1470 = vmatprep.subr.bf16.mxu0 0
    %1471 = vmatpush1.bf16.msra.mxu0 0
    %1472 = vmatprep.subr.bf16.mxu0 0
    %1473 = vmatpush1.bf16.msra.mxu0 0
    %1474 = vmatprep.subr.bf16.mxu0 0
    %1475 = vmatpush1.bf16.msra.mxu0 0
    %1476 = vmatprep.subr.bf16.mxu0 0
    %1477 = vmatpush1.bf16.msra.mxu0 0
    %1478 = vmatprep.subr.bf16.mxu0 0
    %1479 = vmatpush1.bf16.msra.mxu0 0
    %1480 = vmatprep.mubr.bf16.mxu0 0
    %1481 = vmatmul.mubr.bf16.gmra.mrb[0].mxu0 %v1339
    %v1482 = vpop.f32.mrb[0].mxu0
    %v1483 = vadd.f32 %v1361, %v1482
    %v1484 = vpop.f32.mrb[0].mxu0
    %v1485 = vadd.f32 %v1365, %v1484
    %v1486 = vpop.f32.mrb[0].mxu0
    %v1487 = vadd.f32 %v1361, %v1486
    %v1488 = vpop.f32.mrb[0].mxu0
    %v1489 = vadd.f32 %v1365, %v1488
    %1490 = vdwg.mxu0
    %v1491 = vmax.f32 %v1483, 0.0
    %v1492 = vmax.f32 %v1485, 0.0
    %v1493 = vmax.f32 %v1487, 0.0
    %v1494 = vmax.f32 %v1489, 0.0
    %v1495 = vpack.c.bf16 %v1493, %v1491
    %v1496 = vpack.c.bf16 %v1494, %v1492
    %v1497 = vld [vmem:[#allocation20] sm:$0xf]
    %v1498 = vld [vmem:[#allocation20 + $0x4] sm:$0xf]
    %v1499 = vld [vmem:[#allocation20 + $0x8] sm:$0xf]
    %v1500 = vld [vmem:[#allocation20 + $0xc] sm:$0xf]
    %v1501 = vld [vmem:[#allocation20 + $0x10] sm:$0xf]
    %v1502 = vld [vmem:[#allocation20 + $0x14] sm:$0xf]
    %v1503 = vld [vmem:[#allocation20 + $0x18] sm:$0xf]
    %v1504 = vld [vmem:[#allocation20 + $0x1c] sm:$0xf]
    %v1505 = vld [vmem:[#allocation20 + $0x20] sm:$0xf]
    %v1506 = vld [vmem:[#allocation20 + $0x24] sm:$0xf]
    %v1507 = vld [vmem:[#allocation20 + $0x28] sm:$0xf]
    %v1508 = vld [vmem:[#allocation20 + $0x2c] sm:$0xf]
    %v1509 = vld [vmem:[#allocation20 + $0x30] sm:$0xf]
    %v1510 = vld [vmem:[#allocation20 + $0x34] sm:$0xf]
    %v1511 = vld [vmem:[#allocation20 + $0x38] sm:$0xf]
    %v1512 = vld [vmem:[#allocation20 + $0x3c] sm:$0xf]
    %v1513 = vld [vmem:[#allocation20 + $0x40] sm:$0xf]
    %v1514 = vld [vmem:[#allocation20 + $0x44] sm:$0xf]
    %v1515 = vld [vmem:[#allocation20 + $0x48] sm:$0xf]
    %v1516 = vld [vmem:[#allocation20 + $0x4c] sm:$0xf]
    %v1517 = vld [vmem:[#allocation20 + $0x50] sm:$0xf]
    %v1518 = vld [vmem:[#allocation20 + $0x54] sm:$0xf]
    %v1519 = vld [vmem:[#allocation20 + $0x58] sm:$0xf]
    %v1520 = vld [vmem:[#allocation20 + $0x5c] sm:$0xf]
    %v1521 = vld [vmem:[#allocation20 + $0x60] sm:$0xf]
    %v1522 = vld [vmem:[#allocation20 + $0x64] sm:$0xf]
    %v1523 = vld [vmem:[#allocation20 + $0x68] sm:$0xf]
    %v1524 = vld [vmem:[#allocation20 + $0x6c] sm:$0xf]
    %v1525 = vld [vmem:[#allocation20 + $0x70] sm:$0xf]
    %v1526 = vld [vmem:[#allocation20 + $0x74] sm:$0xf]
    %v1527 = vld [vmem:[#allocation20 + $0x78] sm:$0xf]
    %v1528 = vld [vmem:[#allocation20 + $0x7c] sm:$0xf]
    %v1561 = vunpack.c.l.b16 %v1497
    %v1562 = vunpack.c.l.b16 %v1498
    %v1563 = vunpack.c.l.b16 %v1499
    %v1564 = vunpack.c.l.b16 %v1500
    %v1565 = vunpack.c.l.b16 %v1501
    %v1566 = vunpack.c.l.b16 %v1502
    %v1567 = vunpack.c.l.b16 %v1503
    %v1568 = vunpack.c.l.b16 %v1504
    %v1569 = vunpack.c.l.b16 %v1505
    %v1570 = vunpack.c.l.b16 %v1506
    %v1571 = vunpack.c.l.b16 %v1507
    %v1572 = vunpack.c.l.b16 %v1508
    %v1573 = vunpack.c.l.b16 %v1509
    %v1574 = vunpack.c.l.b16 %v1510
    %v1575 = vunpack.c.l.b16 %v1511
    %v1576 = vunpack.c.l.b16 %v1512
    %v1577 = vunpack.c.l.b16 %v1513
    %v1578 = vunpack.c.l.b16 %v1514
    %v1579 = vunpack.c.l.b16 %v1515
    %v1580 = vunpack.c.l.b16 %v1516
    %v1581 = vunpack.c.l.b16 %v1517
    %v1582 = vunpack.c.l.b16 %v1518
    %v1583 = vunpack.c.l.b16 %v1519
    %v1584 = vunpack.c.l.b16 %v1520
    %v1585 = vunpack.c.l.b16 %v1521
    %v1586 = vunpack.c.l.b16 %v1522
    %v1587 = vunpack.c.l.b16 %v1523
    %v1588 = vunpack.c.l.b16 %v1524
    %v1589 = vunpack.c.l.b16 %v1525
    %v1590 = vunpack.c.l.b16 %v1526
    %v1591 = vunpack.c.l.b16 %v1527
    %v1592 = vunpack.c.l.b16 %v1528
    %v1593 = vpack.c.b16 %v1562, %v1561
    %v1594 = vpack.c.b16 %v1564, %v1563
    %v1595 = vpack.c.b16 %v1566, %v1565
    %v1596 = vpack.c.b16 %v1568, %v1567
    %v1597 = vpack.c.b16 %v1570, %v1569
    %v1598 = vpack.c.b16 %v1572, %v1571
    %v1599 = vpack.c.b16 %v1574, %v1573
    %v1600 = vpack.c.b16 %v1576, %v1575
    %v1601 = vpack.c.b16 %v1578, %v1577
    %v1602 = vpack.c.b16 %v1580, %v1579
    %v1603 = vpack.c.b16 %v1582, %v1581
    %v1604 = vpack.c.b16 %v1584, %v1583
    %v1605 = vpack.c.b16 %v1586, %v1585
    %v1606 = vpack.c.b16 %v1588, %v1587
    %v1607 = vpack.c.b16 %v1590, %v1589
    %v1608 = vpack.c.b16 %v1592, %v1591
    %1625 = vmatprep.subr.bf16.mxu0 0
    %1626 = vmatpush1.bf16.msra.mxu0 %v1593
    %1627 = vmatprep.subr.bf16.mxu0 0
    %1628 = vmatpush1.bf16.msra.mxu0 %v1594
    %1629 = vmatprep.subr.bf16.mxu0 0
    %1630 = vmatpush1.bf16.msra.mxu0 %v1595
    %1631 = vmatprep.subr.bf16.mxu0 0
    %1632 = vmatpush1.bf16.msra.mxu0 %v1596
    %1633 = vmatprep.subr.bf16.mxu0 0
    %1634 = vmatpush1.bf16.msra.mxu0 %v1597
    %1635 = vmatprep.subr.bf16.mxu0 0
    %1636 = vmatpush1.bf16.msra.mxu0 %v1598
    %1637 = vmatprep.subr.bf16.mxu0 0
    %1638 = vmatpush1.bf16.msra.mxu0 %v1599
    %1639 = vmatprep.subr.bf16.mxu0 0
    %1640 = vmatpush1.bf16.msra.mxu0 %v1600
    %1641 = vmatprep.subr.bf16.mxu0 0
    %1642 = vmatpush1.bf16.msra.mxu0 %v1601
    %1643 = vmatprep.subr.bf16.mxu0 0
    %1644 = vmatpush1.bf16.msra.mxu0 %v1602
    %1645 = vmatprep.subr.bf16.mxu0 0
    %1646 = vmatpush1.bf16.msra.mxu0 %v1603
    %1647 = vmatprep.subr.bf16.mxu0 0
    %1648 = vmatpush1.bf16.msra.mxu0 %v1604
    %1649 = vmatprep.subr.bf16.mxu0 0
    %1650 = vmatpush1.bf16.msra.mxu0 %v1605
    %1651 = vmatprep.subr.bf16.mxu0 0
    %1652 = vmatpush1.bf16.msra.mxu0 %v1606
    %1653 = vmatprep.subr.bf16.mxu0 0
    %1654 = vmatpush1.bf16.msra.mxu0 %v1607
    %1655 = vmatprep.subr.bf16.mxu0 0
    %1656 = vmatpush1.bf16.msra.mxu0 %v1608
    %1657 = vmatprep.mubr.bf16.mxu0 %v1496
    %1658 = vmatmul.mubr.bf16.gmra.mrb[0].mxu0 %v1495
    %v1659 = vpop.f32.mrb[0].mxu0
    %v1660 = vadd.f32 0.0, %v1659
    %v1661 = vpop.f32.mrb[0].mxu0
    %v1662 = vpop.f32.mrb[0].mxu0
    %v1663 = vadd.f32 0.0, %v1662
    %v1664 = vpop.f32.mrb[0].mxu0
    %1665 = vdwg.mxu0
    %v1666 = vadd.f32 %v1293, %v1660
    %v1667 = vadd.f32 %v1294, %v1663
    %v1668 = vld [vmem:[#allocation22] sm:$0x1]
    %v1670 = vlaneseq
    %v1671 = vshrl.u32 %v1670, 7
    %v1672 = vsub.s32 0, %v1671
    %v1673 = vrot.slane %v1668, %v1672
    %v1675 = vadd.f32 %v1666, %v1673
    %v1676 = vadd.f32 %v1667, %v1673
    %s1677 = scalar_lea.vmem [#allocation13], 1
    %v1678 = vld [vmem:[%s1677] sm:$0x1]
    %s1679 = scalar_lea.vmem [#allocation14], 1
    %v1680 = vld [vmem:[%s1679] sm:$0x1]
    %1681 = vadd.xlane.f32.xlu0 %v1675
    %v1682 = vpop.xlane.xlu0 %1681
    %1683 = vadd.xlane.f32.xlu0 %v1676
    %v1684 = vpop.xlane.xlu0 %1683
    %v1685 = vmul.f32 %v1682, %v345
    %v1686 = vmul.f32 %v1684, %v345
    %v1687 = vmul.f32 %v1675, %v1675
    %v1688 = vmul.f32 %v1676, %v1676
    %1689 = vadd.xlane.f32.xlu0 %v1687
    %v1690 = vpop.xlane.xlu0 %1689
    %1691 = vadd.xlane.f32.xlu0 %v1688
    %v1692 = vpop.xlane.xlu0 %1691
    %v1693 = vmul.f32 %v1690, %v345
    %v1694 = vmul.f32 %v1692, %v345
    %v1695 = vmul.f32 %v1685, %v1685
    %v1696 = vmul.f32 %v1686, %v1686
    %v1697 = vsub.f32 %v1693, %v1695
    %v1698 = vsub.f32 %v1694, %v1696
    %v1699 = vsub.f32 %v1675, %v1685
    %v1700 = vsub.f32 %v1676, %v1686
    %v1701 = vadd.f32 %v1697, 1e-05
    %v1702 = vadd.f32 %v1698, 1e-05
    %v1703 = vrsqrt.pop %v1701
    %v1704 = vrsqrt.pop %v1702
    %v1705 = vmul.f32 %v1699, %v1703
    %v1706 = vmul.f32 %v1700, %v1704
    %v1708 = vlaneseq
    %v1709 = vshrl.u32 %v1708, 7
    %v1710 = vsub.s32 0, %v1709
    %v1711 = vrot.slane %v1678, %v1710
    %v1713 = vmul.f32 %v1705, %v1711
    %v1714 = vmul.f32 %v1706, %v1711
    %v1716 = vlaneseq
    %v1717 = vshrl.u32 %v1716, 7
    %v1718 = vsub.s32 0, %v1717
    %v1719 = vrot.slane %v1680, %v1718
    %v1721 = vadd.f32 %v1713, %v1719
    %v1722 = vadd.f32 %v1714, %v1719
    %v1723 = vpack.c.bf16 %v1722, %v1721
    %s1724 = scalar_lea.vmem [#allocation7], 192
    %v1725 = vld [vmem:[%s1724] sm:$0xff]
    %v1726 = vld [vmem:[%s1724 + $0x8] sm:$0xf]
    %v1727 = vld [vmem:[%s1724 + $0xc] sm:$0xff]
    %v1728 = vld [vmem:[%s1724 + $0x14] sm:$0xf]
    %v1729 = vld [vmem:[%s1724 + $0x18] sm:$0xff]
    %v1730 = vld [vmem:[%s1724 + $0x20] sm:$0xf]
    %v1731 = vld [vmem:[%s1724 + $0x24] sm:$0xff]
    %v1732 = vld [vmem:[%s1724 + $0x2c] sm:$0xf]
    %v1733 = vld [vmem:[%s1724 + $0x30] sm:$0xff]
    %v1734 = vld [vmem:[%s1724 + $0x38] sm:$0xf]
    %v1735 = vld [vmem:[%s1724 + $0x3c] sm:$0xff]
    %v1736 = vld [vmem:[%s1724 + $0x44] sm:$0xf]
    %v1737 = vld [vmem:[%s1724 + $0x48] sm:$0xff]
    %v1738 = vld [vmem:[%s1724 + $0x50] sm:$0xf]
    %v1739 = vld [vmem:[%s1724 + $0x54] sm:$0xff]
    %v1740 = vld [vmem:[%s1724 + $0x5c] sm:$0xf]
    %v1741 = vld [vmem:[%s1724 + $0x60] sm:$0xff]
    %v1742 = vld [vmem:[%s1724 + $0x68] sm:$0xf]
    %v1743 = vld [vmem:[%s1724 + $0x6c] sm:$0xff]
    %v1744 = vld [vmem:[%s1724 + $0x74] sm:$0xf]
    %v1745 = vld [vmem:[%s1724 + $0x78] sm:$0xff]
    %v1746 = vld [vmem:[%s1724 + $0x80] sm:$0xf]
    %v1747 = vld [vmem:[%s1724 + $0x84] sm:$0xff]
    %v1748 = vld [vmem:[%s1724 + $0x8c] sm:$0xf]
    %v1749 = vld [vmem:[%s1724 + $0x90] sm:$0xff]
    %v1750 = vld [vmem:[%s1724 + $0x98] sm:$0xf]
    %v1751 = vld [vmem:[%s1724 + $0x9c] sm:$0xff]
    %v1752 = vld [vmem:[%s1724 + $0xa4] sm:$0xf]
    %v1753 = vld [vmem:[%s1724 + $0xa8] sm:$0xff]
    %v1754 = vld [vmem:[%s1724 + $0xb0] sm:$0xf]
    %v1755 = vld [vmem:[%s1724 + $0xb4] sm:$0xff]
    %v1756 = vld [vmem:[%s1724 + $0xbc] sm:$0xf]
    %s1757 = scalar_lea.vmem [#allocation8], 3
    %v1758 = vld [vmem:[%s1757] sm:$0x7]
    %v1760 = vlaneseq
    %v1761 = vshrl.u32 %v1760, 7
    %v1762 = vsub.s32 0, %v1761
    %v1763 = vrot.slane %v1758, %v1762
    %v1764 = vlaneseq
    %v1765 = vshrl.u32 %v1764, 7
    %v1766 = vsub.s32 1, %v1765
    %v1767 = vrot.slane %v1758, %v1766
    %v1768 = vlaneseq
    %v1769 = vshrl.u32 %v1768, 7
    %v1770 = vsub.s32 2, %v1769
    %v1771 = vrot.slane %v1758, %v1770
    %v1807 = vunpack.c.l.b16 %v1725
    %v1808 = vunpack.c.h.b16 %v1725
    %v1809 = vunpack.c.l.b16 %v1726
    %v1810 = vunpack.c.l.b16 %v1727
    %v1811 = vunpack.c.h.b16 %v1727
    %v1812 = vunpack.c.l.b16 %v1728
    %v1813 = vunpack.c.l.b16 %v1729
    %v1814 = vunpack.c.h.b16 %v1729
    %v1815 = vunpack.c.l.b16 %v1730
    %v1816 = vunpack.c.l.b16 %v1731
    %v1817 = vunpack.c.h.b16 %v1731
    %v1818 = vunpack.c.l.b16 %v1732
    %v1819 = vunpack.c.l.b16 %v1733
    %v1820 = vunpack.c.h.b16 %v1733
    %v1821 = vunpack.c.l.b16 %v1734
    %v1822 = vunpack.c.l.b16 %v1735
    %v1823 = vunpack.c.h.b16 %v1735
    %v1824 = vunpack.c.l.b16 %v1736
    %v1825 = vunpack.c.l.b16 %v1737
    %v1826 = vunpack.c.h.b16 %v1737
    %v1827 = vunpack.c.l.b16 %v1738
    %v1828 = vunpack.c.l.b16 %v1739
    %v1829 = vunpack.c.h.b16 %v1739
    %v1830 = vunpack.c.l.b16 %v1740
    %v1831 = vunpack.c.l.b16 %v1741
    %v1832 = vunpack.c.h.b16 %v1741
    %v1833 = vunpack.c.l.b16 %v1742
    %v1834 = vunpack.c.l.b16 %v1743
    %v1835 = vunpack.c.h.b16 %v1743
    %v1836 = vunpack.c.l.b16 %v1744
    %v1837 = vunpack.c.l.b16 %v1745
    %v1838 = vunpack.c.h.b16 %v1745
    %v1839 = vunpack.c.l.b16 %v1746
    %v1840 = vunpack.c.l.b16 %v1747
    %v1841 = vunpack.c.h.b16 %v1747
    %v1842 = vunpack.c.l.b16 %v1748
    %v1843 = vunpack.c.l.b16 %v1749
    %v1844 = vunpack.c.h.b16 %v1749
    %v1845 = vunpack.c.l.b16 %v1750
    %v1846 = vunpack.c.l.b16 %v1751
    %v1847 = vunpack.c.h.b16 %v1751
    %v1848 = vunpack.c.l.b16 %v1752
    %v1849 = vunpack.c.l.b16 %v1753
    %v1850 = vunpack.c.h.b16 %v1753
    %v1851 = vunpack.c.l.b16 %v1754
    %v1852 = vunpack.c.l.b16 %v1755
    %v1853 = vunpack.c.h.b16 %v1755
    %v1854 = vunpack.c.l.b16 %v1756
    %v1855 = vpack.c.b16 %v1810, %v1807
    %v1856 = vpack.c.b16 %v1811, %v1808
    %v1857 = vpack.c.b16 %v1812, %v1809
    %v1858 = vpack.c.b16 %v1816, %v1813
    %v1859 = vpack.c.b16 %v1817, %v1814
    %v1860 = vpack.c.b16 %v1818, %v1815
    %v1861 = vpack.c.b16 %v1822, %v1819
    %v1862 = vpack.c.b16 %v1823, %v1820
    %v1863 = vpack.c.b16 %v1824, %v1821
    %v1864 = vpack.c.b16 %v1828, %v1825
    %v1865 = vpack.c.b16 %v1829, %v1826
    %v1866 = vpack.c.b16 %v1830, %v1827
    %v1867 = vpack.c.b16 %v1834, %v1831
    %v1868 = vpack.c.b16 %v1835, %v1832
    %v1869 = vpack.c.b16 %v1836, %v1833
    %v1870 = vpack.c.b16 %v1840, %v1837
    %v1871 = vpack.c.b16 %v1841, %v1838
    %v1872 = vpack.c.b16 %v1842, %v1839
    %v1873 = vpack.c.b16 %v1846, %v1843
    %v1874 = vpack.c.b16 %v1847, %v1844
    %v1875 = vpack.c.b16 %v1848, %v1845
    %v1876 = vpack.c.b16 %v1852, %v1849
    %v1877 = vpack.c.b16 %v1853, %v1850
    %v1878 = vpack.c.b16 %v1854, %v1851
    %1903 = vmatprep.subr.bf16.mxu0 %v1856
    %1904 = vmatpush1.bf16.msra.mxu0 %v1855
    %1905 = vmatprep.subr.bf16.mxu0 %v1859
    %1906 = vmatpush1.bf16.msra.mxu0 %v1858
    %1907 = vmatprep.subr.bf16.mxu0 %v1862
    %1908 = vmatpush1.bf16.msra.mxu0 %v1861
    %1909 = vmatprep.subr.bf16.mxu0 %v1865
    %1910 = vmatpush1.bf16.msra.mxu0 %v1864
    %1911 = vmatprep.subr.bf16.mxu0 %v1868
    %1912 = vmatpush1.bf16.msra.mxu0 %v1867
    %1913 = vmatprep.subr.bf16.mxu0 %v1871
    %1914 = vmatpush1.bf16.msra.mxu0 %v1870
    %1915 = vmatprep.subr.bf16.mxu0 %v1874
    %1916 = vmatpush1.bf16.msra.mxu0 %v1873
    %1917 = vmatprep.subr.bf16.mxu0 %v1877
    %1918 = vmatpush1.bf16.msra.mxu0 %v1876
    %1919 = vmatprep.subr.bf16.mxu0 0
    %1920 = vmatpush1.bf16.msra.mxu0 0
    %1921 = vmatprep.subr.bf16.mxu0 0
    %1922 = vmatpush1.bf16.msra.mxu0 0
    %1923 = vmatprep.subr.bf16.mxu0 0
    %1924 = vmatpush1.bf16.msra.mxu0 0
    %1925 = vmatprep.subr.bf16.mxu0 0
    %1926 = vmatpush1.bf16.msra.mxu0 0
    %1927 = vmatprep.subr.bf16.mxu0 0
    %1928 = vmatpush1.bf16.msra.mxu0 0
    %1929 = vmatprep.subr.bf16.mxu0 0
    %1930 = vmatpush1.bf16.msra.mxu0 0
    %1931 = vmatprep.subr.bf16.mxu0 0
    %1932 = vmatpush1.bf16.msra.mxu0 0
    %1933 = vmatprep.subr.bf16.mxu0 0
    %1934 = vmatpush1.bf16.msra.mxu0 0
    %1935 = vmatprep.mubr.bf16.mxu0 0
    %1936 = vmatmul.mubr.bf16.gmra.mrb[0].mxu0 %v1723
    %v1937 = vpop.f32.mrb[0].mxu0
    %v1938 = vadd.f32 %v1763, %v1937
    %v1939 = vpop.f32.mrb[0].mxu0
    %v1940 = vadd.f32 %v1767, %v1939
    %v1941 = vpop.f32.mrb[0].mxu0
    %v1942 = vadd.f32 %v1763, %v1941
    %v1943 = vpop.f32.mrb[0].mxu0
    %v1944 = vadd.f32 %v1767, %v1943
    %1945 = vdwg.mxu0
    %1946 = vmatprep.subr.bf16.mxu0 0
    %1947 = vmatpush1.bf16.msra.mxu0 %v1857
    %1948 = vmatprep.subr.bf16.mxu0 0
    %1949 = vmatpush1.bf16.msra.mxu0 %v1860
    %1950 = vmatprep.subr.bf16.mxu0 0
    %1951 = vmatpush1.bf16.msra.mxu0 %v1863
    %1952 = vmatprep.subr.bf16.mxu0 0
    %1953 = vmatpush1.bf16.msra.mxu0 %v1866
    %1954 = vmatprep.subr.bf16.mxu0 0
    %1955 = vmatpush1.bf16.msra.mxu0 %v1869
    %1956 = vmatprep.subr.bf16.mxu0 0
    %1957 = vmatpush1.bf16.msra.mxu0 %v1872
    %1958 = vmatprep.subr.bf16.mxu0 0
    %1959 = vmatpush1.bf16.msra.mxu0 %v1875
    %1960 = vmatprep.subr.bf16.mxu0 0
    %1961 = vmatpush1.bf16.msra.mxu0 %v1878
    %1962 = vmatprep.subr.bf16.mxu0 0
    %1963 = vmatpush1.bf16.msra.mxu0 0
    %1964 = vmatprep.subr.bf16.mxu0 0
    %1965 = vmatpush1.bf16.msra.mxu0 0
    %1966 = vmatprep.subr.bf16.mxu0 0
    %1967 = vmatpush1.bf16.msra.mxu0 0
    %1968 = vmatprep.subr.bf16.mxu0 0
    %1969 = vmatpush1.bf16.msra.mxu0 0
    %1970 = vmatprep.subr.bf16.mxu0 0
    %1971 = vmatpush1.bf16.msra.mxu0 0
    %1972 = vmatprep.subr.bf16.mxu0 0
    %1973 = vmatpush1.bf16.msra.mxu0 0
    %1974 = vmatprep.subr.bf16.mxu0 0
    %1975 = vmatpush1.bf16.msra.mxu0 0
    %1976 = vmatprep.subr.bf16.mxu0 0
    %1977 = vmatpush1.bf16.msra.mxu0 0
    %1978 = vmatprep.mubr.bf16.mxu0 0
    %1979 = vmatmul.mubr.bf16.gmra.mrb[0].mxu0 %v1723
    %v1980 = vpop.f32.mrb[0].mxu0
    %v1981 = vadd.f32 %v1771, %v1980
    %v1982 = vpop.f32.mrb[0].mxu0
    %v1983 = vpop.f32.mrb[0].mxu0
    %v1984 = vadd.f32 %v1771, %v1983
    %v1985 = vpop.f32.mrb[0].mxu0
    %1986 = vdwg.mxu0
    %v1987 = vpack.c.bf16 %v1942, %v1938
    %v1988 = vpack.c.bf16 %v1944, %v1940
    %v1989 = vpack.c.bf16 %v1984, %v1981
    %1991 = vrot.lane.b32.xlu0 %v1987, 96
    %v1992 = vpop.permute.xlu0 %1991
    %1993 = vrot.lane.b32.xlu0 %v1987, 64
    %v1994 = vpop.permute.xlu0 %1993
    %1995 = vrot.lane.b32.xlu0 %v1987, 32
    %v1996 = vpop.permute.xlu0 %1995
    %1998 = vrot.lane.b32.xlu0 %v1988, 96
    %v1999 = vpop.permute.xlu0 %1998
    %2000 = vrot.lane.b32.xlu0 %v1988, 64
    %v2001 = vpop.permute.xlu0 %2000
    %2002 = vrot.lane.b32.xlu0 %v1988, 32
    %v2003 = vpop.permute.xlu0 %2002
    %2005 = vrot.lane.b32.xlu0 %v1989, 96
    %v2006 = vpop.permute.xlu0 %2005
    %2008 = vrot.lane.b32.xlu0 %v1989, 64
    %v2009 = vpop.permute.xlu0 %2008
    %2011 = vrot.lane.b32.xlu0 %v1989, 32
    %v2012 = vpop.permute.xlu0 %2011
    %v2015 = vsel %vm286, %v1987, 0
    %v2018 = vsel %vm286, %v1988, 0
    %2020 = vmatprep.subr.bf16.mxu0 0
    %2021 = vmatpush1.bf16.xpose.msra.mxu0 %v2018
    %2022 = vmatprep.subr.bf16.mxu0 0
    %2023 = vmatpush1.bf16.xpose.msra.mxu0 0
    %2024 = vmatprep.subr.bf16.mxu0 0
    %2025 = vmatpush1.bf16.xpose.msra.mxu0 0
    %2026 = vmatprep.subr.bf16.mxu0 0
    %2027 = vmatpush1.bf16.xpose.msra.mxu0 0
    %2028 = vmatprep.subr.bf16.mxu0 0
    %2029 = vmatpush1.bf16.xpose.msra.mxu0 0
    %2030 = vmatprep.subr.bf16.mxu0 0
    %2031 = vmatpush1.bf16.xpose.msra.mxu0 0
    %2032 = vmatprep.subr.bf16.mxu0 0
    %2033 = vmatpush1.bf16.xpose.msra.mxu0 0
    %2034 = vmatprep.subr.bf16.mxu0 0
    %2035 = vmatpush1.bf16.xpose.msra.mxu0 0
    %2036 = vmatprep.subr.bf16.mxu0 0
    %2037 = vmatpush1.bf16.xpose.msra.mxu0 0
    %2038 = vmatprep.subr.bf16.mxu0 0
    %2039 = vmatpush1.bf16.xpose.msra.mxu0 0
    %2040 = vmatprep.subr.bf16.mxu0 0
    %2041 = vmatpush1.bf16.xpose.msra.mxu0 0
    %2042 = vmatprep.subr.bf16.mxu0 0
    %2043 = vmatpush1.bf16.xpose.msra.mxu0 0
    %2044 = vmatprep.subr.bf16.mxu0 0
    %2045 = vmatpush1.bf16.xpose.msra.mxu0 0
    %2046 = vmatprep.subr.bf16.mxu0 0
    %2047 = vmatpush1.bf16.xpose.msra.mxu0 0
    %2048 = vmatprep.subr.bf16.mxu0 0
    %2049 = vmatpush1.bf16.xpose.msra.mxu0 0
    %2050 = vmatprep.subr.bf16.mxu0 0
    %2051 = vmatpush1.bf16.xpose.msra.mxu0 0
    %2052 = vmatprep.mubr.bf16.mxu0 0
    %2053 = vmatmul.mubr.bf16.gmra.mrb[0].mxu0 %v2015
    %v2054 = vpop.f32.mrb[0].mxu0
    %v2055 = vadd.f32 0.0, %v2054
    %v2056 = vpop.f32.mrb[0].mxu0
    %v2057 = vpop.f32.mrb[0].mxu0
    %v2058 = vadd.f32 0.0, %v2057
    %v2059 = vpop.f32.mrb[0].mxu0
    %2060 = vdwg.mxu0
    %v2062 = vsel %vm286, %v1992, 0
    %v2065 = vsel %vm286, %v1999, 0
    %2067 = vmatprep.subr.bf16.mxu0 0
    %2068 = vmatpush1.bf16.xpose.msra.mxu0 %v2065
    %2069 = vmatprep.subr.bf16.mxu0 0
    %2070 = vmatpush1.bf16.xpose.msra.mxu0 0
    %2071 = vmatprep.subr.bf16.mxu0 0
    %2072 = vmatpush1.bf16.xpose.msra.mxu0 0
    %2073 = vmatprep.subr.bf16.mxu0 0
    %2074 = vmatpush1.bf16.xpose.msra.mxu0 0
    %2075 = vmatprep.subr.bf16.mxu0 0
    %2076 = vmatpush1.bf16.xpose.msra.mxu0 0
    %2077 = vmatprep.subr.bf16.mxu0 0
    %2078 = vmatpush1.bf16.xpose.msra.mxu0 0
    %2079 = vmatprep.subr.bf16.mxu0 0
    %2080 = vmatpush1.bf16.xpose.msra.mxu0 0
    %2081 = vmatprep.subr.bf16.mxu0 0
    %2082 = vmatpush1.bf16.xpose.msra.mxu0 0
    %2083 = vmatprep.subr.bf16.mxu0 0
    %2084 = vmatpush1.bf16.xpose.msra.mxu0 0
    %2085 = vmatprep.subr.bf16.mxu0 0
    %2086 = vmatpush1.bf16.xpose.msra.mxu0 0
    %2087 = vmatprep.subr.bf16.mxu0 0
    %2088 = vmatpush1.bf16.xpose.msra.mxu0 0
    %2089 = vmatprep.subr.bf16.mxu0 0
    %2090 = vmatpush1.bf16.xpose.msra.mxu0 0
    %2091 = vmatprep.subr.bf16.mxu0 0
    %2092 = vmatpush1.bf16.xpose.msra.mxu0 0
    %2093 = vmatprep.subr.bf16.mxu0 0
    %2094 = vmatpush1.bf16.xpose.msra.mxu0 0
    %2095 = vmatprep.subr.bf16.mxu0 0
    %2096 = vmatpush1.bf16.xpose.msra.mxu0 0
    %2097 = vmatprep.subr.bf16.mxu0 0
    %2098 = vmatpush1.bf16.xpose.msra.mxu0 0
    %2099 = vmatprep.mubr.bf16.mxu0 0
    %2100 = vmatmul.mubr.bf16.gmra.mrb[0].mxu0 %v2062
    %v2101 = vpop.f32.mrb[0].mxu0
    %v2102 = vadd.f32 0.0, %v2101
    %v2103 = vpop.f32.mrb[0].mxu0
    %v2104 = vpop.f32.mrb[0].mxu0
    %v2105 = vadd.f32 0.0, %v2104
    %v2106 = vpop.f32.mrb[0].mxu0
    %2107 = vdwg.mxu0
    %v2109 = vsel %vm286, %v1994, 0
    %v2112 = vsel %vm286, %v2001, 0
    %2114 = vmatprep.subr.bf16.mxu0 0
    %2115 = vmatpush1.bf16.xpose.msra.mxu0 %v2112
    %2116 = vmatprep.subr.bf16.mxu0 0
    %2117 = vmatpush1.bf16.xpose.msra.mxu0 0
    %2118 = vmatprep.subr.bf16.mxu0 0
    %2119 = vmatpush1.bf16.xpose.msra.mxu0 0
    %2120 = vmatprep.subr.bf16.mxu0 0
    %2121 = vmatpush1.bf16.xpose.msra.mxu0 0
    %2122 = vmatprep.subr.bf16.mxu0 0
    %2123 = vmatpush1.bf16.xpose.msra.mxu0 0
    %2124 = vmatprep.subr.bf16.mxu0 0
    %2125 = vmatpush1.bf16.xpose.msra.mxu0 0
    %2126 = vmatprep.subr.bf16.mxu0 0
    %2127 = vmatpush1.bf16.xpose.msra.mxu0 0
    %2128 = vmatprep.subr.bf16.mxu0 0
    %2129 = vmatpush1.bf16.xpose.msra.mxu0 0
    %2130 = vmatprep.subr.bf16.mxu0 0
    %2131 = vmatpush1.bf16.xpose.msra.mxu0 0
    %2132 = vmatprep.subr.bf16.mxu0 0
    %2133 = vmatpush1.bf16.xpose.msra.mxu0 0
    %2134 = vmatprep.subr.bf16.mxu0 0
    %2135 = vmatpush1.bf16.xpose.msra.mxu0 0
    %2136 = vmatprep.subr.bf16.mxu0 0
    %2137 = vmatpush1.bf16.xpose.msra.mxu0 0
    %2138 = vmatprep.subr.bf16.mxu0 0
    %2139 = vmatpush1.bf16.xpose.msra.mxu0 0
    %2140 = vmatprep.subr.bf16.mxu0 0
    %2141 = vmatpush1.bf16.xpose.msra.mxu0 0
    %2142 = vmatprep.subr.bf16.mxu0 0
    %2143 = vmatpush1.bf16.xpose.msra.mxu0 0
    %2144 = vmatprep.subr.bf16.mxu0 0
    %2145 = vmatpush1.bf16.xpose.msra.mxu0 0
    %2146 = vmatprep.mubr.bf16.mxu0 0
    %2147 = vmatmul.mubr.bf16.gmra.mrb[0].mxu0 %v2109
    %v2148 = vpop.f32.mrb[0].mxu0
    %v2149 = vadd.f32 0.0, %v2148
    %v2150 = vpop.f32.mrb[0].mxu0
    %v2151 = vpop.f32.mrb[0].mxu0
    %v2152 = vadd.f32 0.0, %v2151
    %v2153 = vpop.f32.mrb[0].mxu0
    %2154 = vdwg.mxu0
    %v2156 = vsel %vm286, %v1996, 0
    %v2159 = vsel %vm286, %v2003, 0
    %2161 = vmatprep.subr.bf16.mxu0 0
    %2162 = vmatpush1.bf16.xpose.msra.mxu0 %v2159
    %2163 = vmatprep.subr.bf16.mxu0 0
    %2164 = vmatpush1.bf16.xpose.msra.mxu0 0
    %2165 = vmatprep.subr.bf16.mxu0 0
    %2166 = vmatpush1.bf16.xpose.msra.mxu0 0
    %2167 = vmatprep.subr.bf16.mxu0 0
    %2168 = vmatpush1.bf16.xpose.msra.mxu0 0
    %2169 = vmatprep.subr.bf16.mxu0 0
    %2170 = vmatpush1.bf16.xpose.msra.mxu0 0
    %2171 = vmatprep.subr.bf16.mxu0 0
    %2172 = vmatpush1.bf16.xpose.msra.mxu0 0
    %2173 = vmatprep.subr.bf16.mxu0 0
    %2174 = vmatpush1.bf16.xpose.msra.mxu0 0
    %2175 = vmatprep.subr.bf16.mxu0 0
    %2176 = vmatpush1.bf16.xpose.msra.mxu0 0
    %2177 = vmatprep.subr.bf16.mxu0 0
    %2178 = vmatpush1.bf16.xpose.msra.mxu0 0
    %2179 = vmatprep.subr.bf16.mxu0 0
    %2180 = vmatpush1.bf16.xpose.msra.mxu0 0
    %2181 = vmatprep.subr.bf16.mxu0 0
    %2182 = vmatpush1.bf16.xpose.msra.mxu0 0
    %2183 = vmatprep.subr.bf16.mxu0 0
    %2184 = vmatpush1.bf16.xpose.msra.mxu0 0
    %2185 = vmatprep.subr.bf16.mxu0 0
    %2186 = vmatpush1.bf16.xpose.msra.mxu0 0
    %2187 = vmatprep.subr.bf16.mxu0 0
    %2188 = vmatpush1.bf16.xpose.msra.mxu0 0
    %2189 = vmatprep.subr.bf16.mxu0 0
    %2190 = vmatpush1.bf16.xpose.msra.mxu0 0
    %2191 = vmatprep.subr.bf16.mxu0 0
    %2192 = vmatpush1.bf16.xpose.msra.mxu0 0
    %2193 = vmatprep.mubr.bf16.mxu0 0
    %2194 = vmatmul.mubr.bf16.gmra.mrb[0].mxu0 %v2156
    %v2195 = vpop.f32.mrb[0].mxu0
    %v2196 = vadd.f32 0.0, %v2195
    %v2197 = vpop.f32.mrb[0].mxu0
    %v2198 = vpop.f32.mrb[0].mxu0
    %v2199 = vadd.f32 0.0, %v2198
    %v2200 = vpop.f32.mrb[0].mxu0
    %2201 = vdwg.mxu0
    %v2202 = vmul.f32 %v2055, 0.17677669
    %v2203 = vmul.f32 %v2058, 0.17677669
    %v2204 = vmul.f32 %v2102, 0.17677669
    %v2205 = vmul.f32 %v2105, 0.17677669
    %v2206 = vmul.f32 %v2149, 0.17677669
    %v2207 = vmul.f32 %v2152, 0.17677669
    %v2208 = vmul.f32 %v2196, 0.17677669
    %v2209 = vmul.f32 %v2199, 0.17677669
    %v2210 = vadd.f32 %v2202, %v337
    %v2211 = vadd.f32 %v2203, %v338
    %v2212 = vadd.f32 %v2204, %v337
    %v2213 = vadd.f32 %v2205, %v338
    %v2214 = vadd.f32 %v2206, %v337
    %v2215 = vadd.f32 %v2207, %v338
    %v2216 = vadd.f32 %v2208, %v337
    %v2217 = vadd.f32 %v2209, %v338
    %v2218 = vsel %vm877, %v2210, -inf
    %2219 = vmax.xlane.f32.xlu0 %v2218
    %v2220 = vpop.xlane.xlu0 %2219
    %v2221 = vsel %vm877, %v2211, -inf
    %2222 = vmax.xlane.f32.xlu0 %v2221
    %v2223 = vpop.xlane.xlu0 %2222
    %v2224 = vsel %vm877, %v2212, -inf
    %2225 = vmax.xlane.f32.xlu0 %v2224
    %v2226 = vpop.xlane.xlu0 %2225
    %v2227 = vsel %vm877, %v2213, -inf
    %2228 = vmax.xlane.f32.xlu0 %v2227
    %v2229 = vpop.xlane.xlu0 %2228
    %v2230 = vsel %vm877, %v2214, -inf
    %2231 = vmax.xlane.f32.xlu0 %v2230
    %v2232 = vpop.xlane.xlu0 %2231
    %v2233 = vsel %vm877, %v2215, -inf
    %2234 = vmax.xlane.f32.xlu0 %v2233
    %v2235 = vpop.xlane.xlu0 %2234
    %v2236 = vsel %vm877, %v2216, -inf
    %2237 = vmax.xlane.f32.xlu0 %v2236
    %v2238 = vpop.xlane.xlu0 %2237
    %v2239 = vsel %vm877, %v2217, -inf
    %2240 = vmax.xlane.f32.xlu0 %v2239
    %v2241 = vpop.xlane.xlu0 %2240
    %v2242 = vsub.f32 %v2210, %v2220
    %v2243 = vsub.f32 %v2211, %v2223
    %v2244 = vsub.f32 %v2212, %v2226
    %v2245 = vsub.f32 %v2213, %v2229
    %v2246 = vsub.f32 %v2214, %v2232
    %v2247 = vsub.f32 %v2215, %v2235
    %v2248 = vsub.f32 %v2216, %v2238
    %v2249 = vsub.f32 %v2217, %v2241
    %v2250 = vmul.f32 %v2242, 1.442695
    %v2251 = vpow.pop %v2250
    %v2252 = vmul.f32 %v2243, 1.442695
    %v2253 = vpow.pop %v2252
    %v2254 = vmul.f32 %v2244, 1.442695
    %v2255 = vpow.pop %v2254
    %v2256 = vmul.f32 %v2245, 1.442695
    %v2257 = vpow.pop %v2256
    %v2258 = vmul.f32 %v2246, 1.442695
    %v2259 = vpow.pop %v2258
    %v2260 = vmul.f32 %v2247, 1.442695
    %v2261 = vpow.pop %v2260
    %v2262 = vmul.f32 %v2248, 1.442695
    %v2263 = vpow.pop %v2262
    %v2264 = vmul.f32 %v2249, 1.442695
    %v2265 = vpow.pop %v2264
    %v2266 = vsel %vm877, %v2251, 0.0
    %2267 = vadd.xlane.f32.xlu0 %v2266
    %v2268 = vpop.xlane.xlu0 %2267
    %v2269 = vsel %vm877, %v2253, 0.0
    %2270 = vadd.xlane.f32.xlu0 %v2269
    %v2271 = vpop.xlane.xlu0 %2270
    %v2272 = vsel %vm877, %v2255, 0.0
    %2273 = vadd.xlane.f32.xlu0 %v2272
    %v2274 = vpop.xlane.xlu0 %2273
    %v2275 = vsel %vm877, %v2257, 0.0
    %2276 = vadd.xlane.f32.xlu0 %v2275
    %v2277 = vpop.xlane.xlu0 %2276
    %v2278 = vsel %vm877, %v2259, 0.0
    %2279 = vadd.xlane.f32.xlu0 %v2278
    %v2280 = vpop.xlane.xlu0 %2279
    %v2281 = vsel %vm877, %v2261, 0.0
    %2282 = vadd.xlane.f32.xlu0 %v2281
    %v2283 = vpop.xlane.xlu0 %2282
    %v2284 = vsel %vm877, %v2263, 0.0
    %2285 = vadd.xlane.f32.xlu0 %v2284
    %v2286 = vpop.xlane.xlu0 %2285
    %v2287 = vsel %vm877, %v2265, 0.0
    %2288 = vadd.xlane.f32.xlu0 %v2287
    %v2289 = vpop.xlane.xlu0 %2288
    %v2290 = vrcp.pop %v2268
    %v2291 = vmul.f32 %v2251, %v2290
    %v2292 = vrcp.pop %v2271
    %v2293 = vmul.f32 %v2253, %v2292
    %v2294 = vrcp.pop %v2274
    %v2295 = vmul.f32 %v2255, %v2294
    %v2296 = vrcp.pop %v2277
    %v2297 = vmul.f32 %v2257, %v2296
    %v2298 = vrcp.pop %v2280
    %v2299 = vmul.f32 %v2259, %v2298
    %v2300 = vrcp.pop %v2283
    %v2301 = vmul.f32 %v2261, %v2300
    %v2302 = vrcp.pop %v2286
    %v2303 = vmul.f32 %v2263, %v2302
    %v2304 = vrcp.pop %v2289
    %v2305 = vmul.f32 %v2265, %v2304
    %v2306 = vpack.c.bf16 %v2293, %v2291
    %v2307 = vpack.c.bf16 %v2297, %v2295
    %v2308 = vpack.c.bf16 %v2301, %v2299
    %v2309 = vpack.c.bf16 %v2305, %v2303
    %v2311 = vsel %vm877, %v2306, 0
    %2313 = vmatprep.subr.bf16.mxu0 0
    %2314 = vmatpush1.bf16.msra.mxu0 %v1989
    %2315 = vmatprep.subr.bf16.mxu0 0
    %2316 = vmatpush1.bf16.msra.mxu0 0
    %2317 = vmatprep.subr.bf16.mxu0 0
    %2318 = vmatpush1.bf16.msra.mxu0 0
    %2319 = vmatprep.subr.bf16.mxu0 0
    %2320 = vmatpush1.bf16.msra.mxu0 0
    %2321 = vmatprep.subr.bf16.mxu0 0
    %2322 = vmatpush1.bf16.msra.mxu0 0
    %2323 = vmatprep.subr.bf16.mxu0 0
    %2324 = vmatpush1.bf16.msra.mxu0 0
    %2325 = vmatprep.subr.bf16.mxu0 0
    %2326 = vmatpush1.bf16.msra.mxu0 0
    %2327 = vmatprep.subr.bf16.mxu0 0
    %2328 = vmatpush1.bf16.msra.mxu0 0
    %2329 = vmatprep.subr.bf16.mxu0 0
    %2330 = vmatpush1.bf16.msra.mxu0 0
    %2331 = vmatprep.subr.bf16.mxu0 0
    %2332 = vmatpush1.bf16.msra.mxu0 0
    %2333 = vmatprep.subr.bf16.mxu0 0
    %2334 = vmatpush1.bf16.msra.mxu0 0
    %2335 = vmatprep.subr.bf16.mxu0 0
    %2336 = vmatpush1.bf16.msra.mxu0 0
    %2337 = vmatprep.subr.bf16.mxu0 0
    %2338 = vmatpush1.bf16.msra.mxu0 0
    %2339 = vmatprep.subr.bf16.mxu0 0
    %2340 = vmatpush1.bf16.msra.mxu0 0
    %2341 = vmatprep.subr.bf16.mxu0 0
    %2342 = vmatpush1.bf16.msra.mxu0 0
    %2343 = vmatprep.subr.bf16.mxu0 0
    %2344 = vmatpush1.bf16.msra.mxu0 0
    %2345 = vmatprep.mubr.bf16.mxu0 0
    %2346 = vmatmul.mubr.bf16.gmra.mrb[0].mxu0 %v2311
    %v2347 = vpop.f32.mrb[0].mxu0
    %v2348 = vadd.f32 0.0, %v2347
    %v2349 = vpop.f32.mrb[0].mxu0
    %v2350 = vpop.f32.mrb[0].mxu0
    %v2351 = vadd.f32 0.0, %v2350
    %v2352 = vpop.f32.mrb[0].mxu0
    %2353 = vdwg.mxu0
    %v2355 = vsel %vm877, %v2307, 0
    %2357 = vmatprep.subr.bf16.mxu0 0
    %2358 = vmatpush1.bf16.msra.mxu0 %v2006
    %2359 = vmatprep.subr.bf16.mxu0 0
    %2360 = vmatpush1.bf16.msra.mxu0 0
    %2361 = vmatprep.subr.bf16.mxu0 0
    %2362 = vmatpush1.bf16.msra.mxu0 0
    %2363 = vmatprep.subr.bf16.mxu0 0
    %2364 = vmatpush1.bf16.msra.mxu0 0
    %2365 = vmatprep.subr.bf16.mxu0 0
    %2366 = vmatpush1.bf16.msra.mxu0 0
    %2367 = vmatprep.subr.bf16.mxu0 0
    %2368 = vmatpush1.bf16.msra.mxu0 0
    %2369 = vmatprep.subr.bf16.mxu0 0
    %2370 = vmatpush1.bf16.msra.mxu0 0
    %2371 = vmatprep.subr.bf16.mxu0 0
    %2372 = vmatpush1.bf16.msra.mxu0 0
    %2373 = vmatprep.subr.bf16.mxu0 0
    %2374 = vmatpush1.bf16.msra.mxu0 0
    %2375 = vmatprep.subr.bf16.mxu0 0
    %2376 = vmatpush1.bf16.msra.mxu0 0
    %2377 = vmatprep.subr.bf16.mxu0 0
    %2378 = vmatpush1.bf16.msra.mxu0 0
    %2379 = vmatprep.subr.bf16.mxu0 0
    %2380 = vmatpush1.bf16.msra.mxu0 0
    %2381 = vmatprep.subr.bf16.mxu0 0
    %2382 = vmatpush1.bf16.msra.mxu0 0
    %2383 = vmatprep.subr.bf16.mxu0 0
    %2384 = vmatpush1.bf16.msra.mxu0 0
    %2385 = vmatprep.subr.bf16.mxu0 0
    %2386 = vmatpush1.bf16.msra.mxu0 0
    %2387 = vmatprep.subr.bf16.mxu0 0
    %2388 = vmatpush1.bf16.msra.mxu0 0
    %2389 = vmatprep.mubr.bf16.mxu0 0
    %2390 = vmatmul.mubr.bf16.gmra.mrb[0].mxu0 %v2355
    %v2391 = vpop.f32.mrb[0].mxu0
    %v2392 = vadd.f32 0.0, %v2391
    %v2393 = vpop.f32.mrb[0].mxu0
    %v2394 = vpop.f32.mrb[0].mxu0
    %v2395 = vadd.f32 0.0, %v2394
    %v2396 = vpop.f32.mrb[0].mxu0
    %2397 = vdwg.mxu0
    %v2399 = vsel %vm877, %v2308, 0
    %2401 = vmatprep.subr.bf16.mxu0 0
    %2402 = vmatpush1.bf16.msra.mxu0 %v2009
    %2403 = vmatprep.subr.bf16.mxu0 0
    %2404 = vmatpush1.bf16.msra.mxu0 0
    %2405 = vmatprep.subr.bf16.mxu0 0
    %2406 = vmatpush1.bf16.msra.mxu0 0
    %2407 = vmatprep.subr.bf16.mxu0 0
    %2408 = vmatpush1.bf16.msra.mxu0 0
    %2409 = vmatprep.subr.bf16.mxu0 0
    %2410 = vmatpush1.bf16.msra.mxu0 0
    %2411 = vmatprep.subr.bf16.mxu0 0
    %2412 = vmatpush1.bf16.msra.mxu0 0
    %2413 = vmatprep.subr.bf16.mxu0 0
    %2414 = vmatpush1.bf16.msra.mxu0 0
    %2415 = vmatprep.subr.bf16.mxu0 0
    %2416 = vmatpush1.bf16.msra.mxu0 0
    %2417 = vmatprep.subr.bf16.mxu0 0
    %2418 = vmatpush1.bf16.msra.mxu0 0
    %2419 = vmatprep.subr.bf16.mxu0 0
    %2420 = vmatpush1.bf16.msra.mxu0 0
    %2421 = vmatprep.subr.bf16.mxu0 0
    %2422 = vmatpush1.bf16.msra.mxu0 0
    %2423 = vmatprep.subr.bf16.mxu0 0
    %2424 = vmatpush1.bf16.msra.mxu0 0
    %2425 = vmatprep.subr.bf16.mxu0 0
    %2426 = vmatpush1.bf16.msra.mxu0 0
    %2427 = vmatprep.subr.bf16.mxu0 0
    %2428 = vmatpush1.bf16.msra.mxu0 0
    %2429 = vmatprep.subr.bf16.mxu0 0
    %2430 = vmatpush1.bf16.msra.mxu0 0
    %2431 = vmatprep.subr.bf16.mxu0 0
    %2432 = vmatpush1.bf16.msra.mxu0 0
    %2433 = vmatprep.mubr.bf16.mxu0 0
    %2434 = vmatmul.mubr.bf16.gmra.mrb[0].mxu0 %v2399
    %v2435 = vpop.f32.mrb[0].mxu0
    %v2436 = vadd.f32 0.0, %v2435
    %v2437 = vpop.f32.mrb[0].mxu0
    %v2438 = vpop.f32.mrb[0].mxu0
    %v2439 = vadd.f32 0.0, %v2438
    %v2440 = vpop.f32.mrb[0].mxu0
    %2441 = vdwg.mxu0
    %v2443 = vsel %vm877, %v2309, 0
    %2445 = vmatprep.subr.bf16.mxu0 0
    %2446 = vmatpush1.bf16.msra.mxu0 %v2012
    %2447 = vmatprep.subr.bf16.mxu0 0
    %2448 = vmatpush1.bf16.msra.mxu0 0
    %2449 = vmatprep.subr.bf16.mxu0 0
    %2450 = vmatpush1.bf16.msra.mxu0 0
    %2451 = vmatprep.subr.bf16.mxu0 0
    %2452 = vmatpush1.bf16.msra.mxu0 0
    %2453 = vmatprep.subr.bf16.mxu0 0
    %2454 = vmatpush1.bf16.msra.mxu0 0
    %2455 = vmatprep.subr.bf16.mxu0 0
    %2456 = vmatpush1.bf16.msra.mxu0 0
    %2457 = vmatprep.subr.bf16.mxu0 0
    %2458 = vmatpush1.bf16.msra.mxu0 0
    %2459 = vmatprep.subr.bf16.mxu0 0
    %2460 = vmatpush1.bf16.msra.mxu0 0
    %2461 = vmatprep.subr.bf16.mxu0 0
    %2462 = vmatpush1.bf16.msra.mxu0 0
    %2463 = vmatprep.subr.bf16.mxu0 0
    %2464 = vmatpush1.bf16.msra.mxu0 0
    %2465 = vmatprep.subr.bf16.mxu0 0
    %2466 = vmatpush1.bf16.msra.mxu0 0
    %2467 = vmatprep.subr.bf16.mxu0 0
    %2468 = vmatpush1.bf16.msra.mxu0 0
    %2469 = vmatprep.subr.bf16.mxu0 0
    %2470 = vmatpush1.bf16.msra.mxu0 0
    %2471 = vmatprep.subr.bf16.mxu0 0
    %2472 = vmatpush1.bf16.msra.mxu0 0
    %2473 = vmatprep.subr.bf16.mxu0 0
    %2474 = vmatpush1.bf16.msra.mxu0 0
    %2475 = vmatprep.subr.bf16.mxu0 0
    %2476 = vmatpush1.bf16.msra.mxu0 0
    %2477 = vmatprep.mubr.bf16.mxu0 0
    %2478 = vmatmul.mubr.bf16.gmra.mrb[0].mxu0 %v2443
    %v2479 = vpop.f32.mrb[0].mxu0
    %v2480 = vadd.f32 0.0, %v2479
    %v2481 = vpop.f32.mrb[0].mxu0
    %v2482 = vpop.f32.mrb[0].mxu0
    %v2483 = vadd.f32 0.0, %v2482
    %v2484 = vpop.f32.mrb[0].mxu0
    %2485 = vdwg.mxu0
    %2488 = vrot.lane.b32.xlu0 %v2392, 32
    %v2489 = vpop.permute.xlu0 %2488
    %2490 = vrot.lane.b32.xlu0 %v2395, 32
    %v2491 = vpop.permute.xlu0 %2490
    %2496 = vrot.lane.b32.xlu0 %v2436, 64
    %v2497 = vpop.permute.xlu0 %2496
    %2498 = vrot.lane.b32.xlu0 %v2439, 64
    %v2499 = vpop.permute.xlu0 %2498
    %2504 = vrot.lane.b32.xlu0 %v2480, 96
    %v2505 = vpop.permute.xlu0 %2504
    %2506 = vrot.lane.b32.xlu0 %v2483, 96
    %v2507 = vpop.permute.xlu0 %2506
    %v2510 = vsel %vm286, %v2348, %v2489
    %v2511 = vsel %vm286, %v2351, %v2491
    %v2512 = vsel %vm1172, %v2510, %v2497
    %v2513 = vsel %vm1172, %v2511, %v2499
    %v2514 = vsel %vm1175, %v2512, %v2505
    %v2515 = vsel %vm1175, %v2513, %v2507
    %v2516 = vpack.c.bf16 %v2515, %v2514
    %s2517 = scalar_lea.vmem [#allocation10], 64
    %v2518 = vld [vmem:[%s2517] sm:$0xf]
    %v2519 = vld [vmem:[%s2517 + $0x4] sm:$0xf]
    %v2520 = vld [vmem:[%s2517 + $0x8] sm:$0xf]
    %v2521 = vld [vmem:[%s2517 + $0xc] sm:$0xf]
    %v2522 = vld [vmem:[%s2517 + $0x10] sm:$0xf]
    %v2523 = vld [vmem:[%s2517 + $0x14] sm:$0xf]
    %v2524 = vld [vmem:[%s2517 + $0x18] sm:$0xf]
    %v2525 = vld [vmem:[%s2517 + $0x1c] sm:$0xf]
    %v2526 = vld [vmem:[%s2517 + $0x20] sm:$0xf]
    %v2527 = vld [vmem:[%s2517 + $0x24] sm:$0xf]
    %v2528 = vld [vmem:[%s2517 + $0x28] sm:$0xf]
    %v2529 = vld [vmem:[%s2517 + $0x2c] sm:$0xf]
    %v2530 = vld [vmem:[%s2517 + $0x30] sm:$0xf]
    %v2531 = vld [vmem:[%s2517 + $0x34] sm:$0xf]
    %v2532 = vld [vmem:[%s2517 + $0x38] sm:$0xf]
    %v2533 = vld [vmem:[%s2517 + $0x3c] sm:$0xf]
    %v2550 = vunpack.c.l.b16 %v2518
    %v2551 = vunpack.c.l.b16 %v2519
    %v2552 = vunpack.c.l.b16 %v2520
    %v2553 = vunpack.c.l.b16 %v2521
    %v2554 = vunpack.c.l.b16 %v2522
    %v2555 = vunpack.c.l.b16 %v2523
    %v2556 = vunpack.c.l.b16 %v2524
    %v2557 = vunpack.c.l.b16 %v2525
    %v2558 = vunpack.c.l.b16 %v2526
    %v2559 = vunpack.c.l.b16 %v2527
    %v2560 = vunpack.c.l.b16 %v2528
    %v2561 = vunpack.c.l.b16 %v2529
    %v2562 = vunpack.c.l.b16 %v2530
    %v2563 = vunpack.c.l.b16 %v2531
    %v2564 = vunpack.c.l.b16 %v2532
    %v2565 = vunpack.c.l.b16 %v2533
    %v2566 = vpack.c.b16 %v2551, %v2550
    %v2567 = vpack.c.b16 %v2553, %v2552
    %v2568 = vpack.c.b16 %v2555, %v2554
    %v2569 = vpack.c.b16 %v2557, %v2556
    %v2570 = vpack.c.b16 %v2559, %v2558
    %v2571 = vpack.c.b16 %v2561, %v2560
    %v2572 = vpack.c.b16 %v2563, %v2562
    %v2573 = vpack.c.b16 %v2565, %v2564
    %2582 = vmatprep.subr.bf16.mxu0 0
    %2583 = vmatpush1.bf16.msra.mxu0 %v2566
    %2584 = vmatprep.subr.bf16.mxu0 0
    %2585 = vmatpush1.bf16.msra.mxu0 %v2567
    %2586 = vmatprep.subr.bf16.mxu0 0
    %2587 = vmatpush1.bf16.msra.mxu0 %v2568
    %2588 = vmatprep.subr.bf16.mxu0 0
    %2589 = vmatpush1.bf16.msra.mxu0 %v2569
    %2590 = vmatprep.subr.bf16.mxu0 0
    %2591 = vmatpush1.bf16.msra.mxu0 %v2570
    %2592 = vmatprep.subr.bf16.mxu0 0
    %2593 = vmatpush1.bf16.msra.mxu0 %v2571
    %2594 = vmatprep.subr.bf16.mxu0 0
    %2595 = vmatpush1.bf16.msra.mxu0 %v2572
    %2596 = vmatprep.subr.bf16.mxu0 0
    %2597 = vmatpush1.bf16.msra.mxu0 %v2573
    %2598 = vmatprep.subr.bf16.mxu0 0
    %2599 = vmatpush1.bf16.msra.mxu0 0
    %2600 = vmatprep.subr.bf16.mxu0 0
    %2601 = vmatpush1.bf16.msra.mxu0 0
    %2602 = vmatprep.subr.bf16.mxu0 0
    %2603 = vmatpush1.bf16.msra.mxu0 0
    %2604 = vmatprep.subr.bf16.mxu0 0
    %2605 = vmatpush1.bf16.msra.mxu0 0
    %2606 = vmatprep.subr.bf16.mxu0 0
    %2607 = vmatpush1.bf16.msra.mxu0 0
    %2608 = vmatprep.subr.bf16.mxu0 0
    %2609 = vmatpush1.bf16.msra.mxu0 0
    %2610 = vmatprep.subr.bf16.mxu0 0
    %2611 = vmatpush1.bf16.msra.mxu0 0
    %2612 = vmatprep.subr.bf16.mxu0 0
    %2613 = vmatpush1.bf16.msra.mxu0 0
    %2614 = vmatprep.mubr.bf16.mxu0 0
    %2615 = vmatmul.mubr.bf16.gmra.mrb[0].mxu0 %v2516
    %v2616 = vpop.f32.mrb[0].mxu0
    %v2617 = vadd.f32 0.0, %v2616
    %v2618 = vpop.f32.mrb[0].mxu0
    %v2619 = vpop.f32.mrb[0].mxu0
    %v2620 = vadd.f32 0.0, %v2619
    %v2621 = vpop.f32.mrb[0].mxu0
    %2622 = vdwg.mxu0
    %v2623 = vadd.f32 %v1675, %v2617
    %v2624 = vadd.f32 %v1676, %v2620
    %s2625 = scalar_lea.vmem [#allocation11], 1
    %v2626 = vld [vmem:[%s2625] sm:$0x1]
    %v2628 = vlaneseq
    %v2629 = vshrl.u32 %v2628, 7
    %v2630 = vsub.s32 0, %v2629
    %v2631 = vrot.slane %v2626, %v2630
    %v2633 = vadd.f32 %v2623, %v2631
    %v2634 = vadd.f32 %v2624, %v2631
    %s2635 = scalar_lea.vmem [#allocation16], 1
    %v2636 = vld [vmem:[%s2635] sm:$0x1]
    %s2637 = scalar_lea.vmem [#allocation17], 1
    %v2638 = vld [vmem:[%s2637] sm:$0x1]
    %2639 = vadd.xlane.f32.xlu0 %v2633
    %v2640 = vpop.xlane.xlu0 %2639
    %2641 = vadd.xlane.f32.xlu0 %v2634
    %v2642 = vpop.xlane.xlu0 %2641
    %v2643 = vmul.f32 %v2640, %v345
    %v2644 = vmul.f32 %v2642, %v345
    %v2645 = vmul.f32 %v2633, %v2633
    %v2646 = vmul.f32 %v2634, %v2634
    %2647 = vadd.xlane.f32.xlu0 %v2645
    %v2648 = vpop.xlane.xlu0 %2647
    %2649 = vadd.xlane.f32.xlu0 %v2646
    %v2650 = vpop.xlane.xlu0 %2649
    %v2651 = vmul.f32 %v2648, %v345
    %v2652 = vmul.f32 %v2650, %v345
    %v2653 = vmul.f32 %v2643, %v2643
    %v2654 = vmul.f32 %v2644, %v2644
    %v2655 = vsub.f32 %v2651, %v2653
    %v2656 = vsub.f32 %v2652, %v2654
    %v2657 = vsub.f32 %v2633, %v2643
    %v2658 = vsub.f32 %v2634, %v2644
    %v2659 = vadd.f32 %v2655, 1e-05
    %v2660 = vadd.f32 %v2656, 1e-05
    %v2661 = vrsqrt.pop %v2659
    %v2662 = vrsqrt.pop %v2660
    %v2663 = vmul.f32 %v2657, %v2661
    %v2664 = vmul.f32 %v2658, %v2662
    %v2666 = vlaneseq
    %v2667 = vshrl.u32 %v2666, 7
    %v2668 = vsub.s32 0, %v2667
    %v2669 = vrot.slane %v2636, %v2668
    %v2671 = vmul.f32 %v2663, %v2669
    %v2672 = vmul.f32 %v2664, %v2669
    %v2674 = vlaneseq
    %v2675 = vshrl.u32 %v2674, 7
    %v2676 = vsub.s32 0, %v2675
    %v2677 = vrot.slane %v2638, %v2676
    %v2679 = vadd.f32 %v2671, %v2677
    %v2680 = vadd.f32 %v2672, %v2677
    %v2681 = vpack.c.bf16 %v2680, %v2679
    %s2682 = scalar_lea.vmem [#allocation19], 128
    %v2683 = vld [vmem:[%s2682] sm:$0xff]
    %v2684 = vld [vmem:[%s2682 + $0x8] sm:$0xff]
    %v2685 = vld [vmem:[%s2682 + $0x10] sm:$0xff]
    %v2686 = vld [vmem:[%s2682 + $0x18] sm:$0xff]
    %v2687 = vld [vmem:[%s2682 + $0x20] sm:$0xff]
    %v2688 = vld [vmem:[%s2682 + $0x28] sm:$0xff]
    %v2689 = vld [vmem:[%s2682 + $0x30] sm:$0xff]
    %v2690 = vld [vmem:[%s2682 + $0x38] sm:$0xff]
    %v2691 = vld [vmem:[%s2682 + $0x40] sm:$0xff]
    %v2692 = vld [vmem:[%s2682 + $0x48] sm:$0xff]
    %v2693 = vld [vmem:[%s2682 + $0x50] sm:$0xff]
    %v2694 = vld [vmem:[%s2682 + $0x58] sm:$0xff]
    %v2695 = vld [vmem:[%s2682 + $0x60] sm:$0xff]
    %v2696 = vld [vmem:[%s2682 + $0x68] sm:$0xff]
    %v2697 = vld [vmem:[%s2682 + $0x70] sm:$0xff]
    %v2698 = vld [vmem:[%s2682 + $0x78] sm:$0xff]
    %s2699 = scalar_lea.vmem %s13, 2
    %v2700 = vld [vmem:[%s2699] sm:$0x3]
    %v2702 = vlaneseq
    %v2703 = vshrl.u32 %v2702, 7
    %v2704 = vsub.s32 0, %v2703
    %v2705 = vrot.slane %v2700, %v2704
    %v2706 = vlaneseq
    %v2707 = vshrl.u32 %v2706, 7
    %v2708 = vsub.s32 1, %v2707
    %v2709 = vrot.slane %v2700, %v2708
    %v2728 = vunpack.c.l.b16 %v2683
    %v2729 = vunpack.c.h.b16 %v2683
    %v2730 = vunpack.c.l.b16 %v2684
    %v2731 = vunpack.c.h.b16 %v2684
    %v2732 = vunpack.c.l.b16 %v2685
    %v2733 = vunpack.c.h.b16 %v2685
    %v2734 = vunpack.c.l.b16 %v2686
    %v2735 = vunpack.c.h.b16 %v2686
    %v2736 = vunpack.c.l.b16 %v2687
    %v2737 = vunpack.c.h.b16 %v2687
    %v2738 = vunpack.c.l.b16 %v2688
    %v2739 = vunpack.c.h.b16 %v2688
    %v2740 = vunpack.c.l.b16 %v2689
    %v2741 = vunpack.c.h.b16 %v2689
    %v2742 = vunpack.c.l.b16 %v2690
    %v2743 = vunpack.c.h.b16 %v2690
    %v2744 = vunpack.c.l.b16 %v2691
    %v2745 = vunpack.c.h.b16 %v2691
    %v2746 = vunpack.c.l.b16 %v2692
    %v2747 = vunpack.c.h.b16 %v2692
    %v2748 = vunpack.c.l.b16 %v2693
    %v2749 = vunpack.c.h.b16 %v2693
    %v2750 = vunpack.c.l.b16 %v2694
    %v2751 = vunpack.c.h.b16 %v2694
    %v2752 = vunpack.c.l.b16 %v2695
    %v2753 = vunpack.c.h.b16 %v2695
    %v2754 = vunpack.c.l.b16 %v2696
    %v2755 = vunpack.c.h.b16 %v2696
    %v2756 = vunpack.c.l.b16 %v2697
    %v2757 = vunpack.c.h.b16 %v2697
    %v2758 = vunpack.c.l.b16 %v2698
    %v2759 = vunpack.c.h.b16 %v2698
    %v2760 = vpack.c.b16 %v2730, %v2728
    %v2761 = vpack.c.b16 %v2731, %v2729
    %v2762 = vpack.c.b16 %v2734, %v2732
    %v2763 = vpack.c.b16 %v2735, %v2733
    %v2764 = vpack.c.b16 %v2738, %v2736
    %v2765 = vpack.c.b16 %v2739, %v2737
    %v2766 = vpack.c.b16 %v2742, %v2740
    %v2767 = vpack.c.b16 %v2743, %v2741
    %v2768 = vpack.c.b16 %v2746, %v2744
    %v2769 = vpack.c.b16 %v2747, %v2745
    %v2770 = vpack.c.b16 %v2750, %v2748
    %v2771 = vpack.c.b16 %v2751, %v2749
    %v2772 = vpack.c.b16 %v2754, %v2752
    %v2773 = vpack.c.b16 %v2755, %v2753
    %v2774 = vpack.c.b16 %v2758, %v2756
    %v2775 = vpack.c.b16 %v2759, %v2757
    %2792 = vmatprep.subr.bf16.mxu0 %v2761
    %2793 = vmatpush1.bf16.msra.mxu0 %v2760
    %2794 = vmatprep.subr.bf16.mxu0 %v2763
    %2795 = vmatpush1.bf16.msra.mxu0 %v2762
    %2796 = vmatprep.subr.bf16.mxu0 %v2765
    %2797 = vmatpush1.bf16.msra.mxu0 %v2764
    %2798 = vmatprep.subr.bf16.mxu0 %v2767
    %2799 = vmatpush1.bf16.msra.mxu0 %v2766
    %2800 = vmatprep.subr.bf16.mxu0 %v2769
    %2801 = vmatpush1.bf16.msra.mxu0 %v2768
    %2802 = vmatprep.subr.bf16.mxu0 %v2771
    %2803 = vmatpush1.bf16.msra.mxu0 %v2770
    %2804 = vmatprep.subr.bf16.mxu0 %v2773
    %2805 = vmatpush1.bf16.msra.mxu0 %v2772
    %2806 = vmatprep.subr.bf16.mxu0 %v2775
    %2807 = vmatpush1.bf16.msra.mxu0 %v2774
    %2808 = vmatprep.subr.bf16.mxu0 0
    %2809 = vmatpush1.bf16.msra.mxu0 0
    %2810 = vmatprep.subr.bf16.mxu0 0
    %2811 = vmatpush1.bf16.msra.mxu0 0
    %2812 = vmatprep.subr.bf16.mxu0 0
    %2813 = vmatpush1.bf16.msra.mxu0 0
    %2814 = vmatprep.subr.bf16.mxu0 0
    %2815 = vmatpush1.bf16.msra.mxu0 0
    %2816 = vmatprep.subr.bf16.mxu0 0
    %2817 = vmatpush1.bf16.msra.mxu0 0
    %2818 = vmatprep.subr.bf16.mxu0 0
    %2819 = vmatpush1.bf16.msra.mxu0 0
    %2820 = vmatprep.subr.bf16.mxu0 0
    %2821 = vmatpush1.bf16.msra.mxu0 0
    %2822 = vmatprep.subr.bf16.mxu0 0
    %2823 = vmatpush1.bf16.msra.mxu0 0
    %2824 = vmatprep.mubr.bf16.mxu0 0
    %2825 = vmatmul.mubr.bf16.gmra.mrb[0].mxu0 %v2681
    %v2826 = vpop.f32.mrb[0].mxu0
    %v2827 = vadd.f32 %v2705, %v2826
    %v2828 = vpop.f32.mrb[0].mxu0
    %v2829 = vadd.f32 %v2709, %v2828
    %v2830 = vpop.f32.mrb[0].mxu0
    %v2831 = vadd.f32 %v2705, %v2830
    %v2832 = vpop.f32.mrb[0].mxu0
    %v2833 = vadd.f32 %v2709, %v2832
    %2834 = vdwg.mxu0
    %v2835 = vmax.f32 %v2827, 0.0
    %v2836 = vmax.f32 %v2829, 0.0
    %v2837 = vmax.f32 %v2831, 0.0
    %v2838 = vmax.f32 %v2833, 0.0
    %v2839 = vpack.c.bf16 %v2837, %v2835
    %v2840 = vpack.c.bf16 %v2838, %v2836
    %s2841 = scalar_lea.vmem [#allocation20], 128
    %v2842 = vld [vmem:[%s2841] sm:$0xf]
    %v2843 = vld [vmem:[%s2841 + $0x4] sm:$0xf]
    %v2844 = vld [vmem:[%s2841 + $0x8] sm:$0xf]
    %v2845 = vld [vmem:[%s2841 + $0xc] sm:$0xf]
    %v2846 = vld [vmem:[%s2841 + $0x10] sm:$0xf]
    %v2847 = vld [vmem:[%s2841 + $0x14] sm:$0xf]
    %v2848 = vld [vmem:[%s2841 + $0x18] sm:$0xf]
    %v2849 = vld [vmem:[%s2841 + $0x1c] sm:$0xf]
    %v2850 = vld [vmem:[%s2841 + $0x20] sm:$0xf]
    %v2851 = vld [vmem:[%s2841 + $0x24] sm:$0xf]
    %v2852 = vld [vmem:[%s2841 + $0x28] sm:$0xf]
    %v2853 = vld [vmem:[%s2841 + $0x2c] sm:$0xf]
    %v2854 = vld [vmem:[%s2841 + $0x30] sm:$0xf]
    %v2855 = vld [vmem:[%s2841 + $0x34] sm:$0xf]
    %v2856 = vld [vmem:[%s2841 + $0x38] sm:$0xf]
    %v2857 = vld [vmem:[%s2841 + $0x3c] sm:$0xf]
    %v2858 = vld [vmem:[%s2841 + $0x40] sm:$0xf]
    %v2859 = vld [vmem:[%s2841 + $0x44] sm:$0xf]
    %v2860 = vld [vmem:[%s2841 + $0x48] sm:$0xf]
    %v2861 = vld [vmem:[%s2841 + $0x4c] sm:$0xf]
    %v2862 = vld [vmem:[%s2841 + $0x50] sm:$0xf]
    %v2863 = vld [vmem:[%s2841 + $0x54] sm:$0xf]
    %v2864 = vld [vmem:[%s2841 + $0x58] sm:$0xf]
    %v2865 = vld [vmem:[%s2841 + $0x5c] sm:$0xf]
    %v2866 = vld [vmem:[%s2841 + $0x60] sm:$0xf]
    %v2867 = vld [vmem:[%s2841 + $0x64] sm:$0xf]
    %v2868 = vld [vmem:[%s2841 + $0x68] sm:$0xf]
    %v2869 = vld [vmem:[%s2841 + $0x6c] sm:$0xf]
    %v2870 = vld [vmem:[%s2841 + $0x70] sm:$0xf]
    %v2871 = vld [vmem:[%s2841 + $0x74] sm:$0xf]
    %v2872 = vld [vmem:[%s2841 + $0x78] sm:$0xf]
    %v2873 = vld [vmem:[%s2841 + $0x7c] sm:$0xf]
    %v2906 = vunpack.c.l.b16 %v2842
    %v2907 = vunpack.c.l.b16 %v2843
    %v2908 = vunpack.c.l.b16 %v2844
    %v2909 = vunpack.c.l.b16 %v2845
    %v2910 = vunpack.c.l.b16 %v2846
    %v2911 = vunpack.c.l.b16 %v2847
    %v2912 = vunpack.c.l.b16 %v2848
    %v2913 = vunpack.c.l.b16 %v2849
    %v2914 = vunpack.c.l.b16 %v2850
    %v2915 = vunpack.c.l.b16 %v2851
    %v2916 = vunpack.c.l.b16 %v2852
    %v2917 = vunpack.c.l.b16 %v2853
    %v2918 = vunpack.c.l.b16 %v2854
    %v2919 = vunpack.c.l.b16 %v2855
    %v2920 = vunpack.c.l.b16 %v2856
    %v2921 = vunpack.c.l.b16 %v2857
    %v2922 = vunpack.c.l.b16 %v2858
    %v2923 = vunpack.c.l.b16 %v2859
    %v2924 = vunpack.c.l.b16 %v2860
    %v2925 = vunpack.c.l.b16 %v2861
    %v2926 = vunpack.c.l.b16 %v2862
    %v2927 = vunpack.c.l.b16 %v2863
    %v2928 = vunpack.c.l.b16 %v2864
    %v2929 = vunpack.c.l.b16 %v2865
    %v2930 = vunpack.c.l.b16 %v2866
    %v2931 = vunpack.c.l.b16 %v2867
    %v2932 = vunpack.c.l.b16 %v2868
    %v2933 = vunpack.c.l.b16 %v2869
    %v2934 = vunpack.c.l.b16 %v2870
    %v2935 = vunpack.c.l.b16 %v2871
    %v2936 = vunpack.c.l.b16 %v2872
    %v2937 = vunpack.c.l.b16 %v2873
    %v2938 = vpack.c.b16 %v2907, %v2906
    %v2939 = vpack.c.b16 %v2909, %v2908
    %v2940 = vpack.c.b16 %v2911, %v2910
    %v2941 = vpack.c.b16 %v2913, %v2912
    %v2942 = vpack.c.b16 %v2915, %v2914
    %v2943 = vpack.c.b16 %v2917, %v2916
    %v2944 = vpack.c.b16 %v2919, %v2918
    %v2945 = vpack.c.b16 %v2921, %v2920
    %v2946 = vpack.c.b16 %v2923, %v2922
    %v2947 = vpack.c.b16 %v2925, %v2924
    %v2948 = vpack.c.b16 %v2927, %v2926
    %v2949 = vpack.c.b16 %v2929, %v2928
    %v2950 = vpack.c.b16 %v2931, %v2930
    %v2951 = vpack.c.b16 %v2933, %v2932
    %v2952 = vpack.c.b16 %v2935, %v2934
    %v2953 = vpack.c.b16 %v2937, %v2936
    %2970 = vmatprep.subr.bf16.mxu0 0
    %2971 = vmatpush1.bf16.msra.mxu0 %v2938
    %2972 = vmatprep.subr.bf16.mxu0 0
    %2973 = vmatpush1.bf16.msra.mxu0 %v2939
    %2974 = vmatprep.subr.bf16.mxu0 0
    %2975 = vmatpush1.bf16.msra.mxu0 %v2940
    %2976 = vmatprep.subr.bf16.mxu0 0
    %2977 = vmatpush1.bf16.msra.mxu0 %v2941
    %2978 = vmatprep.subr.bf16.mxu0 0
    %2979 = vmatpush1.bf16.msra.mxu0 %v2942
    %2980 = vmatprep.subr.bf16.mxu0 0
    %2981 = vmatpush1.bf16.msra.mxu0 %v2943
    %2982 = vmatprep.subr.bf16.mxu0 0
    %2983 = vmatpush1.bf16.msra.mxu0 %v2944
    %2984 = vmatprep.subr.bf16.mxu0 0
    %2985 = vmatpush1.bf16.msra.mxu0 %v2945
    %2986 = vmatprep.subr.bf16.mxu0 0
    %2987 = vmatpush1.bf16.msra.mxu0 %v2946
    %2988 = vmatprep.subr.bf16.mxu0 0
    %2989 = vmatpush1.bf16.msra.mxu0 %v2947
    %2990 = vmatprep.subr.bf16.mxu0 0
    %2991 = vmatpush1.bf16.msra.mxu0 %v2948
    %2992 = vmatprep.subr.bf16.mxu0 0
    %2993 = vmatpush1.bf16.msra.mxu0 %v2949
    %2994 = vmatprep.subr.bf16.mxu0 0
    %2995 = vmatpush1.bf16.msra.mxu0 %v2950
    %2996 = vmatprep.subr.bf16.mxu0 0
    %2997 = vmatpush1.bf16.msra.mxu0 %v2951
    %2998 = vmatprep.subr.bf16.mxu0 0
    %2999 = vmatpush1.bf16.msra.mxu0 %v2952
    %3000 = vmatprep.subr.bf16.mxu0 0
    %3001 = vmatpush1.bf16.msra.mxu0 %v2953
    %3002 = vmatprep.mubr.bf16.mxu0 %v2840
    %3003 = vmatmul.mubr.bf16.gmra.mrb[0].mxu0 %v2839
    %v3004 = vpop.f32.mrb[0].mxu0
    %v3005 = vadd.f32 0.0, %v3004
    %v3006 = vpop.f32.mrb[0].mxu0
    %v3007 = vpop.f32.mrb[0].mxu0
    %v3008 = vadd.f32 0.0, %v3007
    %v3009 = vpop.f32.mrb[0].mxu0
    %3010 = vdwg.mxu0
    %v3011 = vadd.f32 %v2633, %v3005
    %v3012 = vadd.f32 %v2634, %v3008
    %s3013 = scalar_lea.vmem [#allocation22], 1
    %v3014 = vld [vmem:[%s3013] sm:$0x1]
    %v3016 = vlaneseq
    %v3017 = vshrl.u32 %v3016, 7
    %v3018 = vsub.s32 0, %v3017
    %v3019 = vrot.slane %v3014, %v3018
    %v3021 = vadd.f32 %v3011, %v3019
    %v3022 = vadd.f32 %v3012, %v3019
    %v3023 = vld [vmem:[%s16] sm:$0x1]
    %v3024 = vld [vmem:[#allocation23] sm:$0x1]
    %3025 = vadd.xlane.f32.xlu0 %v3021
    %v3026 = vpop.xlane.xlu0 %3025
    %3027 = vadd.xlane.f32.xlu0 %v3022
    %v3028 = vpop.xlane.xlu0 %3027
    %v3029 = vmul.f32 %v3026, %v345
    %v3030 = vmul.f32 %v3028, %v345
    %v3031 = vmul.f32 %v3021, %v3021
    %v3032 = vmul.f32 %v3022, %v3022
    %3033 = vadd.xlane.f32.xlu0 %v3031
    %v3034 = vpop.xlane.xlu0 %3033
    %3035 = vadd.xlane.f32.xlu0 %v3032
    %v3036 = vpop.xlane.xlu0 %3035
    %v3037 = vmul.f32 %v3034, %v345
    %v3038 = vmul.f32 %v3036, %v345
    %v3039 = vmul.f32 %v3029, %v3029
    %v3040 = vmul.f32 %v3030, %v3030
    %v3041 = vsub.f32 %v3037, %v3039
    %v3042 = vsub.f32 %v3038, %v3040
    %v3043 = vsub.f32 %v3021, %v3029
    %v3044 = vsub.f32 %v3022, %v3030
    %v3045 = vadd.f32 %v3041, 1e-05
    %v3046 = vadd.f32 %v3042, 1e-05
    %v3047 = vrsqrt.pop %v3045
    %v3048 = vrsqrt.pop %v3046
    %v3049 = vmul.f32 %v3043, %v3047
    %v3050 = vmul.f32 %v3044, %v3048
    %v3052 = vlaneseq
    %v3053 = vshrl.u32 %v3052, 7
    %v3054 = vsub.s32 0, %v3053
    %v3055 = vrot.slane %v3023, %v3054
    %v3057 = vmul.f32 %v3049, %v3055
    %v3058 = vmul.f32 %v3050, %v3055
    %v3060 = vlaneseq
    %v3061 = vshrl.u32 %v3060, 7
    %v3062 = vsub.s32 0, %v3061
    %v3063 = vrot.slane %v3024, %v3062
    %v3065 = vadd.f32 %v3057, %v3063
    %v3066 = vadd.f32 %v3058, %v3063
    %v3067 = vpack.c.bf16 %v3066, %v3065
    %v3068 = vld [vmem:[%s18] sm:$0xf]
    %v3069 = vld [vmem:[%s18 + $0x4] sm:$0xf]
    %v3070 = vld [vmem:[%s18 + $0x8] sm:$0xf]
    %v3071 = vld [vmem:[%s18 + $0xc] sm:$0xf]
    %v3072 = vld [vmem:[%s18 + $0x10] sm:$0xf]
    %v3073 = vld [vmem:[%s18 + $0x14] sm:$0xf]
    %v3074 = vld [vmem:[%s18 + $0x18] sm:$0xf]
    %v3075 = vld [vmem:[%s18 + $0x1c] sm:$0xf]
    %v3076 = vld [vmem:[%s18 + $0x20] sm:$0xf]
    %v3077 = vld [vmem:[%s18 + $0x24] sm:$0xf]
    %v3078 = vld [vmem:[%s18 + $0x28] sm:$0xf]
    %v3079 = vld [vmem:[%s18 + $0x2c] sm:$0xf]
    %v3080 = vld [vmem:[%s18 + $0x30] sm:$0xf]
    %v3081 = vld [vmem:[%s18 + $0x34] sm:$0xf]
    %v3082 = vld [vmem:[%s18 + $0x38] sm:$0xf]
    %v3083 = vld [vmem:[%s18 + $0x3c] sm:$0xf]
    %v3084 = vld [vmem:[%s19] sm:$0x1]
    %v3086 = vlaneseq
    %v3087 = vshrl.u32 %v3086, 7
    %v3088 = vsub.s32 0, %v3087
    %v3089 = vrot.slane %v3084, %v3088
    %v3107 = vunpack.c.l.b16 %v3068
    %v3108 = vunpack.c.l.b16 %v3069
    %v3109 = vunpack.c.l.b16 %v3070
    %v3110 = vunpack.c.l.b16 %v3071
    %v3111 = vunpack.c.l.b16 %v3072
    %v3112 = vunpack.c.l.b16 %v3073
    %v3113 = vunpack.c.l.b16 %v3074
    %v3114 = vunpack.c.l.b16 %v3075
    %v3115 = vunpack.c.l.b16 %v3076
    %v3116 = vunpack.c.l.b16 %v3077
    %v3117 = vunpack.c.l.b16 %v3078
    %v3118 = vunpack.c.l.b16 %v3079
    %v3119 = vunpack.c.l.b16 %v3080
    %v3120 = vunpack.c.l.b16 %v3081
    %v3121 = vunpack.c.l.b16 %v3082
    %v3122 = vunpack.c.l.b16 %v3083
    %v3123 = vpack.c.b16 %v3108, %v3107
    %v3124 = vpack.c.b16 %v3110, %v3109
    %v3125 = vpack.c.b16 %v3112, %v3111
    %v3126 = vpack.c.b16 %v3114, %v3113
    %v3127 = vpack.c.b16 %v3116, %v3115
    %v3128 = vpack.c.b16 %v3118, %v3117
    %v3129 = vpack.c.b16 %v3120, %v3119
    %v3130 = vpack.c.b16 %v3122, %v3121
    %3139 = vmatprep.subr.bf16.mxu0 0
    %3140 = vmatpush1.bf16.msra.mxu0 %v3123
    %3141 = vmatprep.subr.bf16.mxu0 0
    %3142 = vmatpush1.bf16.msra.mxu0 %v3124
    %3143 = vmatprep.subr.bf16.mxu0 0
    %3144 = vmatpush1.bf16.msra.mxu0 %v3125
    %3145 = vmatprep.subr.bf16.mxu0 0
    %3146 = vmatpush1.bf16.msra.mxu0 %v3126
    %3147 = vmatprep.subr.bf16.mxu0 0
    %3148 = vmatpush1.bf16.msra.mxu0 %v3127
    %3149 = vmatprep.subr.bf16.mxu0 0
    %3150 = vmatpush1.bf16.msra.mxu0 %v3128
    %3151 = vmatprep.subr.bf16.mxu0 0
    %3152 = vmatpush1.bf16.msra.mxu0 %v3129
    %3153 = vmatprep.subr.bf16.mxu0 0
    %3154 = vmatpush1.bf16.msra.mxu0 %v3130
    %3155 = vmatprep.subr.bf16.mxu0 0
    %3156 = vmatpush1.bf16.msra.mxu0 0
    %3157 = vmatprep.subr.bf16.mxu0 0
    %3158 = vmatpush1.bf16.msra.mxu0 0
    %3159 = vmatprep.subr.bf16.mxu0 0
    %3160 = vmatpush1.bf16.msra.mxu0 0
    %3161 = vmatprep.subr.bf16.mxu0 0
    %3162 = vmatpush1.bf16.msra.mxu0 0
    %3163 = vmatprep.subr.bf16.mxu0 0
    %3164 = vmatpush1.bf16.msra.mxu0 0
    %3165 = vmatprep.subr.bf16.mxu0 0
    %3166 = vmatpush1.bf16.msra.mxu0 0
    %3167 = vmatprep.subr.bf16.mxu0 0
    %3168 = vmatpush1.bf16.msra.mxu0 0
    %3169 = vmatprep.subr.bf16.mxu0 0
    %3170 = vmatpush1.bf16.msra.mxu0 0
    %3171 = vmatprep.mubr.bf16.mxu0 0
    %3172 = vmatmul.mubr.bf16.gmra.mrb[0].mxu0 %v3067
    %v3173 = vpop.f32.mrb[0].mxu0
    %v3174 = vadd.f32 %v3089, %v3173
    %v3175 = vpop.f32.mrb[0].mxu0
    %v3176 = vpop.f32.mrb[0].mxu0
    %v3177 = vadd.f32 %v3089, %v3176
    %v3178 = vpop.f32.mrb[0].mxu0
    %3179 = vdwg.mxu0
    %v3180 = vmax.f32 %v3174, 0.0
    %v3181 = vmax.f32 %v3177, 0.0
    %3182 = vst [vmem:[#allocation25] sm:$0xff] %v3180
    %3183 = vst [vmem:[#allocation25 + $0x8] sm:$0xff] %v3181
    // Predicated region
    $region138: #{tpu_custom_call.1} parent=1 // pred_check
      _
    $region139: #{tpu_custom_call.1} parent=1 // pred_check_branch
      %3185 = sbr.rel (0) target = $region141
    $region140: #{tpu_custom_call.1} parent=1 // pred_region
      %s3187 = ssub.s32 256, 256
      %3188 = vsyncadd [#allocation4], %s3187
      %s3189 = sshll.u32 [#allocation25], 4
      %s3190 = int_to_ptr.vmem [resolvable:$true] %s3189
      %3195 = dma.vmem_to_hbm [thread:$0]  %s3190, 256, %s20, [#allocation4], 128, 128, 8
    $region141: #{tpu_custom_call.1} parent=1 // pred_fallthru
      _
    // Predicated region
    $region142: #{tpu_custom_call.1} parent=1 // pred_check
      _
    $region143: #{tpu_custom_call.1} parent=1 // pred_check_branch
      %3197 = sbr.rel (0) target = $region145
    $region144: #{tpu_custom_call.1} parent=1 // pred_region
      %3198 = dma.done [#allocation4], 256
    $region145: #{tpu_custom_call.1} parent=1 // pred_fallthru
      _
    %3199 = vsyncpa [#allocation3], 1
    %3200 = vsyncpa [#allocation6], 1
    %3201 = vsyncpa [#allocation9], 1
    %3202 = vsyncpa [#allocation12], 1
    %3203 = vsyncpa [#allocation15], 1
    %3204 = vsyncpa [#allocation18], 1
    %3205 = vsyncpa [#allocation21], 1
    %3206 = vsyncpa [#allocation24], 1
    %3207 = vsyncpa [#allocation4], 1

</llo_original>
